<compile_context>
chip_gen: v5e
topology: v5e:2x2
jax: 0.10.0
libtpu: 0.0.40
codegen_flags: <defaults>
</compile_context>

<pallas_src>
import jax
import jax.numpy as jnp
from jax.experimental import pallas as pl
from jax.experimental.pallas import tpu as pltpu

POINT_CHANNEL = 3
HIDDEN = (64, 64, 128, 256)  # local_mlp layer widths


def _gelu(x):
    # tanh-approx GELU: the transcendental lands on the EUP slot.
    return jax.nn.gelu(x, approximate=True)


def _device_kind():
    try:
        return jax.devices()[0].device_kind.lower()
    except Exception:
        return ""


def _make_kernel(tb, tn, act_dtype):
    h1_d = HIDDEN[0]

    def kernel(x_ref,
               w1t_ref, b1_ref,
               w2t_ref, b2_ref,
               w3t_ref, b3_ref,
               w4t_ref, b4_ref,
               out_ref, h1_ref):
        # x_ref:   (tb, 3, tn) f32, lane-dense along N.
        # out_ref: (tb, 256)  f32, resident across the N grid axis (running max).
        # h1_ref:  (64, tb*tn) bf16 scratch: batch-folded layer-1 activations.
        @pl.when(pl.program_id(1) == 0)
        def _init():
            out_ref[...] = jnp.full(out_ref.shape, -jnp.inf, out_ref.dtype)

        # ---- Layer 1: Linear(3, 64) on the VPU (a K=3 MXU dot would be ~2%
        # utilized).  Broadcasts hoisted out of the per-row loop. ------------
        w1t = w1t_ref[...]                                        # (64, 3) f32
        w1c = [jnp.broadcast_to(w1t[:, c:c + 1], (h1_d, tn)) for c in range(3)]
        b1b = jnp.broadcast_to(b1_ref[...], (h1_d, tn))           # (64, tn)

        for bl in range(tb):                 # small static unroll over rows
            xc = x_ref[bl]                                        # (3, tn) f32
            h = (w1c[0] * xc[0:1, :]
                 + w1c[1] * xc[1:2, :]
                 + w1c[2] * xc[2:3, :]
                 + b1b)                                           # (64, tn)
            h = _gelu(h.astype(act_dtype))
            # Fold this row into the matmul stream dimension (lane offset bl*tn).
            h1_ref[:, bl * tn:(bl + 1) * tn] = h.astype(jnp.bfloat16)

        # ---- Layers 2-4: ONE MXU dot per layer over all tb*tn lanes. -------
        h1 = h1_ref[...]                                          # (64, tb*tn) bf16
        h2 = jnp.dot(w2t_ref[...], h1,
                     preferred_element_type=jnp.float32)          # (64, tb*tn)
        h2 = _gelu(h2.astype(act_dtype) + b2_ref[...])
        h3 = jnp.dot(w3t_ref[...], h2.astype(jnp.bfloat16),
                     preferred_element_type=jnp.float32)          # (128, tb*tn)
        h3 = _gelu(h3.astype(act_dtype) + b3_ref[...])
        h4 = jnp.dot(w4t_ref[...], h3.astype(jnp.bfloat16),
                     preferred_element_type=jnp.float32) + b4_ref[...]  # (256, tb*tn) f32

        # ---- Per-row max over points; single lane-dense (tb, 256) store. ----
        blk_max = jnp.stack(
            [jnp.max(h4[:, bl * tn:(bl + 1) * tn], axis=1) for bl in range(tb)],
            axis=0)                                               # (tb, 256)
        out_ref[...] = jnp.maximum(out_ref[...], blk_max)

    return kernel


def _pick_tb(B, tile_b):
    """Batch rows per grid step: a multiple of 8 dividing B, or tb == B."""
    tile_b = max(1, int(tile_b))
    if B <= tile_b:
        # Whole batch in one block (tb == B is always layout-legal); if it is
        # big enough, split in two so both v7x TensorCores get a block.
        if B >= 16 and (B // 2) % 8 == 0 and B % 2 == 0:
            return B // 2
        return B
    tb = (tile_b // 8) * 8
    while tb >= 8:
        if B % tb == 0:
            return tb               # multiple of 8 -> legal sublane block
        tb -= 8
    return B                        # fallback: whole batch as one block


def _vmem_limit_bytes(tb, tn, act_dtype, kind):
    tl = tb * tn
    ab = jnp.dtype(act_dtype).itemsize
    est = (2 * tb * POINT_CHANNEL * tn * 4          # double-buffered input block
           + HIDDEN[0] * tl * (2 + ab)              # layer-1 scratch + value
           + HIDDEN[1] * tl * (4 + ab + 2)          # layer-2 acc / act / bf16 feed
           + HIDDEN[2] * tl * (4 + ab + 2)          # layer-3 acc / act / bf16 feed
           + HIDDEN[3] * tl * 4                     # layer-4 f32 output
           + (2 << 20))                             # weights/biases/out/slack
    cap = (48 << 20) if ("v7" in kind or "7x" in kind) else (96 << 20)
    return int(min(max(est * 3 // 2, 32 << 20), cap))


def pointnet_large_half(x, params, *, tile_n=1024, tile_b=8):
    """x: [B, N, 3] float32; params: w{i}: [C_in, C_out], b{i}: [C_out].

    Returns [B, 256] float32 (== max over points of the 4-layer MLP)."""
    B, N, C = x.shape
    assert C == POINT_CHANNEL
    out_dim = HIDDEN[-1]

    tn = min(tile_n, N)
    assert N % tn == 0, "N must be a multiple of tile_n"
    assert tn % 128 == 0 or tn == N, "tile_n must be a multiple of 128 (or N)"
    # TODO(synk): ragged / non-divisible point counts would need a masked tail tile.

    tb = _pick_tb(B, tile_b)

    kind = _device_kind()
    # v6e / v7x have bf16-capable VPU/EUP -> run GELU + bias adds in bf16 there;
    # keep f32 elementwise math on v5e and older.
    act_dtype = (jnp.bfloat16 if ("v6" in kind or "v7" in kind or "7x" in kind)
                 else jnp.float32)

    # Lane-dense, channels-first layout for the kernel (layout plumbing only).
    x_cf = jnp.transpose(x, (0, 2, 1)).astype(jnp.float32)       # [B, 3, N]

    f32, bf16 = jnp.float32, jnp.bfloat16
    w1t = params["w1"].T.astype(f32)                  # (64, 3)   f32 (VPU layer)
    w2t = params["w2"].T.astype(bf16)                 # (64, 64)  MXU
    w3t = params["w3"].T.astype(bf16)                 # (128, 64) MXU
    w4t = params["w4"].T.astype(bf16)                 # (256, 128) MXU
    b1 = params["b1"].reshape(-1, 1).astype(f32)      # (64, 1)
    b2 = params["b2"].reshape(-1, 1).astype(act_dtype)
    b3 = params["b3"].reshape(-1, 1).astype(act_dtype)
    b4 = params["b4"].reshape(-1, 1).astype(f32)      # (256, 1)

    def full_spec(arr):
        nd = arr.ndim
        return pl.BlockSpec(arr.shape, lambda b, n, _nd=nd: (0,) * _nd)

    return pl.pallas_call(
        _make_kernel(tb, tn, act_dtype),
        out_shape=jax.ShapeDtypeStruct((B, out_dim), jnp.float32),
        grid_spec=pltpu.PrefetchScalarGridSpec(
            num_scalar_prefetch=0,
            grid=(B // tb, N // tn),
            in_specs=[
                pl.BlockSpec((tb, POINT_CHANNEL, tn), lambda b, n: (b, 0, n)),
                full_spec(w1t), full_spec(b1),
                full_spec(w2t), full_spec(b2),
                full_spec(w3t), full_spec(b3),
                full_spec(w4t), full_spec(b4),
            ],
            out_specs=pl.BlockSpec((tb, out_dim), lambda b, n: (b, 0)),
            scratch_shapes=[pltpu.VMEM((HIDDEN[0], tb * tn), jnp.bfloat16)],
        ),
        compiler_params=pltpu.CompilerParams(
            dimension_semantics=("parallel", "arbitrary"),
            vmem_limit_bytes=_vmem_limit_bytes(tb, tn, act_dtype, kind)),
    )(x_cf, w1t, b1, w2t, b2, w3t, b3, w4t, b4)


def init_params(key):
    """Matches reset_parameters_: trunc_normal(std=0.02) weights, zero biases.
    Weights stored transposed vs PyTorch: w{i} is [C_in, C_out]."""
    dims = (POINT_CHANNEL,) + HIDDEN
    params = {}
    for i in range(4):
        key, sub = jax.random.split(key)
        cin, cout = dims[i], dims[i + 1]
        w = jax.random.truncated_normal(sub, -2.0, 2.0, (cin, cout), jnp.float32) * 0.02
        params[f"w{i + 1}"] = w
        params[f"b{i + 1}"] = jnp.zeros((cout,), jnp.float32)
    return params


def reference_forward(x, params):
    """Pure-JAX f32 / exact-erf GELU reference (mirrors the PyTorch module)."""
    h = x
    for i in range(4):
        h = h @ params[f"w{i + 1}"] + params[f"b{i + 1}"]
        if i < 3:
            h = jax.nn.gelu(h, approximate=False)
    return jnp.max(h, axis=1)


if __name__ == "__main__":
    key = jax.random.PRNGKey(0)
    pkey, xkey = jax.random.split(key)

    params = init_params(pkey)

    B, N = 2, 512
    x = jax.random.normal(xkey, (B, N, POINT_CHANNEL), jnp.float32)

    out = pointnet_large_half(x, params)      # tn=512, tb=2, grid=(1, 1)
    out = jax.block_until_ready(out)

    ref = reference_forward(x, params)
    assert out.shape == (B, HIDDEN[-1])
    # bf16 MXU operands (+ bf16 tanh-GELU on v6e/v7x) vs the exact-erf f32
    # reference -> compare with a correspondingly loose tolerance.
    assert jnp.allclose(out, ref, rtol=5e-2, atol=1e-5), "mismatch vs pure-JAX reference"

    print("KERNEL_OK")
</pallas_src>

<mosaic_0001>
module attributes {stable_mosaic.version = 11 : i64} {
  func.func @kernel(%arg0: i32, %arg1: i32, %arg2: memref<2x3x512xf32, #tpu.memory_space<vmem>>, %arg3: memref<64x3xf32, #tpu.memory_space<vmem>>, %arg4: memref<64x1xf32, #tpu.memory_space<vmem>>, %arg5: memref<64x64xbf16, #tpu.memory_space<vmem>>, %arg6: memref<64x1xf32, #tpu.memory_space<vmem>>, %arg7: memref<128x64xbf16, #tpu.memory_space<vmem>>, %arg8: memref<128x1xf32, #tpu.memory_space<vmem>>, %arg9: memref<256x128xbf16, #tpu.memory_space<vmem>>, %arg10: memref<256x1xf32, #tpu.memory_space<vmem>>, %arg11: memref<2x256xf32, #tpu.memory_space<vmem>>, %arg12: memref<64x1024xbf16, #tpu.memory_space<vmem>>) attributes {dimension_semantics = [#tpu.dimension_semantics<parallel>, #tpu.dimension_semantics<arbitrary>], iteration_bounds = array<i64: 1, 1>, scalar_prefetch = 0 : i64, scratch_operands = 1 : i64, tpu.core_type = #tpu.core_type<tc>, window_params = [{transform_indices = @transform_0, window_bounds = array<i64: 2, 3, 512>}, {pipeline_mode = #tpu.pipeline_mode<synchronous>, transform_indices = @transform_1, window_bounds = array<i64: 64, 3>}, {pipeline_mode = #tpu.pipeline_mode<synchronous>, transform_indices = @transform_2, window_bounds = array<i64: 64, 1>}, {pipeline_mode = #tpu.pipeline_mode<synchronous>, transform_indices = @transform_3, window_bounds = array<i64: 64, 64>}, {pipeline_mode = #tpu.pipeline_mode<synchronous>, transform_indices = @transform_4, window_bounds = array<i64: 64, 1>}, {pipeline_mode = #tpu.pipeline_mode<synchronous>, transform_indices = @transform_5, window_bounds = array<i64: 128, 64>}, {pipeline_mode = #tpu.pipeline_mode<synchronous>, transform_indices = @transform_6, window_bounds = array<i64: 128, 1>}, {pipeline_mode = #tpu.pipeline_mode<synchronous>, transform_indices = @transform_7, window_bounds = array<i64: 256, 128>}, {pipeline_mode = #tpu.pipeline_mode<synchronous>, transform_indices = @transform_8, window_bounds = array<i64: 256, 1>}, {transform_indices = @transform_9, window_bounds = array<i64: 2, 256>}]} {
    %c0_i32 = arith.constant 0 : i32
    %0 = arith.cmpi eq, %arg1, %c0_i32 : i32
    %1 = arith.extui %0 : i1 to i32
    %c0_i32_0 = arith.constant 0 : i32
    %2 = arith.cmpi ne, %1, %c0_i32_0 : i32
    scf.if %2 {
      %cst_50 = arith.constant 0xFF800000 : f32
      %128 = vector.broadcast %cst_50 : f32 to vector<2x256xf32>
      %c0_51 = arith.constant 0 : index
      %c0_52 = arith.constant 0 : index
      %129 = vector.load %arg11[%c0_51, %c0_52] : memref<2x256xf32, #tpu.memory_space<vmem>>, vector<2x256xf32>
      tpu.vector_store %arg11[%c0_51, %c0_52], %128 {strides = array<i32>} : memref<2x256xf32, #tpu.memory_space<vmem>>, vector<2x256xf32>,
    } else {
    }
    %c0 = arith.constant 0 : index
    %c0_1 = arith.constant 0 : index
    %3 = vector.load %arg3[%c0, %c0_1] : memref<64x3xf32, #tpu.memory_space<vmem>>, vector<64x3xf32>
    %4 = vector.extract_strided_slice %3 {offsets = [0, 0], sizes = [64, 1], strides = [1, 1]} : vector<64x3xf32> to vector<64x1xf32>
    %5 = vector.shape_cast %4 : vector<64x1xf32> to vector<64x1xf32>
    %6 = vector.broadcast %5 : vector<64x1xf32> to vector<64x512xf32>
    %7 = vector.extract_strided_slice %3 {offsets = [0, 1], sizes = [64, 1], strides = [1, 1]} : vector<64x3xf32> to vector<64x1xf32>
    %8 = vector.shape_cast %7 : vector<64x1xf32> to vector<64x1xf32>
    %9 = vector.broadcast %8 : vector<64x1xf32> to vector<64x512xf32>
    %10 = vector.extract_strided_slice %3 {offsets = [0, 2], sizes = [64, 1], strides = [1, 1]} : vector<64x3xf32> to vector<64x1xf32>
    %11 = vector.shape_cast %10 : vector<64x1xf32> to vector<64x1xf32>
    %12 = vector.broadcast %11 : vector<64x1xf32> to vector<64x512xf32>
    %c0_2 = arith.constant 0 : index
    %c0_3 = arith.constant 0 : index
    %13 = vector.load %arg4[%c0_2, %c0_3] : memref<64x1xf32, #tpu.memory_space<vmem>>, vector<64x1xf32>
    %14 = vector.shape_cast %13 : vector<64x1xf32> to vector<64x1xf32>
    %15 = vector.broadcast %14 : vector<64x1xf32> to vector<64x512xf32>
    %c0_4 = arith.constant 0 : index
    %c0_5 = arith.constant 0 : index
    %c0_6 = arith.constant 0 : index
    %16 = vector.load %arg2[%c0_4, %c0_5, %c0_6] : memref<2x3x512xf32, #tpu.memory_space<vmem>>, vector<1x3x512xf32>
    %17 = vector.shape_cast %16 : vector<1x3x512xf32> to vector<3x512xf32>
    %18 = vector.extract_strided_slice %17 {offsets = [0, 0], sizes = [1, 512], strides = [1, 1]} : vector<3x512xf32> to vector<1x512xf32>
    %19 = vector.broadcast %18 : vector<1x512xf32> to vector<64x512xf32>
    %20 = arith.mulf %6, %19 : vector<64x512xf32>
    %21 = vector.extract_strided_slice %17 {offsets = [1, 0], sizes = [1, 512], strides = [1, 1]} : vector<3x512xf32> to vector<1x512xf32>
    %22 = vector.broadcast %21 : vector<1x512xf32> to vector<64x512xf32>
    %23 = arith.mulf %9, %22 : vector<64x512xf32>
    %24 = arith.addf %20, %23 : vector<64x512xf32>
    %25 = vector.extract_strided_slice %17 {offsets = [2, 0], sizes = [1, 512], strides = [1, 1]} : vector<3x512xf32> to vector<1x512xf32>
    %26 = vector.broadcast %25 : vector<1x512xf32> to vector<64x512xf32>
    %27 = arith.mulf %12, %26 : vector<64x512xf32>
    %28 = arith.addf %24, %27 : vector<64x512xf32>
    %29 = arith.addf %28, %15 : vector<64x512xf32>
    %30 = arith.mulf %29, %29 : vector<64x512xf32>
    %31 = arith.mulf %29, %30 : vector<64x512xf32>
    %cst = arith.constant 4.471500e-02 : f32
    %32 = vector.broadcast %cst : f32 to vector<64x512xf32>
    %33 = arith.mulf %32, %31 : vector<64x512xf32>
    %34 = arith.addf %29, %33 : vector<64x512xf32>
    %cst_7 = arith.constant 0.797884583 : f32
    %35 = vector.broadcast %cst_7 : f32 to vector<64x512xf32>
    %36 = arith.mulf %35, %34 : vector<64x512xf32>
    %37 = math.tanh %36 : vector<64x512xf32>
    %cst_8 = arith.constant 1.000000e+00 : f32
    %38 = vector.broadcast %cst_8 : f32 to vector<64x512xf32>
    %39 = arith.addf %38, %37 : vector<64x512xf32>
    %cst_9 = arith.constant 5.000000e-01 : f32
    %40 = vector.broadcast %cst_9 : f32 to vector<64x512xf32>
    %41 = arith.mulf %40, %39 : vector<64x512xf32>
    %42 = arith.mulf %29, %41 : vector<64x512xf32>
    %43 = arith.truncf %42 : vector<64x512xf32> to vector<64x512xbf16>
    %c0_10 = arith.constant 0 : index
    %c0_11 = arith.constant 0 : index
    %44 = vector.load %arg12[%c0_10, %c0_11] : memref<64x1024xbf16, #tpu.memory_space<vmem>>, vector<64x512xbf16>
    tpu.vector_store %arg12[%c0_10, %c0_11], %43 {strides = array<i32>} : memref<64x1024xbf16, #tpu.memory_space<vmem>>, vector<64x512xbf16>,
    %c1 = arith.constant 1 : index
    %c0_12 = arith.constant 0 : index
    %c0_13 = arith.constant 0 : index
    %45 = vector.load %arg2[%c1, %c0_12, %c0_13] : memref<2x3x512xf32, #tpu.memory_space<vmem>>, vector<1x3x512xf32>
    %46 = vector.shape_cast %45 : vector<1x3x512xf32> to vector<3x512xf32>
    %47 = vector.extract_strided_slice %46 {offsets = [0, 0], sizes = [1, 512], strides = [1, 1]} : vector<3x512xf32> to vector<1x512xf32>
    %48 = vector.broadcast %47 : vector<1x512xf32> to vector<64x512xf32>
    %49 = arith.mulf %6, %48 : vector<64x512xf32>
    %50 = vector.extract_strided_slice %46 {offsets = [1, 0], sizes = [1, 512], strides = [1, 1]} : vector<3x512xf32> to vector<1x512xf32>
    %51 = vector.broadcast %50 : vector<1x512xf32> to vector<64x512xf32>
    %52 = arith.mulf %9, %51 : vector<64x512xf32>
    %53 = arith.addf %49, %52 : vector<64x512xf32>
    %54 = vector.extract_strided_slice %46 {offsets = [2, 0], sizes = [1, 512], strides = [1, 1]} : vector<3x512xf32> to vector<1x512xf32>
    %55 = vector.broadcast %54 : vector<1x512xf32> to vector<64x512xf32>
    %56 = arith.mulf %12, %55 : vector<64x512xf32>
    %57 = arith.addf %53, %56 : vector<64x512xf32>
    %58 = arith.addf %57, %15 : vector<64x512xf32>
    %59 = arith.mulf %58, %58 : vector<64x512xf32>
    %60 = arith.mulf %58, %59 : vector<64x512xf32>
    %cst_14 = arith.constant 4.471500e-02 : f32
    %61 = vector.broadcast %cst_14 : f32 to vector<64x512xf32>
    %62 = arith.mulf %61, %60 : vector<64x512xf32>
    %63 = arith.addf %58, %62 : vector<64x512xf32>
    %cst_15 = arith.constant 0.797884583 : f32
    %64 = vector.broadcast %cst_15 : f32 to vector<64x512xf32>
    %65 = arith.mulf %64, %63 : vector<64x512xf32>
    %66 = math.tanh %65 : vector<64x512xf32>
    %cst_16 = arith.constant 1.000000e+00 : f32
    %67 = vector.broadcast %cst_16 : f32 to vector<64x512xf32>
    %68 = arith.addf %67, %66 : vector<64x512xf32>
    %cst_17 = arith.constant 5.000000e-01 : f32
    %69 = vector.broadcast %cst_17 : f32 to vector<64x512xf32>
    %70 = arith.mulf %69, %68 : vector<64x512xf32>
    %71 = arith.mulf %58, %70 : vector<64x512xf32>
    %72 = arith.truncf %71 : vector<64x512xf32> to vector<64x512xbf16>
    %c0_18 = arith.constant 0 : index
    %c512 = arith.constant 512 : index
    %73 = vector.load %arg12[%c0_18, %c512] : memref<64x1024xbf16, #tpu.memory_space<vmem>>, vector<64x512xbf16>
    tpu.vector_store %arg12[%c0_18, %c512], %72 {strides = array<i32>} : memref<64x1024xbf16, #tpu.memory_space<vmem>>, vector<64x512xbf16>,
    %c0_19 = arith.constant 0 : index
    %c0_20 = arith.constant 0 : index
    %74 = vector.load %arg12[%c0_19, %c0_20] : memref<64x1024xbf16, #tpu.memory_space<vmem>>, vector<64x1024xbf16>
    %c0_21 = arith.constant 0 : index
    %c0_22 = arith.constant 0 : index
    %75 = vector.load %arg5[%c0_21, %c0_22] : memref<64x64xbf16, #tpu.memory_space<vmem>>, vector<64x64xbf16>
    %cst_23 = arith.constant dense<0.000000e+00> : vector<64x1024xf32>
    %76 = tpu.matmul %75, %74, %cst_23 {dimension_numbers = #tpu.dot_dimension_numbers<[1], [0], [0], [1], [0, 0, 1, 1], [], []>} : vector<64x64xbf16>, vector<64x1024xbf16>, vector<64x1024xf32> -> vector<64x1024xf32>
    %c0_24 = arith.constant 0 : index
    %c0_25 = arith.constant 0 : index
    %77 = vector.load %arg6[%c0_24, %c0_25] : memref<64x1xf32, #tpu.memory_space<vmem>>, vector<64x1xf32>
    %78 = vector.broadcast %77 : vector<64x1xf32> to vector<64x1024xf32>
    %79 = arith.addf %76, %78 : vector<64x1024xf32>
    %80 = arith.mulf %79, %79 : vector<64x1024xf32>
    %81 = arith.mulf %79, %80 : vector<64x1024xf32>
    %cst_26 = arith.constant 4.471500e-02 : f32
    %82 = vector.broadcast %cst_26 : f32 to vector<64x1024xf32>
    %83 = arith.mulf %82, %81 : vector<64x1024xf32>
    %84 = arith.addf %79, %83 : vector<64x1024xf32>
    %cst_27 = arith.constant 0.797884583 : f32
    %85 = vector.broadcast %cst_27 : f32 to vector<64x1024xf32>
    %86 = arith.mulf %85, %84 : vector<64x1024xf32>
    %87 = math.tanh %86 : vector<64x1024xf32>
    %cst_28 = arith.constant 1.000000e+00 : f32
    %88 = vector.broadcast %cst_28 : f32 to vector<64x1024xf32>
    %89 = arith.addf %88, %87 : vector<64x1024xf32>
    %cst_29 = arith.constant 5.000000e-01 : f32
    %90 = vector.broadcast %cst_29 : f32 to vector<64x1024xf32>
    %91 = arith.mulf %90, %89 : vector<64x1024xf32>
    %92 = arith.mulf %79, %91 : vector<64x1024xf32>
    %c0_30 = arith.constant 0 : index
    %c0_31 = arith.constant 0 : index
    %93 = vector.load %arg7[%c0_30, %c0_31] : memref<128x64xbf16, #tpu.memory_space<vmem>>, vector<128x64xbf16>
    %94 = arith.truncf %92 : vector<64x1024xf32> to vector<64x1024xbf16>
    %cst_32 = arith.constant dense<0.000000e+00> : vector<128x1024xf32>
    %95 = tpu.matmul %93, %94, %cst_32 {dimension_numbers = #tpu.dot_dimension_numbers<[1], [0], [0], [1], [0, 0, 1, 1], [], []>} : vector<128x64xbf16>, vector<64x1024xbf16>, vector<128x1024xf32> -> vector<128x1024xf32>
    %c0_33 = arith.constant 0 : index
    %c0_34 = arith.constant 0 : index
    %96 = vector.load %arg8[%c0_33, %c0_34] : memref<128x1xf32, #tpu.memory_space<vmem>>, vector<128x1xf32>
    %97 = vector.broadcast %96 : vector<128x1xf32> to vector<128x1024xf32>
    %98 = arith.addf %95, %97 : vector<128x1024xf32>
    %99 = arith.mulf %98, %98 : vector<128x1024xf32>
    %100 = arith.mulf %98, %99 : vector<128x1024xf32>
    %cst_35 = arith.constant 4.471500e-02 : f32
    %101 = vector.broadcast %cst_35 : f32 to vector<128x1024xf32>
    %102 = arith.mulf %101, %100 : vector<128x1024xf32>
    %103 = arith.addf %98, %102 : vector<128x1024xf32>
    %cst_36 = arith.constant 0.797884583 : f32
    %104 = vector.broadcast %cst_36 : f32 to vector<128x1024xf32>
    %105 = arith.mulf %104, %103 : vector<128x1024xf32>
    %106 = math.tanh %105 : vector<128x1024xf32>
    %cst_37 = arith.constant 1.000000e+00 : f32
    %107 = vector.broadcast %cst_37 : f32 to vector<128x1024xf32>
    %108 = arith.addf %107, %106 : vector<128x1024xf32>
    %cst_38 = arith.constant 5.000000e-01 : f32
    %109 = vector.broadcast %cst_38 : f32 to vector<128x1024xf32>
    %110 = arith.mulf %109, %108 : vector<128x1024xf32>
    %111 = arith.mulf %98, %110 : vector<128x1024xf32>
    %c0_39 = arith.constant 0 : index
    %c0_40 = arith.constant 0 : index
    %112 = vector.load %arg9[%c0_39, %c0_40] : memref<256x128xbf16, #tpu.memory_space<vmem>>, vector<256x128xbf16>
    %113 = arith.truncf %111 : vector<128x1024xf32> to vector<128x1024xbf16>
    %cst_41 = arith.constant dense<0.000000e+00> : vector<256x1024xf32>
    %114 = tpu.matmul %112, %113, %cst_41 {dimension_numbers = #tpu.dot_dimension_numbers<[1], [0], [0], [1], [0, 0, 1, 1], [], []>} : vector<256x128xbf16>, vector<128x1024xbf16>, vector<256x1024xf32> -> vector<256x1024xf32>
    %c0_42 = arith.constant 0 : index
    %c0_43 = arith.constant 0 : index
    %115 = vector.load %arg10[%c0_42, %c0_43] : memref<256x1xf32, #tpu.memory_space<vmem>>, vector<256x1xf32>
    %116 = vector.broadcast %115 : vector<256x1xf32> to vector<256x1024xf32>
    %117 = arith.addf %114, %116 : vector<256x1024xf32>
    %118 = vector.extract_strided_slice %117 {offsets = [0, 0], sizes = [256, 512], strides = [1, 1]} : vector<256x1024xf32> to vector<256x512xf32>
    %cst_44 = arith.constant dense<0xFF800000> : vector<256xf32>
    %119 = vector.multi_reduction <maximumf>, %118, %cst_44 [1] : vector<256x512xf32> to vector<256xf32>
    %120 = vector.extract_strided_slice %117 {offsets = [0, 512], sizes = [256, 512], strides = [1, 1]} : vector<256x1024xf32> to vector<256x512xf32>
    %cst_45 = arith.constant dense<0xFF800000> : vector<256xf32>
    %121 = vector.multi_reduction <maximumf>, %120, %cst_45 [1] : vector<256x512xf32> to vector<256xf32>
    %122 = vector.shape_cast %119 : vector<256xf32> to vector<1x256xf32>
    %123 = vector.shape_cast %121 : vector<256xf32> to vector<1x256xf32>
    %124 = tpu.concatenate %122, %123 in 0 : vector<1x256xf32>, vector<1x256xf32> -> vector<2x256xf32>
    %c0_46 = arith.constant 0 : index
    %c0_47 = arith.constant 0 : index
    %125 = vector.load %arg11[%c0_46, %c0_47] : memref<2x256xf32, #tpu.memory_space<vmem>>, vector<2x256xf32>
    %126 = arith.maximumf %125, %124 : vector<2x256xf32>
    %c0_48 = arith.constant 0 : index
    %c0_49 = arith.constant 0 : index
    %127 = vector.load %arg11[%c0_48, %c0_49] : memref<2x256xf32, #tpu.memory_space<vmem>>, vector<2x256xf32>
    tpu.vector_store %arg11[%c0_48, %c0_49], %126 {strides = array<i32>} : memref<2x256xf32, #tpu.memory_space<vmem>>, vector<2x256xf32>,
    return
  }
  func.func @transform_0(%arg0: i32, %arg1: i32) -> (i32, i32, i32) {
    %c0_i32 = arith.constant 0 : i32
    %c0_i32_0 = arith.constant 0 : i32
    return %arg0, %c0_i32, %arg1 : i32, i32, i32
  }
  func.func @transform_1(%arg0: i32, %arg1: i32) -> (i32, i32) {
    %c0_i32 = arith.constant 0 : i32
    %c0_i32_0 = arith.constant 0 : i32
    %c0_i32_1 = arith.constant 0 : i32
    return %c0_i32, %c0_i32_0 : i32, i32
  }
  func.func @transform_2(%arg0: i32, %arg1: i32) -> (i32, i32) {
    %c0_i32 = arith.constant 0 : i32
    %c0_i32_0 = arith.constant 0 : i32
    %c0_i32_1 = arith.constant 0 : i32
    return %c0_i32, %c0_i32_0 : i32, i32
  }
  func.func @transform_3(%arg0: i32, %arg1: i32) -> (i32, i32) {
    %c0_i32 = arith.constant 0 : i32
    %c0_i32_0 = arith.constant 0 : i32
    %c0_i32_1 = arith.constant 0 : i32
    return %c0_i32, %c0_i32_0 : i32, i32
  }
  func.func @transform_4(%arg0: i32, %arg1: i32) -> (i32, i32) {
    %c0_i32 = arith.constant 0 : i32
    %c0_i32_0 = arith.constant 0 : i32
    %c0_i32_1 = arith.constant 0 : i32
    return %c0_i32, %c0_i32_0 : i32, i32
  }
  func.func @transform_5(%arg0: i32, %arg1: i32) -> (i32, i32) {
    %c0_i32 = arith.constant 0 : i32
    %c0_i32_0 = arith.constant 0 : i32
    %c0_i32_1 = arith.constant 0 : i32
    return %c0_i32, %c0_i32_0 : i32, i32
  }
  func.func @transform_6(%arg0: i32, %arg1: i32) -> (i32, i32) {
    %c0_i32 = arith.constant 0 : i32
    %c0_i32_0 = arith.constant 0 : i32
    %c0_i32_1 = arith.constant 0 : i32
    return %c0_i32, %c0_i32_0 : i32, i32
  }
  func.func @transform_7(%arg0: i32, %arg1: i32) -> (i32, i32) {
    %c0_i32 = arith.constant 0 : i32
    %c0_i32_0 = arith.constant 0 : i32
    %c0_i32_1 = arith.constant 0 : i32
    return %c0_i32, %c0_i32_0 : i32, i32
  }
  func.func @transform_8(%arg0: i32, %arg1: i32) -> (i32, i32) {
    %c0_i32 = arith.constant 0 : i32
    %c0_i32_0 = arith.constant 0 : i32
    %c0_i32_1 = arith.constant 0 : i32
    return %c0_i32, %c0_i32_0 : i32, i32
  }
  func.func @transform_9(%arg0: i32, %arg1: i32) -> (i32, i32) {
    %c0_i32 = arith.constant 0 : i32
    %c0_i32_0 = arith.constant 0 : i32
    return %arg0, %c0_i32 : i32, i32
  }
}

</mosaic_0001>

<llo_original>
// kernel: tpu_custom_call.1
$region0: #{tpu_custom_call.1}
  #allocation0 [shape = 'u32[]', space=smem, size = 0x4, offset = 0x4, fixed_abs, tag = 'smem constant byte address 0x4 - core index']
  #allocation1 [shape = 'u32[72,128]{1,0:T(1,128)}', space=vmem, size = 0x9000, scoped, tag = 'internal scratch']
  #allocation2 [shape = 'bf16[64,1024]{1,0:T(8,128)(2,1)}', space=vmem, size = 0x20000, scoped, tag = 'scratch operand']
  %s0 = inlined_call_operand.vmem [shape: f32[2,3,512], index: 0, kind: input, shape index: {}]
  %s1 = inlined_call_operand.vmem [shape: f32[64,3], index: 1, kind: input, shape index: {}]
  %s2 = inlined_call_operand.vmem [shape: f32[64,1], index: 2, kind: input, shape index: {}]
  %s3 = inlined_call_operand.vmem [shape: bf16[64,64], index: 3, kind: input, shape index: {}]
  %s4 = inlined_call_operand.vmem [shape: f32[64,1], index: 4, kind: input, shape index: {}]
  %s5 = inlined_call_operand.vmem [shape: bf16[128,64], index: 5, kind: input, shape index: {}]
  %s6 = inlined_call_operand.vmem [shape: f32[128,1], index: 6, kind: input, shape index: {}]
  %s7 = inlined_call_operand.vmem [shape: bf16[256,128], index: 7, kind: input, shape index: {}]
  %s8 = inlined_call_operand.vmem [shape: f32[256,1], index: 8, kind: input, shape index: {}]
  %s9 = inlined_call_operand.hbm [shape: f32[2,256], index: 9, kind: output, shape index: {}]
  %s10 = sld [smem:[#allocation0]]
  $region50: #{tpu_custom_call.1} parent=0
    _
  %s12 = ssub.s32 1, %s10
  %s13 = scalar_select 0, %s12, %s10
  $region1: #{tpu_custom_call.1} parent=0
    #allocation3 [shape = 'u8[2048]{0}', space=vmem, size = 0x800, scoped, tag = 'output window, operand 0, single buffered']
    #allocation4 [shape = 's32[1]{0}', space=sflag, size = 0x4, scoped, tag = 'scoped memory for tpu_custom_call.1']
    %14 = vsyncpa [#allocation4], 0
    // Predicated region
    $region2: #{tpu_custom_call.1} parent=1 // pred_check
      _
    $region3: #{tpu_custom_call.1} parent=1 // pred_check_branch
      %16 = sbr.rel (0) target = $region5
    $region4: #{tpu_custom_call.1} parent=1 // pred_region
      _
    $region5: #{tpu_custom_call.1} parent=1 // pred_fallthru
      _
    // Predicated region
    $region6: #{tpu_custom_call.1} parent=1 // pred_check
      _
    $region7: #{tpu_custom_call.1} parent=1 // pred_check_branch
      %18 = sbr.rel (0) target = $region9
    $region8: #{tpu_custom_call.1} parent=1 // pred_region
      _
    $region9: #{tpu_custom_call.1} parent=1 // pred_fallthru
      _
    // Predicated region
    $region10: #{tpu_custom_call.1} parent=1 // pred_check
      _
    $region11: #{tpu_custom_call.1} parent=1 // pred_check_branch
      %20 = sbr.rel (0) target = $region13
    $region12: #{tpu_custom_call.1} parent=1 // pred_region
      _
    $region13: #{tpu_custom_call.1} parent=1 // pred_fallthru
      _
    // Predicated region
    $region14: #{tpu_custom_call.1} parent=1 // pred_check
      _
    $region15: #{tpu_custom_call.1} parent=1 // pred_check_branch
      %22 = sbr.rel (0) target = $region17
    $region16: #{tpu_custom_call.1} parent=1 // pred_region
      _
    $region17: #{tpu_custom_call.1} parent=1 // pred_fallthru
      _
    // Predicated region
    $region18: #{tpu_custom_call.1} parent=1 // pred_check
      _
    $region19: #{tpu_custom_call.1} parent=1 // pred_check_branch
      %24 = sbr.rel (0) target = $region21
    $region20: #{tpu_custom_call.1} parent=1 // pred_region
      _
    $region21: #{tpu_custom_call.1} parent=1 // pred_fallthru
      _
    // Predicated region
    $region22: #{tpu_custom_call.1} parent=1 // pred_check
      _
    $region23: #{tpu_custom_call.1} parent=1 // pred_check_branch
      %26 = sbr.rel (0) target = $region25
    $region24: #{tpu_custom_call.1} parent=1 // pred_region
      _
    $region25: #{tpu_custom_call.1} parent=1 // pred_fallthru
      _
    // Predicated region
    $region26: #{tpu_custom_call.1} parent=1 // pred_check
      _
    $region27: #{tpu_custom_call.1} parent=1 // pred_check_branch
      %28 = sbr.rel (0) target = $region29
    $region28: #{tpu_custom_call.1} parent=1 // pred_region
      _
    $region29: #{tpu_custom_call.1} parent=1 // pred_fallthru
      _
    // Predicated region
    $region30: #{tpu_custom_call.1} parent=1 // pred_check
      _
    $region31: #{tpu_custom_call.1} parent=1 // pred_check_branch
      %30 = sbr.rel (0) target = $region33
    $region32: #{tpu_custom_call.1} parent=1 // pred_region
      _
    $region33: #{tpu_custom_call.1} parent=1 // pred_fallthru
      _
    // Predicated region
    $region34: #{tpu_custom_call.1} parent=1 // pred_check
      _
    $region35: #{tpu_custom_call.1} parent=1 // pred_check_branch
      %32 = sbr.rel (0) target = $region37
    $region36: #{tpu_custom_call.1} parent=1 // pred_region
      _
    $region37: #{tpu_custom_call.1} parent=1 // pred_fallthru
      _
    %p34 = scmp.eq.s32.totalorder 0, 0
    // Predicated region
    $region38: #{tpu_custom_call.1} parent=1 // pred_check
      %p35 = pneg %p34
    $region39: #{tpu_custom_call.1} parent=1 // pred_check_branch
      %37 = sbr.rel (%p35) target = $region41
    $region40: #{tpu_custom_call.1} parent=1 // pred_region
      %38 = vst [vmem:[#allocation3] sm:$0xf] -inf
    $region41: #{tpu_custom_call.1} parent=1 // pred_fallthru
      _
    %v39 = vld [vmem:[%s1] sm:$0xff]
    %v40 = vld [vmem:[%s1 + $0x8] sm:$0xff]
    %v41 = vld [vmem:[%s1 + $0x10] sm:$0xff]
    %v42 = vld [vmem:[%s1 + $0x18] sm:$0xff]
    %v43 = vld [vmem:[%s1 + $0x20] sm:$0xff]
    %v44 = vld [vmem:[%s1 + $0x28] sm:$0xff]
    %v45 = vld [vmem:[%s1 + $0x30] sm:$0xff]
    %v46 = vld [vmem:[%s1 + $0x38] sm:$0xff]
    %48 = vset.pattern.permute.xlu0 0
    %49 = vperm.xlu0 %48, %v39
    %v50 = vpop.permute.xlu0 %49
    %53 = vset.pattern.permute.xlu0 0
    %54 = vperm.xlu0 %53, %v40
    %v55 = vpop.permute.xlu0 %54
    %58 = vset.pattern.permute.xlu0 0
    %59 = vperm.xlu0 %58, %v41
    %v60 = vpop.permute.xlu0 %59
    %63 = vset.pattern.permute.xlu0 0
    %64 = vperm.xlu0 %63, %v42
    %v65 = vpop.permute.xlu0 %64
    %68 = vset.pattern.permute.xlu0 0
    %69 = vperm.xlu0 %68, %v43
    %v70 = vpop.permute.xlu0 %69
    %73 = vset.pattern.permute.xlu0 0
    %74 = vperm.xlu0 %73, %v44
    %v75 = vpop.permute.xlu0 %74
    %78 = vset.pattern.permute.xlu0 0
    %79 = vperm.xlu0 %78, %v45
    %v80 = vpop.permute.xlu0 %79
    %83 = vset.pattern.permute.xlu0 0
    %84 = vperm.xlu0 %83, %v46
    %v85 = vpop.permute.xlu0 %84
    %87 = vset.pattern.permute.xlu0 1
    %88 = vperm.xlu0 %87, %v39
    %v89 = vpop.permute.xlu0 %88
    %91 = vset.pattern.permute.xlu0 1
    %92 = vperm.xlu0 %91, %v40
    %v93 = vpop.permute.xlu0 %92
    %95 = vset.pattern.permute.xlu0 1
    %96 = vperm.xlu0 %95, %v41
    %v97 = vpop.permute.xlu0 %96
    %99 = vset.pattern.permute.xlu0 1
    %100 = vperm.xlu0 %99, %v42
    %v101 = vpop.permute.xlu0 %100
    %103 = vset.pattern.permute.xlu0 1
    %104 = vperm.xlu0 %103, %v43
    %v105 = vpop.permute.xlu0 %104
    %107 = vset.pattern.permute.xlu0 1
    %108 = vperm.xlu0 %107, %v44
    %v109 = vpop.permute.xlu0 %108
    %111 = vset.pattern.permute.xlu0 1
    %112 = vperm.xlu0 %111, %v45
    %v113 = vpop.permute.xlu0 %112
    %115 = vset.pattern.permute.xlu0 1
    %116 = vperm.xlu0 %115, %v46
    %v117 = vpop.permute.xlu0 %116
    %119 = vset.pattern.permute.xlu0 2
    %120 = vperm.xlu0 %119, %v39
    %v121 = vpop.permute.xlu0 %120
    %123 = vset.pattern.permute.xlu0 2
    %124 = vperm.xlu0 %123, %v40
    %v125 = vpop.permute.xlu0 %124
    %127 = vset.pattern.permute.xlu0 2
    %128 = vperm.xlu0 %127, %v41
    %v129 = vpop.permute.xlu0 %128
    %131 = vset.pattern.permute.xlu0 2
    %132 = vperm.xlu0 %131, %v42
    %v133 = vpop.permute.xlu0 %132
    %135 = vset.pattern.permute.xlu0 2
    %136 = vperm.xlu0 %135, %v43
    %v137 = vpop.permute.xlu0 %136
    %139 = vset.pattern.permute.xlu0 2
    %140 = vperm.xlu0 %139, %v44
    %v141 = vpop.permute.xlu0 %140
    %143 = vset.pattern.permute.xlu0 2
    %144 = vperm.xlu0 %143, %v45
    %v145 = vpop.permute.xlu0 %144
    %147 = vset.pattern.permute.xlu0 2
    %148 = vperm.xlu0 %147, %v46
    %v149 = vpop.permute.xlu0 %148
    %v151 = vld [vmem:[%s2] sm:$0xff]
    %v152 = vld [vmem:[%s2 + $0x8] sm:$0xff]
    %v153 = vld [vmem:[%s2 + $0x10] sm:$0xff]
    %v154 = vld [vmem:[%s2 + $0x18] sm:$0xff]
    %v155 = vld [vmem:[%s2 + $0x20] sm:$0xff]
    %v156 = vld [vmem:[%s2 + $0x28] sm:$0xff]
    %v157 = vld [vmem:[%s2 + $0x30] sm:$0xff]
    %v158 = vld [vmem:[%s2 + $0x38] sm:$0xff]
    %160 = vset.pattern.permute.xlu0 0
    %161 = vperm.xlu0 %160, %v151
    %v162 = vpop.permute.xlu0 %161
    %165 = vset.pattern.permute.xlu0 0
    %166 = vperm.xlu0 %165, %v152
    %v167 = vpop.permute.xlu0 %166
    %170 = vset.pattern.permute.xlu0 0
    %171 = vperm.xlu0 %170, %v153
    %v172 = vpop.permute.xlu0 %171
    %175 = vset.pattern.permute.xlu0 0
    %176 = vperm.xlu0 %175, %v154
    %v177 = vpop.permute.xlu0 %176
    %180 = vset.pattern.permute.xlu0 0
    %181 = vperm.xlu0 %180, %v155
    %v182 = vpop.permute.xlu0 %181
    %185 = vset.pattern.permute.xlu0 0
    %186 = vperm.xlu0 %185, %v156
    %v187 = vpop.permute.xlu0 %186
    %190 = vset.pattern.permute.xlu0 0
    %191 = vperm.xlu0 %190, %v157
    %v192 = vpop.permute.xlu0 %191
    %195 = vset.pattern.permute.xlu0 0
    %196 = vperm.xlu0 %195, %v158
    %v197 = vpop.permute.xlu0 %196
    %v199 = vld [vmem:[%s0] sm:$0x77]
    %v200 = vld [vmem:[%s0 + $0x8] sm:$0x77]
    %v203 = vperm.slane %v199, 0
    %v204 = vperm.slane %v199, 4
    %v205 = vperm.slane %v200, 0
    %v206 = vperm.slane %v200, 4
    %v211 = vperm.slane %v203, 0
    %v212 = vperm.slane %v204, 0
    %v213 = vperm.slane %v205, 0
    %v214 = vperm.slane %v206, 0
    %v215 = vmul.f32 %v50, %v211
    %v216 = vmul.f32 %v50, %v212
    %v217 = vmul.f32 %v50, %v213
    %v218 = vmul.f32 %v50, %v214
    %v219 = vmul.f32 %v55, %v211
    %v220 = vmul.f32 %v55, %v212
    %v221 = vmul.f32 %v55, %v213
    %v222 = vmul.f32 %v55, %v214
    %v223 = vmul.f32 %v60, %v211
    %v224 = vmul.f32 %v60, %v212
    %v225 = vmul.f32 %v60, %v213
    %v226 = vmul.f32 %v60, %v214
    %v227 = vmul.f32 %v65, %v211
    %v228 = vmul.f32 %v65, %v212
    %v229 = vmul.f32 %v65, %v213
    %v230 = vmul.f32 %v65, %v214
    %v231 = vmul.f32 %v70, %v211
    %v232 = vmul.f32 %v70, %v212
    %v233 = vmul.f32 %v70, %v213
    %v234 = vmul.f32 %v70, %v214
    %v235 = vmul.f32 %v75, %v211
    %v236 = vmul.f32 %v75, %v212
    %v237 = vmul.f32 %v75, %v213
    %v238 = vmul.f32 %v75, %v214
    %v239 = vmul.f32 %v80, %v211
    %v240 = vmul.f32 %v80, %v212
    %v241 = vmul.f32 %v80, %v213
    %v242 = vmul.f32 %v80, %v214
    %v243 = vmul.f32 %v85, %v211
    %v244 = vmul.f32 %v85, %v212
    %v245 = vmul.f32 %v85, %v213
    %v246 = vmul.f32 %v85, %v214
    %v247 = vperm.slane %v199, 1
    %v248 = vperm.slane %v199, 5
    %v249 = vperm.slane %v200, 1
    %v250 = vperm.slane %v200, 5
    %v255 = vperm.slane %v247, 1
    %v256 = vperm.slane %v248, 1
    %v257 = vperm.slane %v249, 1
    %v258 = vperm.slane %v250, 1
    %v259 = vmul.f32 %v89, %v255
    %v260 = vmul.f32 %v89, %v256
    %v261 = vmul.f32 %v89, %v257
    %v262 = vmul.f32 %v89, %v258
    %v263 = vmul.f32 %v93, %v255
    %v264 = vmul.f32 %v93, %v256
    %v265 = vmul.f32 %v93, %v257
    %v266 = vmul.f32 %v93, %v258
    %v267 = vmul.f32 %v97, %v255
    %v268 = vmul.f32 %v97, %v256
    %v269 = vmul.f32 %v97, %v257
    %v270 = vmul.f32 %v97, %v258
    %v271 = vmul.f32 %v101, %v255
    %v272 = vmul.f32 %v101, %v256
    %v273 = vmul.f32 %v101, %v257
    %v274 = vmul.f32 %v101, %v258
    %v275 = vmul.f32 %v105, %v255
    %v276 = vmul.f32 %v105, %v256
    %v277 = vmul.f32 %v105, %v257
    %v278 = vmul.f32 %v105, %v258
    %v279 = vmul.f32 %v109, %v255
    %v280 = vmul.f32 %v109, %v256
    %v281 = vmul.f32 %v109, %v257
    %v282 = vmul.f32 %v109, %v258
    %v283 = vmul.f32 %v113, %v255
    %v284 = vmul.f32 %v113, %v256
    %v285 = vmul.f32 %v113, %v257
    %v286 = vmul.f32 %v113, %v258
    %v287 = vmul.f32 %v117, %v255
    %v288 = vmul.f32 %v117, %v256
    %v289 = vmul.f32 %v117, %v257
    %v290 = vmul.f32 %v117, %v258
    %v291 = vadd.f32 %v215, %v259
    %v292 = vadd.f32 %v216, %v260
    %v293 = vadd.f32 %v217, %v261
    %v294 = vadd.f32 %v218, %v262
    %v295 = vadd.f32 %v219, %v263
    %v296 = vadd.f32 %v220, %v264
    %v297 = vadd.f32 %v221, %v265
    %v298 = vadd.f32 %v222, %v266
    %v299 = vadd.f32 %v223, %v267
    %v300 = vadd.f32 %v224, %v268
    %v301 = vadd.f32 %v225, %v269
    %v302 = vadd.f32 %v226, %v270
    %v303 = vadd.f32 %v227, %v271
    %v304 = vadd.f32 %v228, %v272
    %v305 = vadd.f32 %v229, %v273
    %v306 = vadd.f32 %v230, %v274
    %v307 = vadd.f32 %v231, %v275
    %v308 = vadd.f32 %v232, %v276
    %v309 = vadd.f32 %v233, %v277
    %v310 = vadd.f32 %v234, %v278
    %v311 = vadd.f32 %v235, %v279
    %v312 = vadd.f32 %v236, %v280
    %v313 = vadd.f32 %v237, %v281
    %v314 = vadd.f32 %v238, %v282
    %v315 = vadd.f32 %v239, %v283
    %v316 = vadd.f32 %v240, %v284
    %v317 = vadd.f32 %v241, %v285
    %v318 = vadd.f32 %v242, %v286
    %v319 = vadd.f32 %v243, %v287
    %v320 = vadd.f32 %v244, %v288
    %v321 = vadd.f32 %v245, %v289
    %v322 = vadd.f32 %v246, %v290
    %v323 = vperm.slane %v199, 2
    %v324 = vperm.slane %v199, 6
    %v325 = vperm.slane %v200, 2
    %v326 = vperm.slane %v200, 6
    %v331 = vperm.slane %v323, 2
    %v332 = vperm.slane %v324, 2
    %v333 = vperm.slane %v325, 2
    %v334 = vperm.slane %v326, 2
    %v335 = vmul.f32 %v121, %v331
    %v336 = vmul.f32 %v121, %v332
    %v337 = vmul.f32 %v121, %v333
    %v338 = vmul.f32 %v121, %v334
    %v339 = vmul.f32 %v125, %v331
    %v340 = vmul.f32 %v125, %v332
    %v341 = vmul.f32 %v125, %v333
    %v342 = vmul.f32 %v125, %v334
    %v343 = vmul.f32 %v129, %v331
    %v344 = vmul.f32 %v129, %v332
    %v345 = vmul.f32 %v129, %v333
    %v346 = vmul.f32 %v129, %v334
    %v347 = vmul.f32 %v133, %v331
    %v348 = vmul.f32 %v133, %v332
    %v349 = vmul.f32 %v133, %v333
    %v350 = vmul.f32 %v133, %v334
    %v351 = vmul.f32 %v137, %v331
    %v352 = vmul.f32 %v137, %v332
    %v353 = vmul.f32 %v137, %v333
    %v354 = vmul.f32 %v137, %v334
    %v355 = vmul.f32 %v141, %v331
    %v356 = vmul.f32 %v141, %v332
    %v357 = vmul.f32 %v141, %v333
    %v358 = vmul.f32 %v141, %v334
    %v359 = vmul.f32 %v145, %v331
    %v360 = vmul.f32 %v145, %v332
    %v361 = vmul.f32 %v145, %v333
    %v362 = vmul.f32 %v145, %v334
    %v363 = vmul.f32 %v149, %v331
    %v364 = vmul.f32 %v149, %v332
    %v365 = vmul.f32 %v149, %v333
    %v366 = vmul.f32 %v149, %v334
    %v367 = vadd.f32 %v291, %v335
    %v368 = vadd.f32 %v292, %v336
    %v369 = vadd.f32 %v293, %v337
    %v370 = vadd.f32 %v294, %v338
    %v371 = vadd.f32 %v295, %v339
    %v372 = vadd.f32 %v296, %v340
    %v373 = vadd.f32 %v297, %v341
    %v374 = vadd.f32 %v298, %v342
    %v375 = vadd.f32 %v299, %v343
    %v376 = vadd.f32 %v300, %v344
    %v377 = vadd.f32 %v301, %v345
    %v378 = vadd.f32 %v302, %v346
    %v379 = vadd.f32 %v303, %v347
    %v380 = vadd.f32 %v304, %v348
    %v381 = vadd.f32 %v305, %v349
    %v382 = vadd.f32 %v306, %v350
    %v383 = vadd.f32 %v307, %v351
    %v384 = vadd.f32 %v308, %v352
    %v385 = vadd.f32 %v309, %v353
    %v386 = vadd.f32 %v310, %v354
    %v387 = vadd.f32 %v311, %v355
    %v388 = vadd.f32 %v312, %v356
    %v389 = vadd.f32 %v313, %v357
    %v390 = vadd.f32 %v314, %v358
    %v391 = vadd.f32 %v315, %v359
    %v392 = vadd.f32 %v316, %v360
    %v393 = vadd.f32 %v317, %v361
    %v394 = vadd.f32 %v318, %v362
    %v395 = vadd.f32 %v319, %v363
    %v396 = vadd.f32 %v320, %v364
    %v397 = vadd.f32 %v321, %v365
    %v398 = vadd.f32 %v322, %v366
    %v399 = vadd.f32 %v367, %v162
    %v400 = vadd.f32 %v368, %v162
    %v401 = vadd.f32 %v369, %v162
    %v402 = vadd.f32 %v370, %v162
    %v403 = vadd.f32 %v371, %v167
    %v404 = vadd.f32 %v372, %v167
    %v405 = vadd.f32 %v373, %v167
    %v406 = vadd.f32 %v374, %v167
    %v407 = vadd.f32 %v375, %v172
    %v408 = vadd.f32 %v376, %v172
    %v409 = vadd.f32 %v377, %v172
    %v410 = vadd.f32 %v378, %v172
    %v411 = vadd.f32 %v379, %v177
    %v412 = vadd.f32 %v380, %v177
    %v413 = vadd.f32 %v381, %v177
    %v414 = vadd.f32 %v382, %v177
    %v415 = vadd.f32 %v383, %v182
    %v416 = vadd.f32 %v384, %v182
    %v417 = vadd.f32 %v385, %v182
    %v418 = vadd.f32 %v386, %v182
    %v419 = vadd.f32 %v387, %v187
    %v420 = vadd.f32 %v388, %v187
    %v421 = vadd.f32 %v389, %v187
    %v422 = vadd.f32 %v390, %v187
    %v423 = vadd.f32 %v391, %v192
    %v424 = vadd.f32 %v392, %v192
    %v425 = vadd.f32 %v393, %v192
    %v426 = vadd.f32 %v394, %v192
    %v427 = vadd.f32 %v395, %v197
    %v428 = vadd.f32 %v396, %v197
    %v429 = vadd.f32 %v397, %v197
    %v430 = vadd.f32 %v398, %v197
    %v431 = vmul.f32 %v399, %v399
    %v432 = vmul.f32 %v400, %v400
    %v433 = vmul.f32 %v401, %v401
    %v434 = vmul.f32 %v402, %v402
    %v435 = vmul.f32 %v403, %v403
    %v436 = vmul.f32 %v404, %v404
    %v437 = vmul.f32 %v405, %v405
    %v438 = vmul.f32 %v406, %v406
    %v439 = vmul.f32 %v407, %v407
    %v440 = vmul.f32 %v408, %v408
    %v441 = vmul.f32 %v409, %v409
    %v442 = vmul.f32 %v410, %v410
    %v443 = vmul.f32 %v411, %v411
    %v444 = vmul.f32 %v412, %v412
    %v445 = vmul.f32 %v413, %v413
    %v446 = vmul.f32 %v414, %v414
    %v447 = vmul.f32 %v415, %v415
    %v448 = vmul.f32 %v416, %v416
    %v449 = vmul.f32 %v417, %v417
    %v450 = vmul.f32 %v418, %v418
    %v451 = vmul.f32 %v419, %v419
    %v452 = vmul.f32 %v420, %v420
    %v453 = vmul.f32 %v421, %v421
    %v454 = vmul.f32 %v422, %v422
    %v455 = vmul.f32 %v423, %v423
    %v456 = vmul.f32 %v424, %v424
    %v457 = vmul.f32 %v425, %v425
    %v458 = vmul.f32 %v426, %v426
    %v459 = vmul.f32 %v427, %v427
    %v460 = vmul.f32 %v428, %v428
    %v461 = vmul.f32 %v429, %v429
    %v462 = vmul.f32 %v430, %v430
    %v463 = vmul.f32 %v399, %v431
    %v464 = vmul.f32 %v400, %v432
    %v465 = vmul.f32 %v401, %v433
    %v466 = vmul.f32 %v402, %v434
    %v467 = vmul.f32 %v403, %v435
    %v468 = vmul.f32 %v404, %v436
    %v469 = vmul.f32 %v405, %v437
    %v470 = vmul.f32 %v406, %v438
    %v471 = vmul.f32 %v407, %v439
    %v472 = vmul.f32 %v408, %v440
    %v473 = vmul.f32 %v409, %v441
    %v474 = vmul.f32 %v410, %v442
    %v475 = vmul.f32 %v411, %v443
    %v476 = vmul.f32 %v412, %v444
    %v477 = vmul.f32 %v413, %v445
    %v478 = vmul.f32 %v414, %v446
    %v479 = vmul.f32 %v415, %v447
    %v480 = vmul.f32 %v416, %v448
    %v481 = vmul.f32 %v417, %v449
    %v482 = vmul.f32 %v418, %v450
    %v483 = vmul.f32 %v419, %v451
    %v484 = vmul.f32 %v420, %v452
    %v485 = vmul.f32 %v421, %v453
    %v486 = vmul.f32 %v422, %v454
    %v487 = vmul.f32 %v423, %v455
    %v488 = vmul.f32 %v424, %v456
    %v489 = vmul.f32 %v425, %v457
    %v490 = vmul.f32 %v426, %v458
    %v491 = vmul.f32 %v427, %v459
    %v492 = vmul.f32 %v428, %v460
    %v493 = vmul.f32 %v429, %v461
    %v494 = vmul.f32 %v430, %v462
    %v495 = vmul.f32 %v463, 0.044715
    %v496 = vmul.f32 %v464, 0.044715
    %v497 = vmul.f32 %v465, 0.044715
    %v498 = vmul.f32 %v466, 0.044715
    %v499 = vmul.f32 %v467, 0.044715
    %v500 = vmul.f32 %v468, 0.044715
    %v501 = vmul.f32 %v469, 0.044715
    %v502 = vmul.f32 %v470, 0.044715
    %v503 = vmul.f32 %v471, 0.044715
    %v504 = vmul.f32 %v472, 0.044715
    %v505 = vmul.f32 %v473, 0.044715
    %v506 = vmul.f32 %v474, 0.044715
    %v507 = vmul.f32 %v475, 0.044715
    %v508 = vmul.f32 %v476, 0.044715
    %v509 = vmul.f32 %v477, 0.044715
    %v510 = vmul.f32 %v478, 0.044715
    %v511 = vmul.f32 %v479, 0.044715
    %v512 = vmul.f32 %v480, 0.044715
    %v513 = vmul.f32 %v481, 0.044715
    %v514 = vmul.f32 %v482, 0.044715
    %v515 = vmul.f32 %v483, 0.044715
    %v516 = vmul.f32 %v484, 0.044715
    %v517 = vmul.f32 %v485, 0.044715
    %v518 = vmul.f32 %v486, 0.044715
    %v519 = vmul.f32 %v487, 0.044715
    %v520 = vmul.f32 %v488, 0.044715
    %v521 = vmul.f32 %v489, 0.044715
    %v522 = vmul.f32 %v490, 0.044715
    %v523 = vmul.f32 %v491, 0.044715
    %v524 = vmul.f32 %v492, 0.044715
    %v525 = vmul.f32 %v493, 0.044715
    %v526 = vmul.f32 %v494, 0.044715
    %v527 = vadd.f32 %v399, %v495
    %v528 = vadd.f32 %v400, %v496
    %v529 = vadd.f32 %v401, %v497
    %v530 = vadd.f32 %v402, %v498
    %v531 = vadd.f32 %v403, %v499
    %v532 = vadd.f32 %v404, %v500
    %v533 = vadd.f32 %v405, %v501
    %v534 = vadd.f32 %v406, %v502
    %v535 = vadd.f32 %v407, %v503
    %v536 = vadd.f32 %v408, %v504
    %v537 = vadd.f32 %v409, %v505
    %v538 = vadd.f32 %v410, %v506
    %v539 = vadd.f32 %v411, %v507
    %v540 = vadd.f32 %v412, %v508
    %v541 = vadd.f32 %v413, %v509
    %v542 = vadd.f32 %v414, %v510
    %v543 = vadd.f32 %v415, %v511
    %v544 = vadd.f32 %v416, %v512
    %v545 = vadd.f32 %v417, %v513
    %v546 = vadd.f32 %v418, %v514
    %v547 = vadd.f32 %v419, %v515
    %v548 = vadd.f32 %v420, %v516
    %v549 = vadd.f32 %v421, %v517
    %v550 = vadd.f32 %v422, %v518
    %v551 = vadd.f32 %v423, %v519
    %v552 = vadd.f32 %v424, %v520
    %v553 = vadd.f32 %v425, %v521
    %v554 = vadd.f32 %v426, %v522
    %v555 = vadd.f32 %v427, %v523
    %v556 = vadd.f32 %v428, %v524
    %v557 = vadd.f32 %v429, %v525
    %v558 = vadd.f32 %v430, %v526
    %v559 = vmul.f32 %v527, 0.7978846
    %v560 = vmul.f32 %v528, 0.7978846
    %v561 = vmul.f32 %v529, 0.7978846
    %v562 = vmul.f32 %v530, 0.7978846
    %v563 = vmul.f32 %v531, 0.7978846
    %v564 = vmul.f32 %v532, 0.7978846
    %v565 = vmul.f32 %v533, 0.7978846
    %v566 = vmul.f32 %v534, 0.7978846
    %v567 = vmul.f32 %v535, 0.7978846
    %v568 = vmul.f32 %v536, 0.7978846
    %v569 = vmul.f32 %v537, 0.7978846
    %v570 = vmul.f32 %v538, 0.7978846
    %v571 = vmul.f32 %v539, 0.7978846
    %v572 = vmul.f32 %v540, 0.7978846
    %v573 = vmul.f32 %v541, 0.7978846
    %v574 = vmul.f32 %v542, 0.7978846
    %v575 = vmul.f32 %v543, 0.7978846
    %v576 = vmul.f32 %v544, 0.7978846
    %v577 = vmul.f32 %v545, 0.7978846
    %v578 = vmul.f32 %v546, 0.7978846
    %v579 = vmul.f32 %v547, 0.7978846
    %v580 = vmul.f32 %v548, 0.7978846
    %v581 = vmul.f32 %v549, 0.7978846
    %v582 = vmul.f32 %v550, 0.7978846
    %v583 = vmul.f32 %v551, 0.7978846
    %v584 = vmul.f32 %v552, 0.7978846
    %v585 = vmul.f32 %v553, 0.7978846
    %v586 = vmul.f32 %v554, 0.7978846
    %v587 = vmul.f32 %v555, 0.7978846
    %v588 = vmul.f32 %v556, 0.7978846
    %v589 = vmul.f32 %v557, 0.7978846
    %v590 = vmul.f32 %v558, 0.7978846
    %v591 = vtanh.pop %v559
    %v592 = vtanh.pop %v560
    %v593 = vtanh.pop %v561
    %v594 = vtanh.pop %v562
    %v595 = vtanh.pop %v563
    %v596 = vtanh.pop %v564
    %v597 = vtanh.pop %v565
    %v598 = vtanh.pop %v566
    %v599 = vtanh.pop %v567
    %v600 = vtanh.pop %v568
    %v601 = vtanh.pop %v569
    %v602 = vtanh.pop %v570
    %v603 = vtanh.pop %v571
    %v604 = vtanh.pop %v572
    %v605 = vtanh.pop %v573
    %v606 = vtanh.pop %v574
    %v607 = vtanh.pop %v575
    %v608 = vtanh.pop %v576
    %v609 = vtanh.pop %v577
    %v610 = vtanh.pop %v578
    %v611 = vtanh.pop %v579
    %v612 = vtanh.pop %v580
    %v613 = vtanh.pop %v581
    %v614 = vtanh.pop %v582
    %v615 = vtanh.pop %v583
    %v616 = vtanh.pop %v584
    %v617 = vtanh.pop %v585
    %v618 = vtanh.pop %v586
    %v619 = vtanh.pop %v587
    %v620 = vtanh.pop %v588
    %v621 = vtanh.pop %v589
    %v622 = vtanh.pop %v590
    %v623 = vadd.f32 %v591, 1.0
    %v624 = vadd.f32 %v592, 1.0
    %v625 = vadd.f32 %v593, 1.0
    %v626 = vadd.f32 %v594, 1.0
    %v627 = vadd.f32 %v595, 1.0
    %v628 = vadd.f32 %v596, 1.0
    %v629 = vadd.f32 %v597, 1.0
    %v630 = vadd.f32 %v598, 1.0
    %v631 = vadd.f32 %v599, 1.0
    %v632 = vadd.f32 %v600, 1.0
    %v633 = vadd.f32 %v601, 1.0
    %v634 = vadd.f32 %v602, 1.0
    %v635 = vadd.f32 %v603, 1.0
    %v636 = vadd.f32 %v604, 1.0
    %v637 = vadd.f32 %v605, 1.0
    %v638 = vadd.f32 %v606, 1.0
    %v639 = vadd.f32 %v607, 1.0
    %v640 = vadd.f32 %v608, 1.0
    %v641 = vadd.f32 %v609, 1.0
    %v642 = vadd.f32 %v610, 1.0
    %v643 = vadd.f32 %v611, 1.0
    %v644 = vadd.f32 %v612, 1.0
    %v645 = vadd.f32 %v613, 1.0
    %v646 = vadd.f32 %v614, 1.0
    %v647 = vadd.f32 %v615, 1.0
    %v648 = vadd.f32 %v616, 1.0
    %v649 = vadd.f32 %v617, 1.0
    %v650 = vadd.f32 %v618, 1.0
    %v651 = vadd.f32 %v619, 1.0
    %v652 = vadd.f32 %v620, 1.0
    %v653 = vadd.f32 %v621, 1.0
    %v654 = vadd.f32 %v622, 1.0
    %v655 = vmul.f32 %v623, 0.5
    %v656 = vmul.f32 %v624, 0.5
    %v657 = vmul.f32 %v625, 0.5
    %v658 = vmul.f32 %v626, 0.5
    %v659 = vmul.f32 %v627, 0.5
    %v660 = vmul.f32 %v628, 0.5
    %v661 = vmul.f32 %v629, 0.5
    %v662 = vmul.f32 %v630, 0.5
    %v663 = vmul.f32 %v631, 0.5
    %v664 = vmul.f32 %v632, 0.5
    %v665 = vmul.f32 %v633, 0.5
    %v666 = vmul.f32 %v634, 0.5
    %v667 = vmul.f32 %v635, 0.5
    %v668 = vmul.f32 %v636, 0.5
    %v669 = vmul.f32 %v637, 0.5
    %v670 = vmul.f32 %v638, 0.5
    %v671 = vmul.f32 %v639, 0.5
    %v672 = vmul.f32 %v640, 0.5
    %v673 = vmul.f32 %v641, 0.5
    %v674 = vmul.f32 %v642, 0.5
    %v675 = vmul.f32 %v643, 0.5
    %v676 = vmul.f32 %v644, 0.5
    %v677 = vmul.f32 %v645, 0.5
    %v678 = vmul.f32 %v646, 0.5
    %v679 = vmul.f32 %v647, 0.5
    %v680 = vmul.f32 %v648, 0.5
    %v681 = vmul.f32 %v649, 0.5
    %v682 = vmul.f32 %v650, 0.5
    %v683 = vmul.f32 %v651, 0.5
    %v684 = vmul.f32 %v652, 0.5
    %v685 = vmul.f32 %v653, 0.5
    %v686 = vmul.f32 %v654, 0.5
    %v687 = vmul.f32 %v399, %v655
    %v688 = vmul.f32 %v400, %v656
    %v689 = vmul.f32 %v401, %v657
    %v690 = vmul.f32 %v402, %v658
    %v691 = vmul.f32 %v403, %v659
    %v692 = vmul.f32 %v404, %v660
    %v693 = vmul.f32 %v405, %v661
    %v694 = vmul.f32 %v406, %v662
    %v695 = vmul.f32 %v407, %v663
    %v696 = vmul.f32 %v408, %v664
    %v697 = vmul.f32 %v409, %v665
    %v698 = vmul.f32 %v410, %v666
    %v699 = vmul.f32 %v411, %v667
    %v700 = vmul.f32 %v412, %v668
    %v701 = vmul.f32 %v413, %v669
    %v702 = vmul.f32 %v414, %v670
    %v703 = vmul.f32 %v415, %v671
    %v704 = vmul.f32 %v416, %v672
    %v705 = vmul.f32 %v417, %v673
    %v706 = vmul.f32 %v418, %v674
    %v707 = vmul.f32 %v419, %v675
    %v708 = vmul.f32 %v420, %v676
    %v709 = vmul.f32 %v421, %v677
    %v710 = vmul.f32 %v422, %v678
    %v711 = vmul.f32 %v423, %v679
    %v712 = vmul.f32 %v424, %v680
    %v713 = vmul.f32 %v425, %v681
    %v714 = vmul.f32 %v426, %v682
    %v715 = vmul.f32 %v427, %v683
    %v716 = vmul.f32 %v428, %v684
    %v717 = vmul.f32 %v429, %v685
    %v718 = vmul.f32 %v430, %v686
    %v719 = vpack.c.bf16 %v688, %v687
    %v720 = vpack.c.bf16 %v690, %v689
    %v721 = vpack.c.bf16 %v692, %v691
    %v722 = vpack.c.bf16 %v694, %v693
    %v723 = vpack.c.bf16 %v696, %v695
    %v724 = vpack.c.bf16 %v698, %v697
    %v725 = vpack.c.bf16 %v700, %v699
    %v726 = vpack.c.bf16 %v702, %v701
    %v727 = vpack.c.bf16 %v704, %v703
    %v728 = vpack.c.bf16 %v706, %v705
    %v729 = vpack.c.bf16 %v708, %v707
    %v730 = vpack.c.bf16 %v710, %v709
    %v731 = vpack.c.bf16 %v712, %v711
    %v732 = vpack.c.bf16 %v714, %v713
    %v733 = vpack.c.bf16 %v716, %v715
    %v734 = vpack.c.bf16 %v718, %v717
    %735 = vst [vmem:[#allocation2] sm:$0xff] %v719
    %736 = vst [vmem:[#allocation2 + $0x8] sm:$0xff] %v720
    %737 = vst [vmem:[#allocation2 + $0x20] sm:$0xff] %v721
    %738 = vst [vmem:[#allocation2 + $0x28] sm:$0xff] %v722
    %739 = vst [vmem:[#allocation2 + $0x40] sm:$0xff] %v723
    %740 = vst [vmem:[#allocation2 + $0x48] sm:$0xff] %v724
    %741 = vst [vmem:[#allocation2 + $0x60] sm:$0xff] %v725
    %742 = vst [vmem:[#allocation2 + $0x68] sm:$0xff] %v726
    %743 = vst [vmem:[#allocation2 + $0x80] sm:$0xff] %v727
    %744 = vst [vmem:[#allocation2 + $0x88] sm:$0xff] %v728
    %745 = vst [vmem:[#allocation2 + $0xa0] sm:$0xff] %v729
    %746 = vst [vmem:[#allocation2 + $0xa8] sm:$0xff] %v730
    %747 = vst [vmem:[#allocation2 + $0xc0] sm:$0xff] %v731
    %748 = vst [vmem:[#allocation2 + $0xc8] sm:$0xff] %v732
    %749 = vst [vmem:[#allocation2 + $0xe0] sm:$0xff] %v733
    %750 = vst [vmem:[#allocation2 + $0xe8] sm:$0xff] %v734
    %s751 = scalar_lea.vmem %s0, 16
    %v752 = vld [vmem:[%s751] sm:$0x77]
    %v753 = vld [vmem:[%s751 + $0x8] sm:$0x77]
    %v756 = vperm.slane %v752, 0
    %v757 = vperm.slane %v752, 4
    %v758 = vperm.slane %v753, 0
    %v759 = vperm.slane %v753, 4
    %v764 = vperm.slane %v756, 0
    %v765 = vperm.slane %v757, 0
    %v766 = vperm.slane %v758, 0
    %v767 = vperm.slane %v759, 0
    %v768 = vmul.f32 %v50, %v764
    %v769 = vmul.f32 %v50, %v765
    %v770 = vmul.f32 %v50, %v766
    %v771 = vmul.f32 %v50, %v767
    %v772 = vmul.f32 %v55, %v764
    %v773 = vmul.f32 %v55, %v765
    %v774 = vmul.f32 %v55, %v766
    %v775 = vmul.f32 %v55, %v767
    %v776 = vmul.f32 %v60, %v764
    %v777 = vmul.f32 %v60, %v765
    %v778 = vmul.f32 %v60, %v766
    %v779 = vmul.f32 %v60, %v767
    %v780 = vmul.f32 %v65, %v764
    %v781 = vmul.f32 %v65, %v765
    %v782 = vmul.f32 %v65, %v766
    %v783 = vmul.f32 %v65, %v767
    %v784 = vmul.f32 %v70, %v764
    %v785 = vmul.f32 %v70, %v765
    %v786 = vmul.f32 %v70, %v766
    %v787 = vmul.f32 %v70, %v767
    %v788 = vmul.f32 %v75, %v764
    %v789 = vmul.f32 %v75, %v765
    %v790 = vmul.f32 %v75, %v766
    %v791 = vmul.f32 %v75, %v767
    %v792 = vmul.f32 %v80, %v764
    %v793 = vmul.f32 %v80, %v765
    %v794 = vmul.f32 %v80, %v766
    %v795 = vmul.f32 %v80, %v767
    %v796 = vmul.f32 %v85, %v764
    %v797 = vmul.f32 %v85, %v765
    %v798 = vmul.f32 %v85, %v766
    %v799 = vmul.f32 %v85, %v767
    %v800 = vperm.slane %v752, 1
    %v801 = vperm.slane %v752, 5
    %v802 = vperm.slane %v753, 1
    %v803 = vperm.slane %v753, 5
    %v808 = vperm.slane %v800, 1
    %v809 = vperm.slane %v801, 1
    %v810 = vperm.slane %v802, 1
    %v811 = vperm.slane %v803, 1
    %v812 = vmul.f32 %v89, %v808
    %v813 = vmul.f32 %v89, %v809
    %v814 = vmul.f32 %v89, %v810
    %v815 = vmul.f32 %v89, %v811
    %v816 = vmul.f32 %v93, %v808
    %v817 = vmul.f32 %v93, %v809
    %v818 = vmul.f32 %v93, %v810
    %v819 = vmul.f32 %v93, %v811
    %v820 = vmul.f32 %v97, %v808
    %v821 = vmul.f32 %v97, %v809
    %v822 = vmul.f32 %v97, %v810
    %v823 = vmul.f32 %v97, %v811
    %v824 = vmul.f32 %v101, %v808
    %v825 = vmul.f32 %v101, %v809
    %v826 = vmul.f32 %v101, %v810
    %v827 = vmul.f32 %v101, %v811
    %v828 = vmul.f32 %v105, %v808
    %v829 = vmul.f32 %v105, %v809
    %v830 = vmul.f32 %v105, %v810
    %v831 = vmul.f32 %v105, %v811
    %v832 = vmul.f32 %v109, %v808
    %v833 = vmul.f32 %v109, %v809
    %v834 = vmul.f32 %v109, %v810
    %v835 = vmul.f32 %v109, %v811
    %v836 = vmul.f32 %v113, %v808
    %v837 = vmul.f32 %v113, %v809
    %v838 = vmul.f32 %v113, %v810
    %v839 = vmul.f32 %v113, %v811
    %v840 = vmul.f32 %v117, %v808
    %v841 = vmul.f32 %v117, %v809
    %v842 = vmul.f32 %v117, %v810
    %v843 = vmul.f32 %v117, %v811
    %v844 = vadd.f32 %v768, %v812
    %v845 = vadd.f32 %v769, %v813
    %v846 = vadd.f32 %v770, %v814
    %v847 = vadd.f32 %v771, %v815
    %v848 = vadd.f32 %v772, %v816
    %v849 = vadd.f32 %v773, %v817
    %v850 = vadd.f32 %v774, %v818
    %v851 = vadd.f32 %v775, %v819
    %v852 = vadd.f32 %v776, %v820
    %v853 = vadd.f32 %v777, %v821
    %v854 = vadd.f32 %v778, %v822
    %v855 = vadd.f32 %v779, %v823
    %v856 = vadd.f32 %v780, %v824
    %v857 = vadd.f32 %v781, %v825
    %v858 = vadd.f32 %v782, %v826
    %v859 = vadd.f32 %v783, %v827
    %v860 = vadd.f32 %v784, %v828
    %v861 = vadd.f32 %v785, %v829
    %v862 = vadd.f32 %v786, %v830
    %v863 = vadd.f32 %v787, %v831
    %v864 = vadd.f32 %v788, %v832
    %v865 = vadd.f32 %v789, %v833
    %v866 = vadd.f32 %v790, %v834
    %v867 = vadd.f32 %v791, %v835
    %v868 = vadd.f32 %v792, %v836
    %v869 = vadd.f32 %v793, %v837
    %v870 = vadd.f32 %v794, %v838
    %v871 = vadd.f32 %v795, %v839
    %v872 = vadd.f32 %v796, %v840
    %v873 = vadd.f32 %v797, %v841
    %v874 = vadd.f32 %v798, %v842
    %v875 = vadd.f32 %v799, %v843
    %v876 = vperm.slane %v752, 2
    %v877 = vperm.slane %v752, 6
    %v878 = vperm.slane %v753, 2
    %v879 = vperm.slane %v753, 6
    %v884 = vperm.slane %v876, 2
    %v885 = vperm.slane %v877, 2
    %v886 = vperm.slane %v878, 2
    %v887 = vperm.slane %v879, 2
    %v888 = vmul.f32 %v121, %v884
    %v889 = vmul.f32 %v121, %v885
    %v890 = vmul.f32 %v121, %v886
    %v891 = vmul.f32 %v121, %v887
    %v892 = vmul.f32 %v125, %v884
    %v893 = vmul.f32 %v125, %v885
    %v894 = vmul.f32 %v125, %v886
    %v895 = vmul.f32 %v125, %v887
    %v896 = vmul.f32 %v129, %v884
    %v897 = vmul.f32 %v129, %v885
    %v898 = vmul.f32 %v129, %v886
    %v899 = vmul.f32 %v129, %v887
    %v900 = vmul.f32 %v133, %v884
    %v901 = vmul.f32 %v133, %v885
    %v902 = vmul.f32 %v133, %v886
    %v903 = vmul.f32 %v133, %v887
    %v904 = vmul.f32 %v137, %v884
    %v905 = vmul.f32 %v137, %v885
    %v906 = vmul.f32 %v137, %v886
    %v907 = vmul.f32 %v137, %v887
    %v908 = vmul.f32 %v141, %v884
    %v909 = vmul.f32 %v141, %v885
    %v910 = vmul.f32 %v141, %v886
    %v911 = vmul.f32 %v141, %v887
    %v912 = vmul.f32 %v145, %v884
    %v913 = vmul.f32 %v145, %v885
    %v914 = vmul.f32 %v145, %v886
    %v915 = vmul.f32 %v145, %v887
    %v916 = vmul.f32 %v149, %v884
    %v917 = vmul.f32 %v149, %v885
    %v918 = vmul.f32 %v149, %v886
    %v919 = vmul.f32 %v149, %v887
    %v920 = vadd.f32 %v844, %v888
    %v921 = vadd.f32 %v845, %v889
    %v922 = vadd.f32 %v846, %v890
    %v923 = vadd.f32 %v847, %v891
    %v924 = vadd.f32 %v848, %v892
    %v925 = vadd.f32 %v849, %v893
    %v926 = vadd.f32 %v850, %v894
    %v927 = vadd.f32 %v851, %v895
    %v928 = vadd.f32 %v852, %v896
    %v929 = vadd.f32 %v853, %v897
    %v930 = vadd.f32 %v854, %v898
    %v931 = vadd.f32 %v855, %v899
    %v932 = vadd.f32 %v856, %v900
    %v933 = vadd.f32 %v857, %v901
    %v934 = vadd.f32 %v858, %v902
    %v935 = vadd.f32 %v859, %v903
    %v936 = vadd.f32 %v860, %v904
    %v937 = vadd.f32 %v861, %v905
    %v938 = vadd.f32 %v862, %v906
    %v939 = vadd.f32 %v863, %v907
    %v940 = vadd.f32 %v864, %v908
    %v941 = vadd.f32 %v865, %v909
    %v942 = vadd.f32 %v866, %v910
    %v943 = vadd.f32 %v867, %v911
    %v944 = vadd.f32 %v868, %v912
    %v945 = vadd.f32 %v869, %v913
    %v946 = vadd.f32 %v870, %v914
    %v947 = vadd.f32 %v871, %v915
    %v948 = vadd.f32 %v872, %v916
    %v949 = vadd.f32 %v873, %v917
    %v950 = vadd.f32 %v874, %v918
    %v951 = vadd.f32 %v875, %v919
    %v952 = vadd.f32 %v920, %v162
    %v953 = vadd.f32 %v921, %v162
    %v954 = vadd.f32 %v922, %v162
    %v955 = vadd.f32 %v923, %v162
    %v956 = vadd.f32 %v924, %v167
    %v957 = vadd.f32 %v925, %v167
    %v958 = vadd.f32 %v926, %v167
    %v959 = vadd.f32 %v927, %v167
    %v960 = vadd.f32 %v928, %v172
    %v961 = vadd.f32 %v929, %v172
    %v962 = vadd.f32 %v930, %v172
    %v963 = vadd.f32 %v931, %v172
    %v964 = vadd.f32 %v932, %v177
    %v965 = vadd.f32 %v933, %v177
    %v966 = vadd.f32 %v934, %v177
    %v967 = vadd.f32 %v935, %v177
    %v968 = vadd.f32 %v936, %v182
    %v969 = vadd.f32 %v937, %v182
    %v970 = vadd.f32 %v938, %v182
    %v971 = vadd.f32 %v939, %v182
    %v972 = vadd.f32 %v940, %v187
    %v973 = vadd.f32 %v941, %v187
    %v974 = vadd.f32 %v942, %v187
    %v975 = vadd.f32 %v943, %v187
    %v976 = vadd.f32 %v944, %v192
    %v977 = vadd.f32 %v945, %v192
    %v978 = vadd.f32 %v946, %v192
    %v979 = vadd.f32 %v947, %v192
    %v980 = vadd.f32 %v948, %v197
    %v981 = vadd.f32 %v949, %v197
    %v982 = vadd.f32 %v950, %v197
    %v983 = vadd.f32 %v951, %v197
    %v984 = vmul.f32 %v952, %v952
    %v985 = vmul.f32 %v953, %v953
    %v986 = vmul.f32 %v954, %v954
    %v987 = vmul.f32 %v955, %v955
    %v988 = vmul.f32 %v956, %v956
    %v989 = vmul.f32 %v957, %v957
    %v990 = vmul.f32 %v958, %v958
    %v991 = vmul.f32 %v959, %v959
    %v992 = vmul.f32 %v960, %v960
    %v993 = vmul.f32 %v961, %v961
    %v994 = vmul.f32 %v962, %v962
    %v995 = vmul.f32 %v963, %v963
    %v996 = vmul.f32 %v964, %v964
    %v997 = vmul.f32 %v965, %v965
    %v998 = vmul.f32 %v966, %v966
    %v999 = vmul.f32 %v967, %v967
    %v1000 = vmul.f32 %v968, %v968
    %v1001 = vmul.f32 %v969, %v969
    %v1002 = vmul.f32 %v970, %v970
    %v1003 = vmul.f32 %v971, %v971
    %v1004 = vmul.f32 %v972, %v972
    %v1005 = vmul.f32 %v973, %v973
    %v1006 = vmul.f32 %v974, %v974
    %v1007 = vmul.f32 %v975, %v975
    %v1008 = vmul.f32 %v976, %v976
    %v1009 = vmul.f32 %v977, %v977
    %v1010 = vmul.f32 %v978, %v978
    %v1011 = vmul.f32 %v979, %v979
    %v1012 = vmul.f32 %v980, %v980
    %v1013 = vmul.f32 %v981, %v981
    %v1014 = vmul.f32 %v982, %v982
    %v1015 = vmul.f32 %v983, %v983
    %v1016 = vmul.f32 %v952, %v984
    %v1017 = vmul.f32 %v953, %v985
    %v1018 = vmul.f32 %v954, %v986
    %v1019 = vmul.f32 %v955, %v987
    %v1020 = vmul.f32 %v956, %v988
    %v1021 = vmul.f32 %v957, %v989
    %v1022 = vmul.f32 %v958, %v990
    %v1023 = vmul.f32 %v959, %v991
    %v1024 = vmul.f32 %v960, %v992
    %v1025 = vmul.f32 %v961, %v993
    %v1026 = vmul.f32 %v962, %v994
    %v1027 = vmul.f32 %v963, %v995
    %v1028 = vmul.f32 %v964, %v996
    %v1029 = vmul.f32 %v965, %v997
    %v1030 = vmul.f32 %v966, %v998
    %v1031 = vmul.f32 %v967, %v999
    %v1032 = vmul.f32 %v968, %v1000
    %v1033 = vmul.f32 %v969, %v1001
    %v1034 = vmul.f32 %v970, %v1002
    %v1035 = vmul.f32 %v971, %v1003
    %v1036 = vmul.f32 %v972, %v1004
    %v1037 = vmul.f32 %v973, %v1005
    %v1038 = vmul.f32 %v974, %v1006
    %v1039 = vmul.f32 %v975, %v1007
    %v1040 = vmul.f32 %v976, %v1008
    %v1041 = vmul.f32 %v977, %v1009
    %v1042 = vmul.f32 %v978, %v1010
    %v1043 = vmul.f32 %v979, %v1011
    %v1044 = vmul.f32 %v980, %v1012
    %v1045 = vmul.f32 %v981, %v1013
    %v1046 = vmul.f32 %v982, %v1014
    %v1047 = vmul.f32 %v983, %v1015
    %v1048 = vmul.f32 %v1016, 0.044715
    %v1049 = vmul.f32 %v1017, 0.044715
    %v1050 = vmul.f32 %v1018, 0.044715
    %v1051 = vmul.f32 %v1019, 0.044715
    %v1052 = vmul.f32 %v1020, 0.044715
    %v1053 = vmul.f32 %v1021, 0.044715
    %v1054 = vmul.f32 %v1022, 0.044715
    %v1055 = vmul.f32 %v1023, 0.044715
    %v1056 = vmul.f32 %v1024, 0.044715
    %v1057 = vmul.f32 %v1025, 0.044715
    %v1058 = vmul.f32 %v1026, 0.044715
    %v1059 = vmul.f32 %v1027, 0.044715
    %v1060 = vmul.f32 %v1028, 0.044715
    %v1061 = vmul.f32 %v1029, 0.044715
    %v1062 = vmul.f32 %v1030, 0.044715
    %v1063 = vmul.f32 %v1031, 0.044715
    %v1064 = vmul.f32 %v1032, 0.044715
    %v1065 = vmul.f32 %v1033, 0.044715
    %v1066 = vmul.f32 %v1034, 0.044715
    %v1067 = vmul.f32 %v1035, 0.044715
    %v1068 = vmul.f32 %v1036, 0.044715
    %v1069 = vmul.f32 %v1037, 0.044715
    %v1070 = vmul.f32 %v1038, 0.044715
    %v1071 = vmul.f32 %v1039, 0.044715
    %v1072 = vmul.f32 %v1040, 0.044715
    %v1073 = vmul.f32 %v1041, 0.044715
    %v1074 = vmul.f32 %v1042, 0.044715
    %v1075 = vmul.f32 %v1043, 0.044715
    %v1076 = vmul.f32 %v1044, 0.044715
    %v1077 = vmul.f32 %v1045, 0.044715
    %v1078 = vmul.f32 %v1046, 0.044715
    %v1079 = vmul.f32 %v1047, 0.044715
    %v1080 = vadd.f32 %v952, %v1048
    %v1081 = vadd.f32 %v953, %v1049
    %v1082 = vadd.f32 %v954, %v1050
    %v1083 = vadd.f32 %v955, %v1051
    %v1084 = vadd.f32 %v956, %v1052
    %v1085 = vadd.f32 %v957, %v1053
    %v1086 = vadd.f32 %v958, %v1054
    %v1087 = vadd.f32 %v959, %v1055
    %v1088 = vadd.f32 %v960, %v1056
    %v1089 = vadd.f32 %v961, %v1057
    %v1090 = vadd.f32 %v962, %v1058
    %v1091 = vadd.f32 %v963, %v1059
    %v1092 = vadd.f32 %v964, %v1060
    %v1093 = vadd.f32 %v965, %v1061
    %v1094 = vadd.f32 %v966, %v1062
    %v1095 = vadd.f32 %v967, %v1063
    %v1096 = vadd.f32 %v968, %v1064
    %v1097 = vadd.f32 %v969, %v1065
    %v1098 = vadd.f32 %v970, %v1066
    %v1099 = vadd.f32 %v971, %v1067
    %v1100 = vadd.f32 %v972, %v1068
    %v1101 = vadd.f32 %v973, %v1069
    %v1102 = vadd.f32 %v974, %v1070
    %v1103 = vadd.f32 %v975, %v1071
    %v1104 = vadd.f32 %v976, %v1072
    %v1105 = vadd.f32 %v977, %v1073
    %v1106 = vadd.f32 %v978, %v1074
    %v1107 = vadd.f32 %v979, %v1075
    %v1108 = vadd.f32 %v980, %v1076
    %v1109 = vadd.f32 %v981, %v1077
    %v1110 = vadd.f32 %v982, %v1078
    %v1111 = vadd.f32 %v983, %v1079
    %v1112 = vmul.f32 %v1080, 0.7978846
    %v1113 = vmul.f32 %v1081, 0.7978846
    %v1114 = vmul.f32 %v1082, 0.7978846
    %v1115 = vmul.f32 %v1083, 0.7978846
    %v1116 = vmul.f32 %v1084, 0.7978846
    %v1117 = vmul.f32 %v1085, 0.7978846
    %v1118 = vmul.f32 %v1086, 0.7978846
    %v1119 = vmul.f32 %v1087, 0.7978846
    %v1120 = vmul.f32 %v1088, 0.7978846
    %v1121 = vmul.f32 %v1089, 0.7978846
    %v1122 = vmul.f32 %v1090, 0.7978846
    %v1123 = vmul.f32 %v1091, 0.7978846
    %v1124 = vmul.f32 %v1092, 0.7978846
    %v1125 = vmul.f32 %v1093, 0.7978846
    %v1126 = vmul.f32 %v1094, 0.7978846
    %v1127 = vmul.f32 %v1095, 0.7978846
    %v1128 = vmul.f32 %v1096, 0.7978846
    %v1129 = vmul.f32 %v1097, 0.7978846
    %v1130 = vmul.f32 %v1098, 0.7978846
    %v1131 = vmul.f32 %v1099, 0.7978846
    %v1132 = vmul.f32 %v1100, 0.7978846
    %v1133 = vmul.f32 %v1101, 0.7978846
    %v1134 = vmul.f32 %v1102, 0.7978846
    %v1135 = vmul.f32 %v1103, 0.7978846
    %v1136 = vmul.f32 %v1104, 0.7978846
    %v1137 = vmul.f32 %v1105, 0.7978846
    %v1138 = vmul.f32 %v1106, 0.7978846
    %v1139 = vmul.f32 %v1107, 0.7978846
    %v1140 = vmul.f32 %v1108, 0.7978846
    %v1141 = vmul.f32 %v1109, 0.7978846
    %v1142 = vmul.f32 %v1110, 0.7978846
    %v1143 = vmul.f32 %v1111, 0.7978846
    %v1144 = vtanh.pop %v1112
    %v1145 = vtanh.pop %v1113
    %v1146 = vtanh.pop %v1114
    %v1147 = vtanh.pop %v1115
    %v1148 = vtanh.pop %v1116
    %v1149 = vtanh.pop %v1117
    %v1150 = vtanh.pop %v1118
    %v1151 = vtanh.pop %v1119
    %v1152 = vtanh.pop %v1120
    %v1153 = vtanh.pop %v1121
    %v1154 = vtanh.pop %v1122
    %v1155 = vtanh.pop %v1123
    %v1156 = vtanh.pop %v1124
    %v1157 = vtanh.pop %v1125
    %v1158 = vtanh.pop %v1126
    %v1159 = vtanh.pop %v1127
    %v1160 = vtanh.pop %v1128
    %v1161 = vtanh.pop %v1129
    %v1162 = vtanh.pop %v1130
    %v1163 = vtanh.pop %v1131
    %v1164 = vtanh.pop %v1132
    %v1165 = vtanh.pop %v1133
    %v1166 = vtanh.pop %v1134
    %v1167 = vtanh.pop %v1135
    %v1168 = vtanh.pop %v1136
    %v1169 = vtanh.pop %v1137
    %v1170 = vtanh.pop %v1138
    %v1171 = vtanh.pop %v1139
    %v1172 = vtanh.pop %v1140
    %v1173 = vtanh.pop %v1141
    %v1174 = vtanh.pop %v1142
    %v1175 = vtanh.pop %v1143
    %v1176 = vadd.f32 %v1144, 1.0
    %v1177 = vadd.f32 %v1145, 1.0
    %v1178 = vadd.f32 %v1146, 1.0
    %v1179 = vadd.f32 %v1147, 1.0
    %v1180 = vadd.f32 %v1148, 1.0
    %v1181 = vadd.f32 %v1149, 1.0
    %v1182 = vadd.f32 %v1150, 1.0
    %v1183 = vadd.f32 %v1151, 1.0
    %v1184 = vadd.f32 %v1152, 1.0
    %v1185 = vadd.f32 %v1153, 1.0
    %v1186 = vadd.f32 %v1154, 1.0
    %v1187 = vadd.f32 %v1155, 1.0
    %v1188 = vadd.f32 %v1156, 1.0
    %v1189 = vadd.f32 %v1157, 1.0
    %v1190 = vadd.f32 %v1158, 1.0
    %v1191 = vadd.f32 %v1159, 1.0
    %v1192 = vadd.f32 %v1160, 1.0
    %v1193 = vadd.f32 %v1161, 1.0
    %v1194 = vadd.f32 %v1162, 1.0
    %v1195 = vadd.f32 %v1163, 1.0
    %v1196 = vadd.f32 %v1164, 1.0
    %v1197 = vadd.f32 %v1165, 1.0
    %v1198 = vadd.f32 %v1166, 1.0
    %v1199 = vadd.f32 %v1167, 1.0
    %v1200 = vadd.f32 %v1168, 1.0
    %v1201 = vadd.f32 %v1169, 1.0
    %v1202 = vadd.f32 %v1170, 1.0
    %v1203 = vadd.f32 %v1171, 1.0
    %v1204 = vadd.f32 %v1172, 1.0
    %v1205 = vadd.f32 %v1173, 1.0
    %v1206 = vadd.f32 %v1174, 1.0
    %v1207 = vadd.f32 %v1175, 1.0
    %v1208 = vmul.f32 %v1176, 0.5
    %v1209 = vmul.f32 %v1177, 0.5
    %v1210 = vmul.f32 %v1178, 0.5
    %v1211 = vmul.f32 %v1179, 0.5
    %v1212 = vmul.f32 %v1180, 0.5
    %v1213 = vmul.f32 %v1181, 0.5
    %v1214 = vmul.f32 %v1182, 0.5
    %v1215 = vmul.f32 %v1183, 0.5
    %v1216 = vmul.f32 %v1184, 0.5
    %v1217 = vmul.f32 %v1185, 0.5
    %v1218 = vmul.f32 %v1186, 0.5
    %v1219 = vmul.f32 %v1187, 0.5
    %v1220 = vmul.f32 %v1188, 0.5
    %v1221 = vmul.f32 %v1189, 0.5
    %v1222 = vmul.f32 %v1190, 0.5
    %v1223 = vmul.f32 %v1191, 0.5
    %v1224 = vmul.f32 %v1192, 0.5
    %v1225 = vmul.f32 %v1193, 0.5
    %v1226 = vmul.f32 %v1194, 0.5
    %v1227 = vmul.f32 %v1195, 0.5
    %v1228 = vmul.f32 %v1196, 0.5
    %v1229 = vmul.f32 %v1197, 0.5
    %v1230 = vmul.f32 %v1198, 0.5
    %v1231 = vmul.f32 %v1199, 0.5
    %v1232 = vmul.f32 %v1200, 0.5
    %v1233 = vmul.f32 %v1201, 0.5
    %v1234 = vmul.f32 %v1202, 0.5
    %v1235 = vmul.f32 %v1203, 0.5
    %v1236 = vmul.f32 %v1204, 0.5
    %v1237 = vmul.f32 %v1205, 0.5
    %v1238 = vmul.f32 %v1206, 0.5
    %v1239 = vmul.f32 %v1207, 0.5
    %v1240 = vmul.f32 %v952, %v1208
    %v1241 = vmul.f32 %v953, %v1209
    %v1242 = vmul.f32 %v954, %v1210
    %v1243 = vmul.f32 %v955, %v1211
    %v1244 = vmul.f32 %v956, %v1212
    %v1245 = vmul.f32 %v957, %v1213
    %v1246 = vmul.f32 %v958, %v1214
    %v1247 = vmul.f32 %v959, %v1215
    %v1248 = vmul.f32 %v960, %v1216
    %v1249 = vmul.f32 %v961, %v1217
    %v1250 = vmul.f32 %v962, %v1218
    %v1251 = vmul.f32 %v963, %v1219
    %v1252 = vmul.f32 %v964, %v1220
    %v1253 = vmul.f32 %v965, %v1221
    %v1254 = vmul.f32 %v966, %v1222
    %v1255 = vmul.f32 %v967, %v1223
    %v1256 = vmul.f32 %v968, %v1224
    %v1257 = vmul.f32 %v969, %v1225
    %v1258 = vmul.f32 %v970, %v1226
    %v1259 = vmul.f32 %v971, %v1227
    %v1260 = vmul.f32 %v972, %v1228
    %v1261 = vmul.f32 %v973, %v1229
    %v1262 = vmul.f32 %v974, %v1230
    %v1263 = vmul.f32 %v975, %v1231
    %v1264 = vmul.f32 %v976, %v1232
    %v1265 = vmul.f32 %v977, %v1233
    %v1266 = vmul.f32 %v978, %v1234
    %v1267 = vmul.f32 %v979, %v1235
    %v1268 = vmul.f32 %v980, %v1236
    %v1269 = vmul.f32 %v981, %v1237
    %v1270 = vmul.f32 %v982, %v1238
    %v1271 = vmul.f32 %v983, %v1239
    %v1272 = vpack.c.bf16 %v1241, %v1240
    %v1273 = vpack.c.bf16 %v1243, %v1242
    %v1274 = vpack.c.bf16 %v1245, %v1244
    %v1275 = vpack.c.bf16 %v1247, %v1246
    %v1276 = vpack.c.bf16 %v1249, %v1248
    %v1277 = vpack.c.bf16 %v1251, %v1250
    %v1278 = vpack.c.bf16 %v1253, %v1252
    %v1279 = vpack.c.bf16 %v1255, %v1254
    %v1280 = vpack.c.bf16 %v1257, %v1256
    %v1281 = vpack.c.bf16 %v1259, %v1258
    %v1282 = vpack.c.bf16 %v1261, %v1260
    %v1283 = vpack.c.bf16 %v1263, %v1262
    %v1284 = vpack.c.bf16 %v1265, %v1264
    %v1285 = vpack.c.bf16 %v1267, %v1266
    %v1286 = vpack.c.bf16 %v1269, %v1268
    %v1287 = vpack.c.bf16 %v1271, %v1270
    %1288 = vst [vmem:[#allocation2 + $0x10] sm:$0xff] %v1272
    %1289 = vst [vmem:[#allocation2 + $0x18] sm:$0xff] %v1273
    %1290 = vst [vmem:[#allocation2 + $0x30] sm:$0xff] %v1274
    %1291 = vst [vmem:[#allocation2 + $0x38] sm:$0xff] %v1275
    %1292 = vst [vmem:[#allocation2 + $0x50] sm:$0xff] %v1276
    %1293 = vst [vmem:[#allocation2 + $0x58] sm:$0xff] %v1277
    %1294 = vst [vmem:[#allocation2 + $0x70] sm:$0xff] %v1278
    %1295 = vst [vmem:[#allocation2 + $0x78] sm:$0xff] %v1279
    %1296 = vst [vmem:[#allocation2 + $0x90] sm:$0xff] %v1280
    %1297 = vst [vmem:[#allocation2 + $0x98] sm:$0xff] %v1281
    %1298 = vst [vmem:[#allocation2 + $0xb0] sm:$0xff] %v1282
    %1299 = vst [vmem:[#allocation2 + $0xb8] sm:$0xff] %v1283
    %1300 = vst [vmem:[#allocation2 + $0xd0] sm:$0xff] %v1284
    %1301 = vst [vmem:[#allocation2 + $0xd8] sm:$0xff] %v1285
    %1302 = vst [vmem:[#allocation2 + $0xf0] sm:$0xff] %v1286
    %1303 = vst [vmem:[#allocation2 + $0xf8] sm:$0xff] %v1287
    %v1304 = vld [vmem:[#allocation2] sm:$0xff]
    %v1305 = vld [vmem:[#allocation2 + $0x8] sm:$0xff]
    %v1306 = vld [vmem:[#allocation2 + $0x10] sm:$0xff]
    %v1307 = vld [vmem:[#allocation2 + $0x18] sm:$0xff]
    %v1308 = vld [vmem:[#allocation2 + $0x20] sm:$0xff]
    %v1309 = vld [vmem:[#allocation2 + $0x28] sm:$0xff]
    %v1310 = vld [vmem:[#allocation2 + $0x30] sm:$0xff]
    %v1311 = vld [vmem:[#allocation2 + $0x38] sm:$0xff]
    %v1312 = vld [vmem:[#allocation2 + $0x40] sm:$0xff]
    %v1313 = vld [vmem:[#allocation2 + $0x48] sm:$0xff]
    %v1314 = vld [vmem:[#allocation2 + $0x50] sm:$0xff]
    %v1315 = vld [vmem:[#allocation2 + $0x58] sm:$0xff]
    %v1316 = vld [vmem:[#allocation2 + $0x60] sm:$0xff]
    %v1317 = vld [vmem:[#allocation2 + $0x68] sm:$0xff]
    %v1318 = vld [vmem:[#allocation2 + $0x70] sm:$0xff]
    %v1319 = vld [vmem:[#allocation2 + $0x78] sm:$0xff]
    %v1320 = vld [vmem:[#allocation2 + $0x80] sm:$0xff]
    %v1321 = vld [vmem:[#allocation2 + $0x88] sm:$0xff]
    %v1322 = vld [vmem:[#allocation2 + $0x90] sm:$0xff]
    %v1323 = vld [vmem:[#allocation2 + $0x98] sm:$0xff]
    %v1324 = vld [vmem:[#allocation2 + $0xa0] sm:$0xff]
    %v1325 = vld [vmem:[#allocation2 + $0xa8] sm:$0xff]
    %v1326 = vld [vmem:[#allocation2 + $0xb0] sm:$0xff]
    %v1327 = vld [vmem:[#allocation2 + $0xb8] sm:$0xff]
    %v1328 = vld [vmem:[#allocation2 + $0xc0] sm:$0xff]
    %v1329 = vld [vmem:[#allocation2 + $0xc8] sm:$0xff]
    %v1330 = vld [vmem:[#allocation2 + $0xd0] sm:$0xff]
    %v1331 = vld [vmem:[#allocation2 + $0xd8] sm:$0xff]
    %v1332 = vld [vmem:[#allocation2 + $0xe0] sm:$0xff]
    %v1333 = vld [vmem:[#allocation2 + $0xe8] sm:$0xff]
    %v1334 = vld [vmem:[#allocation2 + $0xf0] sm:$0xff]
    %v1335 = vld [vmem:[#allocation2 + $0xf8] sm:$0xff]
    %v1336 = vld [vmem:[%s3] sm:$0xf]
    %v1337 = vld [vmem:[%s3 + $0x4] sm:$0xf]
    %v1338 = vld [vmem:[%s3 + $0x8] sm:$0xf]
    %v1339 = vld [vmem:[%s3 + $0xc] sm:$0xf]
    %v1340 = vld [vmem:[%s3 + $0x10] sm:$0xf]
    %v1341 = vld [vmem:[%s3 + $0x14] sm:$0xf]
    %v1342 = vld [vmem:[%s3 + $0x18] sm:$0xf]
    %v1343 = vld [vmem:[%s3 + $0x1c] sm:$0xf]
    %v1344 = vld [vmem:[%s4] sm:$0xff]
    %v1345 = vld [vmem:[%s4 + $0x8] sm:$0xff]
    %v1346 = vld [vmem:[%s4 + $0x10] sm:$0xff]
    %v1347 = vld [vmem:[%s4 + $0x18] sm:$0xff]
    %v1348 = vld [vmem:[%s4 + $0x20] sm:$0xff]
    %v1349 = vld [vmem:[%s4 + $0x28] sm:$0xff]
    %v1350 = vld [vmem:[%s4 + $0x30] sm:$0xff]
    %v1351 = vld [vmem:[%s4 + $0x38] sm:$0xff]
    %1353 = vset.pattern.permute.xlu0 0
    %1354 = vperm.xlu0 %1353, %v1344
    %v1355 = vpop.permute.xlu0 %1354
    %1358 = vset.pattern.permute.xlu0 0
    %1359 = vperm.xlu0 %1358, %v1345
    %v1360 = vpop.permute.xlu0 %1359
    %1363 = vset.pattern.permute.xlu0 0
    %1364 = vperm.xlu0 %1363, %v1346
    %v1365 = vpop.permute.xlu0 %1364
    %1368 = vset.pattern.permute.xlu0 0
    %1369 = vperm.xlu0 %1368, %v1347
    %v1370 = vpop.permute.xlu0 %1369
    %1373 = vset.pattern.permute.xlu0 0
    %1374 = vperm.xlu0 %1373, %v1348
    %v1375 = vpop.permute.xlu0 %1374
    %1378 = vset.pattern.permute.xlu0 0
    %1379 = vperm.xlu0 %1378, %v1349
    %v1380 = vpop.permute.xlu0 %1379
    %1383 = vset.pattern.permute.xlu0 0
    %1384 = vperm.xlu0 %1383, %v1350
    %v1385 = vpop.permute.xlu0 %1384
    %1388 = vset.pattern.permute.xlu0 0
    %1389 = vperm.xlu0 %1388, %v1351
    %v1390 = vpop.permute.xlu0 %1389
    %v1400 = vunpack.c.l.b16 %v1336
    %v1401 = vunpack.c.l.b16 %v1337
    %v1402 = vunpack.c.l.b16 %v1338
    %v1403 = vunpack.c.l.b16 %v1339
    %v1404 = vunpack.c.l.b16 %v1340
    %v1405 = vunpack.c.l.b16 %v1341
    %v1406 = vunpack.c.l.b16 %v1342
    %v1407 = vunpack.c.l.b16 %v1343
    %v1408 = vpack.c.b16 %v1401, %v1400
    %v1409 = vpack.c.b16 %v1403, %v1402
    %v1410 = vpack.c.b16 %v1405, %v1404
    %v1411 = vpack.c.b16 %v1407, %v1406
    %v1444 = vunpack.c.l.b16 %v1304
    %v1445 = vunpack.c.h.b16 %v1304
    %v1446 = vunpack.c.l.b16 %v1305
    %v1447 = vunpack.c.h.b16 %v1305
    %v1448 = vunpack.c.l.b16 %v1306
    %v1449 = vunpack.c.h.b16 %v1306
    %v1450 = vunpack.c.l.b16 %v1307
    %v1451 = vunpack.c.h.b16 %v1307
    %v1452 = vunpack.c.l.b16 %v1308
    %v1453 = vunpack.c.h.b16 %v1308
    %v1454 = vunpack.c.l.b16 %v1309
    %v1455 = vunpack.c.h.b16 %v1309
    %v1456 = vunpack.c.l.b16 %v1310
    %v1457 = vunpack.c.h.b16 %v1310
    %v1458 = vunpack.c.l.b16 %v1311
    %v1459 = vunpack.c.h.b16 %v1311
    %v1460 = vunpack.c.l.b16 %v1312
    %v1461 = vunpack.c.h.b16 %v1312
    %v1462 = vunpack.c.l.b16 %v1313
    %v1463 = vunpack.c.h.b16 %v1313
    %v1464 = vunpack.c.l.b16 %v1314
    %v1465 = vunpack.c.h.b16 %v1314
    %v1466 = vunpack.c.l.b16 %v1315
    %v1467 = vunpack.c.h.b16 %v1315
    %v1468 = vunpack.c.l.b16 %v1316
    %v1469 = vunpack.c.h.b16 %v1316
    %v1470 = vunpack.c.l.b16 %v1317
    %v1471 = vunpack.c.h.b16 %v1317
    %v1472 = vunpack.c.l.b16 %v1318
    %v1473 = vunpack.c.h.b16 %v1318
    %v1474 = vunpack.c.l.b16 %v1319
    %v1475 = vunpack.c.h.b16 %v1319
    %v1476 = vunpack.c.l.b16 %v1320
    %v1477 = vunpack.c.h.b16 %v1320
    %v1478 = vunpack.c.l.b16 %v1321
    %v1479 = vunpack.c.h.b16 %v1321
    %v1480 = vunpack.c.l.b16 %v1322
    %v1481 = vunpack.c.h.b16 %v1322
    %v1482 = vunpack.c.l.b16 %v1323
    %v1483 = vunpack.c.h.b16 %v1323
    %v1484 = vunpack.c.l.b16 %v1324
    %v1485 = vunpack.c.h.b16 %v1324
    %v1486 = vunpack.c.l.b16 %v1325
    %v1487 = vunpack.c.h.b16 %v1325
    %v1488 = vunpack.c.l.b16 %v1326
    %v1489 = vunpack.c.h.b16 %v1326
    %v1490 = vunpack.c.l.b16 %v1327
    %v1491 = vunpack.c.h.b16 %v1327
    %v1492 = vunpack.c.l.b16 %v1328
    %v1493 = vunpack.c.h.b16 %v1328
    %v1494 = vunpack.c.l.b16 %v1329
    %v1495 = vunpack.c.h.b16 %v1329
    %v1496 = vunpack.c.l.b16 %v1330
    %v1497 = vunpack.c.h.b16 %v1330
    %v1498 = vunpack.c.l.b16 %v1331
    %v1499 = vunpack.c.h.b16 %v1331
    %v1500 = vunpack.c.l.b16 %v1332
    %v1501 = vunpack.c.h.b16 %v1332
    %v1502 = vunpack.c.l.b16 %v1333
    %v1503 = vunpack.c.h.b16 %v1333
    %v1504 = vunpack.c.l.b16 %v1334
    %v1505 = vunpack.c.h.b16 %v1334
    %v1506 = vunpack.c.l.b16 %v1335
    %v1507 = vunpack.c.h.b16 %v1335
    %v1508 = vpack.c.b16 %v1452, %v1444
    %v1509 = vpack.c.b16 %v1453, %v1445
    %v1510 = vpack.c.b16 %v1454, %v1446
    %v1511 = vpack.c.b16 %v1455, %v1447
    %v1512 = vpack.c.b16 %v1456, %v1448
    %v1513 = vpack.c.b16 %v1457, %v1449
    %v1514 = vpack.c.b16 %v1458, %v1450
    %v1515 = vpack.c.b16 %v1459, %v1451
    %v1516 = vpack.c.b16 %v1468, %v1460
    %v1517 = vpack.c.b16 %v1469, %v1461
    %v1518 = vpack.c.b16 %v1470, %v1462
    %v1519 = vpack.c.b16 %v1471, %v1463
    %v1520 = vpack.c.b16 %v1472, %v1464
    %v1521 = vpack.c.b16 %v1473, %v1465
    %v1522 = vpack.c.b16 %v1474, %v1466
    %v1523 = vpack.c.b16 %v1475, %v1467
    %v1524 = vpack.c.b16 %v1484, %v1476
    %v1525 = vpack.c.b16 %v1485, %v1477
    %v1526 = vpack.c.b16 %v1486, %v1478
    %v1527 = vpack.c.b16 %v1487, %v1479
    %v1528 = vpack.c.b16 %v1488, %v1480
    %v1529 = vpack.c.b16 %v1489, %v1481
    %v1530 = vpack.c.b16 %v1490, %v1482
    %v1531 = vpack.c.b16 %v1491, %v1483
    %v1532 = vpack.c.b16 %v1500, %v1492
    %v1533 = vpack.c.b16 %v1501, %v1493
    %v1534 = vpack.c.b16 %v1502, %v1494
    %v1535 = vpack.c.b16 %v1503, %v1495
    %v1536 = vpack.c.b16 %v1504, %v1496
    %v1537 = vpack.c.b16 %v1505, %v1497
    %v1538 = vpack.c.b16 %v1506, %v1498
    %v1539 = vpack.c.b16 %v1507, %v1499
    %vm1572 = vcmask 523264
    %v1574 = vsel %vm1572, %v1408, 0
    %v1577 = vsel %vm1572, %v1409, 0
    %v1580 = vsel %vm1572, %v1410, 0
    %v1583 = vsel %vm1572, %v1411, 0
    %1585 = vmatpush.bf16.msra.mxu0 0
    %1586 = vmatpush.bf16.msra.mxu0 0
    %1587 = vmatpush.bf16.msra.mxu0 0
    %1588 = vmatpush.bf16.msra.mxu0 0
    %1589 = vmatpush.bf16.msra.mxu0 %v1532
    %1590 = vmatpush.bf16.msra.mxu0 %v1524
    %1591 = vmatpush.bf16.msra.mxu0 %v1516
    %1592 = vmatpush.bf16.msra.mxu0 %v1508
    %1593 = vmatmul.bf16.gmra.mxu0 %v1574
    %v1594 = vpop.f32.mrf.mxu0
    %v1595 = vadd.f32 %v1355, %v1594
    %v1596 = vpop.f32.mrf.mxu0
    %v1597 = vadd.f32 %v1360, %v1596
    %1598 = vmatmul.bf16.gmra.mxu0 %v1577
    %v1599 = vpop.f32.mrf.mxu0
    %v1600 = vadd.f32 %v1365, %v1599
    %v1601 = vpop.f32.mrf.mxu0
    %v1602 = vadd.f32 %v1370, %v1601
    %1603 = vmatmul.bf16.gmra.mxu0 %v1580
    %v1604 = vpop.f32.mrf.mxu0
    %v1605 = vadd.f32 %v1375, %v1604
    %v1606 = vpop.f32.mrf.mxu0
    %v1607 = vadd.f32 %v1380, %v1606
    %1608 = vmatmul.bf16.gmra.mxu0 %v1583
    %v1609 = vpop.f32.mrf.mxu0
    %v1610 = vadd.f32 %v1385, %v1609
    %v1611 = vpop.f32.mrf.mxu0
    %v1612 = vadd.f32 %v1390, %v1611
    %1613 = vdwg.mxu0
    %1614 = vmatpush.bf16.msra.mxu0 0
    %1615 = vmatpush.bf16.msra.mxu0 0
    %1616 = vmatpush.bf16.msra.mxu0 0
    %1617 = vmatpush.bf16.msra.mxu0 0
    %1618 = vmatpush.bf16.msra.mxu0 %v1533
    %1619 = vmatpush.bf16.msra.mxu0 %v1525
    %1620 = vmatpush.bf16.msra.mxu0 %v1517
    %1621 = vmatpush.bf16.msra.mxu0 %v1509
    %1622 = vmatmul.bf16.gmra.mxu0 %v1574
    %v1623 = vpop.f32.mrf.mxu0
    %v1624 = vadd.f32 %v1355, %v1623
    %v1625 = vpop.f32.mrf.mxu0
    %v1626 = vadd.f32 %v1360, %v1625
    %1627 = vmatmul.bf16.gmra.mxu0 %v1577
    %v1628 = vpop.f32.mrf.mxu0
    %v1629 = vadd.f32 %v1365, %v1628
    %v1630 = vpop.f32.mrf.mxu0
    %v1631 = vadd.f32 %v1370, %v1630
    %1632 = vmatmul.bf16.gmra.mxu0 %v1580
    %v1633 = vpop.f32.mrf.mxu0
    %v1634 = vadd.f32 %v1375, %v1633
    %v1635 = vpop.f32.mrf.mxu0
    %v1636 = vadd.f32 %v1380, %v1635
    %1637 = vmatmul.bf16.gmra.mxu0 %v1583
    %v1638 = vpop.f32.mrf.mxu0
    %v1639 = vadd.f32 %v1385, %v1638
    %v1640 = vpop.f32.mrf.mxu0
    %v1641 = vadd.f32 %v1390, %v1640
    %1642 = vdwg.mxu0
    %1643 = vmatpush.bf16.msra.mxu0 0
    %1644 = vmatpush.bf16.msra.mxu0 0
    %1645 = vmatpush.bf16.msra.mxu0 0
    %1646 = vmatpush.bf16.msra.mxu0 0
    %1647 = vmatpush.bf16.msra.mxu0 %v1534
    %1648 = vmatpush.bf16.msra.mxu0 %v1526
    %1649 = vmatpush.bf16.msra.mxu0 %v1518
    %1650 = vmatpush.bf16.msra.mxu0 %v1510
    %1651 = vmatmul.bf16.gmra.mxu0 %v1574
    %v1652 = vpop.f32.mrf.mxu0
    %v1653 = vadd.f32 %v1355, %v1652
    %v1654 = vpop.f32.mrf.mxu0
    %v1655 = vadd.f32 %v1360, %v1654
    %1656 = vmatmul.bf16.gmra.mxu0 %v1577
    %v1657 = vpop.f32.mrf.mxu0
    %v1658 = vadd.f32 %v1365, %v1657
    %v1659 = vpop.f32.mrf.mxu0
    %v1660 = vadd.f32 %v1370, %v1659
    %1661 = vmatmul.bf16.gmra.mxu0 %v1580
    %v1662 = vpop.f32.mrf.mxu0
    %v1663 = vadd.f32 %v1375, %v1662
    %v1664 = vpop.f32.mrf.mxu0
    %v1665 = vadd.f32 %v1380, %v1664
    %1666 = vmatmul.bf16.gmra.mxu0 %v1583
    %v1667 = vpop.f32.mrf.mxu0
    %v1668 = vadd.f32 %v1385, %v1667
    %v1669 = vpop.f32.mrf.mxu0
    %v1670 = vadd.f32 %v1390, %v1669
    %1671 = vdwg.mxu0
    %1672 = vmatpush.bf16.msra.mxu0 0
    %1673 = vmatpush.bf16.msra.mxu0 0
    %1674 = vmatpush.bf16.msra.mxu0 0
    %1675 = vmatpush.bf16.msra.mxu0 0
    %1676 = vmatpush.bf16.msra.mxu0 %v1535
    %1677 = vmatpush.bf16.msra.mxu0 %v1527
    %1678 = vmatpush.bf16.msra.mxu0 %v1519
    %1679 = vmatpush.bf16.msra.mxu0 %v1511
    %1680 = vmatmul.bf16.gmra.mxu0 %v1574
    %v1681 = vpop.f32.mrf.mxu0
    %v1682 = vadd.f32 %v1355, %v1681
    %v1683 = vpop.f32.mrf.mxu0
    %v1684 = vadd.f32 %v1360, %v1683
    %1685 = vmatmul.bf16.gmra.mxu0 %v1577
    %v1686 = vpop.f32.mrf.mxu0
    %v1687 = vadd.f32 %v1365, %v1686
    %v1688 = vpop.f32.mrf.mxu0
    %v1689 = vadd.f32 %v1370, %v1688
    %1690 = vmatmul.bf16.gmra.mxu0 %v1580
    %v1691 = vpop.f32.mrf.mxu0
    %v1692 = vadd.f32 %v1375, %v1691
    %v1693 = vpop.f32.mrf.mxu0
    %v1694 = vadd.f32 %v1380, %v1693
    %1695 = vmatmul.bf16.gmra.mxu0 %v1583
    %v1696 = vpop.f32.mrf.mxu0
    %v1697 = vadd.f32 %v1385, %v1696
    %v1698 = vpop.f32.mrf.mxu0
    %v1699 = vadd.f32 %v1390, %v1698
    %1700 = vdwg.mxu0
    %1701 = vmatpush.bf16.msra.mxu0 0
    %1702 = vmatpush.bf16.msra.mxu0 0
    %1703 = vmatpush.bf16.msra.mxu0 0
    %1704 = vmatpush.bf16.msra.mxu0 0
    %1705 = vmatpush.bf16.msra.mxu0 %v1536
    %1706 = vmatpush.bf16.msra.mxu0 %v1528
    %1707 = vmatpush.bf16.msra.mxu0 %v1520
    %1708 = vmatpush.bf16.msra.mxu0 %v1512
    %1709 = vmatmul.bf16.gmra.mxu0 %v1574
    %v1710 = vpop.f32.mrf.mxu0
    %v1711 = vadd.f32 %v1355, %v1710
    %v1712 = vpop.f32.mrf.mxu0
    %v1713 = vadd.f32 %v1360, %v1712
    %1714 = vmatmul.bf16.gmra.mxu0 %v1577
    %v1715 = vpop.f32.mrf.mxu0
    %v1716 = vadd.f32 %v1365, %v1715
    %v1717 = vpop.f32.mrf.mxu0
    %v1718 = vadd.f32 %v1370, %v1717
    %1719 = vmatmul.bf16.gmra.mxu0 %v1580
    %v1720 = vpop.f32.mrf.mxu0
    %v1721 = vadd.f32 %v1375, %v1720
    %v1722 = vpop.f32.mrf.mxu0
    %v1723 = vadd.f32 %v1380, %v1722
    %1724 = vmatmul.bf16.gmra.mxu0 %v1583
    %v1725 = vpop.f32.mrf.mxu0
    %v1726 = vadd.f32 %v1385, %v1725
    %v1727 = vpop.f32.mrf.mxu0
    %v1728 = vadd.f32 %v1390, %v1727
    %1729 = vdwg.mxu0
    %1730 = vmatpush.bf16.msra.mxu0 0
    %1731 = vmatpush.bf16.msra.mxu0 0
    %1732 = vmatpush.bf16.msra.mxu0 0
    %1733 = vmatpush.bf16.msra.mxu0 0
    %1734 = vmatpush.bf16.msra.mxu0 %v1537
    %1735 = vmatpush.bf16.msra.mxu0 %v1529
    %1736 = vmatpush.bf16.msra.mxu0 %v1521
    %1737 = vmatpush.bf16.msra.mxu0 %v1513
    %1738 = vmatmul.bf16.gmra.mxu0 %v1574
    %v1739 = vpop.f32.mrf.mxu0
    %v1740 = vadd.f32 %v1355, %v1739
    %v1741 = vpop.f32.mrf.mxu0
    %v1742 = vadd.f32 %v1360, %v1741
    %1743 = vmatmul.bf16.gmra.mxu0 %v1577
    %v1744 = vpop.f32.mrf.mxu0
    %v1745 = vadd.f32 %v1365, %v1744
    %v1746 = vpop.f32.mrf.mxu0
    %v1747 = vadd.f32 %v1370, %v1746
    %1748 = vmatmul.bf16.gmra.mxu0 %v1580
    %v1749 = vpop.f32.mrf.mxu0
    %v1750 = vadd.f32 %v1375, %v1749
    %v1751 = vpop.f32.mrf.mxu0
    %v1752 = vadd.f32 %v1380, %v1751
    %1753 = vmatmul.bf16.gmra.mxu0 %v1583
    %v1754 = vpop.f32.mrf.mxu0
    %v1755 = vadd.f32 %v1385, %v1754
    %v1756 = vpop.f32.mrf.mxu0
    %v1757 = vadd.f32 %v1390, %v1756
    %1758 = vdwg.mxu0
    %1759 = vmatpush.bf16.msra.mxu0 0
    %1760 = vmatpush.bf16.msra.mxu0 0
    %1761 = vmatpush.bf16.msra.mxu0 0
    %1762 = vmatpush.bf16.msra.mxu0 0
    %1763 = vmatpush.bf16.msra.mxu0 %v1538
    %1764 = vmatpush.bf16.msra.mxu0 %v1530
    %1765 = vmatpush.bf16.msra.mxu0 %v1522
    %1766 = vmatpush.bf16.msra.mxu0 %v1514
    %1767 = vmatmul.bf16.gmra.mxu0 %v1574
    %v1768 = vpop.f32.mrf.mxu0
    %v1769 = vadd.f32 %v1355, %v1768
    %v1770 = vpop.f32.mrf.mxu0
    %v1771 = vadd.f32 %v1360, %v1770
    %1772 = vmatmul.bf16.gmra.mxu0 %v1577
    %v1773 = vpop.f32.mrf.mxu0
    %v1774 = vadd.f32 %v1365, %v1773
    %v1775 = vpop.f32.mrf.mxu0
    %v1776 = vadd.f32 %v1370, %v1775
    %1777 = vmatmul.bf16.gmra.mxu0 %v1580
    %v1778 = vpop.f32.mrf.mxu0
    %v1779 = vadd.f32 %v1375, %v1778
    %v1780 = vpop.f32.mrf.mxu0
    %v1781 = vadd.f32 %v1380, %v1780
    %1782 = vmatmul.bf16.gmra.mxu0 %v1583
    %v1783 = vpop.f32.mrf.mxu0
    %v1784 = vadd.f32 %v1385, %v1783
    %v1785 = vpop.f32.mrf.mxu0
    %v1786 = vadd.f32 %v1390, %v1785
    %1787 = vdwg.mxu0
    %1788 = vmatpush.bf16.msra.mxu0 0
    %1789 = vmatpush.bf16.msra.mxu0 0
    %1790 = vmatpush.bf16.msra.mxu0 0
    %1791 = vmatpush.bf16.msra.mxu0 0
    %1792 = vmatpush.bf16.msra.mxu0 %v1539
    %1793 = vmatpush.bf16.msra.mxu0 %v1531
    %1794 = vmatpush.bf16.msra.mxu0 %v1523
    %1795 = vmatpush.bf16.msra.mxu0 %v1515
    %1796 = vmatmul.bf16.gmra.mxu0 %v1574
    %v1797 = vpop.f32.mrf.mxu0
    %v1798 = vadd.f32 %v1355, %v1797
    %v1799 = vpop.f32.mrf.mxu0
    %v1800 = vadd.f32 %v1360, %v1799
    %1801 = vmatmul.bf16.gmra.mxu0 %v1577
    %v1802 = vpop.f32.mrf.mxu0
    %v1803 = vadd.f32 %v1365, %v1802
    %v1804 = vpop.f32.mrf.mxu0
    %v1805 = vadd.f32 %v1370, %v1804
    %1806 = vmatmul.bf16.gmra.mxu0 %v1580
    %v1807 = vpop.f32.mrf.mxu0
    %v1808 = vadd.f32 %v1375, %v1807
    %v1809 = vpop.f32.mrf.mxu0
    %v1810 = vadd.f32 %v1380, %v1809
    %1811 = vmatmul.bf16.gmra.mxu0 %v1583
    %v1812 = vpop.f32.mrf.mxu0
    %v1813 = vadd.f32 %v1385, %v1812
    %v1814 = vpop.f32.mrf.mxu0
    %v1815 = vadd.f32 %v1390, %v1814
    %1816 = vdwg.mxu0
    %v1817 = vmul.f32 %v1595, %v1595
    %v1818 = vmul.f32 %v1624, %v1624
    %v1819 = vmul.f32 %v1653, %v1653
    %v1820 = vmul.f32 %v1682, %v1682
    %v1821 = vmul.f32 %v1711, %v1711
    %v1822 = vmul.f32 %v1740, %v1740
    %v1823 = vmul.f32 %v1769, %v1769
    %v1824 = vmul.f32 %v1798, %v1798
    %v1825 = vmul.f32 %v1597, %v1597
    %v1826 = vmul.f32 %v1626, %v1626
    %v1827 = vmul.f32 %v1655, %v1655
    %v1828 = vmul.f32 %v1684, %v1684
    %v1829 = vmul.f32 %v1713, %v1713
    %v1830 = vmul.f32 %v1742, %v1742
    %v1831 = vmul.f32 %v1771, %v1771
    %v1832 = vmul.f32 %v1800, %v1800
    %v1833 = vmul.f32 %v1600, %v1600
    %v1834 = vmul.f32 %v1629, %v1629
    %v1835 = vmul.f32 %v1658, %v1658
    %v1836 = vmul.f32 %v1687, %v1687
    %v1837 = vmul.f32 %v1716, %v1716
    %v1838 = vmul.f32 %v1745, %v1745
    %v1839 = vmul.f32 %v1774, %v1774
    %v1840 = vmul.f32 %v1803, %v1803
    %v1841 = vmul.f32 %v1602, %v1602
    %v1842 = vmul.f32 %v1631, %v1631
    %v1843 = vmul.f32 %v1660, %v1660
    %v1844 = vmul.f32 %v1689, %v1689
    %v1845 = vmul.f32 %v1718, %v1718
    %v1846 = vmul.f32 %v1747, %v1747
    %v1847 = vmul.f32 %v1776, %v1776
    %v1848 = vmul.f32 %v1805, %v1805
    %v1849 = vmul.f32 %v1605, %v1605
    %v1850 = vmul.f32 %v1634, %v1634
    %v1851 = vmul.f32 %v1663, %v1663
    %v1852 = vmul.f32 %v1692, %v1692
    %v1853 = vmul.f32 %v1721, %v1721
    %v1854 = vmul.f32 %v1750, %v1750
    %v1855 = vmul.f32 %v1779, %v1779
    %v1856 = vmul.f32 %v1808, %v1808
    %v1857 = vmul.f32 %v1607, %v1607
    %v1858 = vmul.f32 %v1636, %v1636
    %v1859 = vmul.f32 %v1665, %v1665
    %v1860 = vmul.f32 %v1694, %v1694
    %v1861 = vmul.f32 %v1723, %v1723
    %v1862 = vmul.f32 %v1752, %v1752
    %v1863 = vmul.f32 %v1781, %v1781
    %v1864 = vmul.f32 %v1810, %v1810
    %v1865 = vmul.f32 %v1610, %v1610
    %v1866 = vmul.f32 %v1639, %v1639
    %v1867 = vmul.f32 %v1668, %v1668
    %v1868 = vmul.f32 %v1697, %v1697
    %v1869 = vmul.f32 %v1726, %v1726
    %v1870 = vmul.f32 %v1755, %v1755
    %v1871 = vmul.f32 %v1784, %v1784
    %v1872 = vmul.f32 %v1813, %v1813
    %v1873 = vmul.f32 %v1612, %v1612
    %v1874 = vmul.f32 %v1641, %v1641
    %v1875 = vmul.f32 %v1670, %v1670
    %v1876 = vmul.f32 %v1699, %v1699
    %v1877 = vmul.f32 %v1728, %v1728
    %v1878 = vmul.f32 %v1757, %v1757
    %v1879 = vmul.f32 %v1786, %v1786
    %v1880 = vmul.f32 %v1815, %v1815
    %v1881 = vmul.f32 %v1595, %v1817
    %v1882 = vmul.f32 %v1624, %v1818
    %v1883 = vmul.f32 %v1653, %v1819
    %v1884 = vmul.f32 %v1682, %v1820
    %v1885 = vmul.f32 %v1711, %v1821
    %v1886 = vmul.f32 %v1740, %v1822
    %v1887 = vmul.f32 %v1769, %v1823
    %v1888 = vmul.f32 %v1798, %v1824
    %v1889 = vmul.f32 %v1597, %v1825
    %v1890 = vmul.f32 %v1626, %v1826
    %v1891 = vmul.f32 %v1655, %v1827
    %v1892 = vmul.f32 %v1684, %v1828
    %v1893 = vmul.f32 %v1713, %v1829
    %v1894 = vmul.f32 %v1742, %v1830
    %v1895 = vmul.f32 %v1771, %v1831
    %v1896 = vmul.f32 %v1800, %v1832
    %v1897 = vmul.f32 %v1600, %v1833
    %v1898 = vmul.f32 %v1629, %v1834
    %v1899 = vmul.f32 %v1658, %v1835
    %v1900 = vmul.f32 %v1687, %v1836
    %v1901 = vmul.f32 %v1716, %v1837
    %v1902 = vmul.f32 %v1745, %v1838
    %v1903 = vmul.f32 %v1774, %v1839
    %v1904 = vmul.f32 %v1803, %v1840
    %v1905 = vmul.f32 %v1602, %v1841
    %v1906 = vmul.f32 %v1631, %v1842
    %v1907 = vmul.f32 %v1660, %v1843
    %v1908 = vmul.f32 %v1689, %v1844
    %v1909 = vmul.f32 %v1718, %v1845
    %v1910 = vmul.f32 %v1747, %v1846
    %v1911 = vmul.f32 %v1776, %v1847
    %v1912 = vmul.f32 %v1805, %v1848
    %v1913 = vmul.f32 %v1605, %v1849
    %v1914 = vmul.f32 %v1634, %v1850
    %v1915 = vmul.f32 %v1663, %v1851
    %v1916 = vmul.f32 %v1692, %v1852
    %v1917 = vmul.f32 %v1721, %v1853
    %v1918 = vmul.f32 %v1750, %v1854
    %v1919 = vmul.f32 %v1779, %v1855
    %v1920 = vmul.f32 %v1808, %v1856
    %v1921 = vmul.f32 %v1607, %v1857
    %v1922 = vmul.f32 %v1636, %v1858
    %v1923 = vmul.f32 %v1665, %v1859
    %v1924 = vmul.f32 %v1694, %v1860
    %v1925 = vmul.f32 %v1723, %v1861
    %v1926 = vmul.f32 %v1752, %v1862
    %v1927 = vmul.f32 %v1781, %v1863
    %v1928 = vmul.f32 %v1810, %v1864
    %v1929 = vmul.f32 %v1610, %v1865
    %v1930 = vmul.f32 %v1639, %v1866
    %v1931 = vmul.f32 %v1668, %v1867
    %v1932 = vmul.f32 %v1697, %v1868
    %v1933 = vmul.f32 %v1726, %v1869
    %v1934 = vmul.f32 %v1755, %v1870
    %v1935 = vmul.f32 %v1784, %v1871
    %v1936 = vmul.f32 %v1813, %v1872
    %v1937 = vmul.f32 %v1612, %v1873
    %v1938 = vmul.f32 %v1641, %v1874
    %v1939 = vmul.f32 %v1670, %v1875
    %v1940 = vmul.f32 %v1699, %v1876
    %v1941 = vmul.f32 %v1728, %v1877
    %v1942 = vmul.f32 %v1757, %v1878
    %v1943 = vmul.f32 %v1786, %v1879
    %v1944 = vmul.f32 %v1815, %v1880
    %v1945 = vmul.f32 %v1881, 0.044715
    %v1946 = vmul.f32 %v1882, 0.044715
    %v1947 = vmul.f32 %v1883, 0.044715
    %v1948 = vmul.f32 %v1884, 0.044715
    %v1949 = vmul.f32 %v1885, 0.044715
    %v1950 = vmul.f32 %v1886, 0.044715
    %v1951 = vmul.f32 %v1887, 0.044715
    %v1952 = vmul.f32 %v1888, 0.044715
    %v1953 = vmul.f32 %v1889, 0.044715
    %v1954 = vmul.f32 %v1890, 0.044715
    %v1955 = vmul.f32 %v1891, 0.044715
    %v1956 = vmul.f32 %v1892, 0.044715
    %v1957 = vmul.f32 %v1893, 0.044715
    %v1958 = vmul.f32 %v1894, 0.044715
    %v1959 = vmul.f32 %v1895, 0.044715
    %v1960 = vmul.f32 %v1896, 0.044715
    %v1961 = vmul.f32 %v1897, 0.044715
    %v1962 = vmul.f32 %v1898, 0.044715
    %v1963 = vmul.f32 %v1899, 0.044715
    %v1964 = vmul.f32 %v1900, 0.044715
    %v1965 = vmul.f32 %v1901, 0.044715
    %v1966 = vmul.f32 %v1902, 0.044715
    %v1967 = vmul.f32 %v1903, 0.044715
    %v1968 = vmul.f32 %v1904, 0.044715
    %v1969 = vmul.f32 %v1905, 0.044715
    %v1970 = vmul.f32 %v1906, 0.044715
    %v1971 = vmul.f32 %v1907, 0.044715
    %v1972 = vmul.f32 %v1908, 0.044715
    %v1973 = vmul.f32 %v1909, 0.044715
    %v1974 = vmul.f32 %v1910, 0.044715
    %v1975 = vmul.f32 %v1911, 0.044715
    %v1976 = vmul.f32 %v1912, 0.044715
    %v1977 = vmul.f32 %v1913, 0.044715
    %v1978 = vmul.f32 %v1914, 0.044715
    %v1979 = vmul.f32 %v1915, 0.044715
    %v1980 = vmul.f32 %v1916, 0.044715
    %v1981 = vmul.f32 %v1917, 0.044715
    %v1982 = vmul.f32 %v1918, 0.044715
    %v1983 = vmul.f32 %v1919, 0.044715
    %v1984 = vmul.f32 %v1920, 0.044715
    %v1985 = vmul.f32 %v1921, 0.044715
    %v1986 = vmul.f32 %v1922, 0.044715
    %v1987 = vmul.f32 %v1923, 0.044715
    %v1988 = vmul.f32 %v1924, 0.044715
    %v1989 = vmul.f32 %v1925, 0.044715
    %v1990 = vmul.f32 %v1926, 0.044715
    %v1991 = vmul.f32 %v1927, 0.044715
    %v1992 = vmul.f32 %v1928, 0.044715
    %v1993 = vmul.f32 %v1929, 0.044715
    %v1994 = vmul.f32 %v1930, 0.044715
    %v1995 = vmul.f32 %v1931, 0.044715
    %v1996 = vmul.f32 %v1932, 0.044715
    %v1997 = vmul.f32 %v1933, 0.044715
    %v1998 = vmul.f32 %v1934, 0.044715
    %v1999 = vmul.f32 %v1935, 0.044715
    %v2000 = vmul.f32 %v1936, 0.044715
    %v2001 = vmul.f32 %v1937, 0.044715
    %v2002 = vmul.f32 %v1938, 0.044715
    %v2003 = vmul.f32 %v1939, 0.044715
    %v2004 = vmul.f32 %v1940, 0.044715
    %v2005 = vmul.f32 %v1941, 0.044715
    %v2006 = vmul.f32 %v1942, 0.044715
    %v2007 = vmul.f32 %v1943, 0.044715
    %v2008 = vmul.f32 %v1944, 0.044715
    %v2009 = vadd.f32 %v1595, %v1945
    %v2010 = vadd.f32 %v1624, %v1946
    %v2011 = vadd.f32 %v1653, %v1947
    %v2012 = vadd.f32 %v1682, %v1948
    %v2013 = vadd.f32 %v1711, %v1949
    %v2014 = vadd.f32 %v1740, %v1950
    %v2015 = vadd.f32 %v1769, %v1951
    %v2016 = vadd.f32 %v1798, %v1952
    %v2017 = vadd.f32 %v1597, %v1953
    %v2018 = vadd.f32 %v1626, %v1954
    %v2019 = vadd.f32 %v1655, %v1955
    %v2020 = vadd.f32 %v1684, %v1956
    %v2021 = vadd.f32 %v1713, %v1957
    %v2022 = vadd.f32 %v1742, %v1958
    %v2023 = vadd.f32 %v1771, %v1959
    %v2024 = vadd.f32 %v1800, %v1960
    %v2025 = vadd.f32 %v1600, %v1961
    %v2026 = vadd.f32 %v1629, %v1962
    %v2027 = vadd.f32 %v1658, %v1963
    %v2028 = vadd.f32 %v1687, %v1964
    %v2029 = vadd.f32 %v1716, %v1965
    %v2030 = vadd.f32 %v1745, %v1966
    %v2031 = vadd.f32 %v1774, %v1967
    %v2032 = vadd.f32 %v1803, %v1968
    %v2033 = vadd.f32 %v1602, %v1969
    %v2034 = vadd.f32 %v1631, %v1970
    %v2035 = vadd.f32 %v1660, %v1971
    %v2036 = vadd.f32 %v1689, %v1972
    %v2037 = vadd.f32 %v1718, %v1973
    %v2038 = vadd.f32 %v1747, %v1974
    %v2039 = vadd.f32 %v1776, %v1975
    %v2040 = vadd.f32 %v1805, %v1976
    %v2041 = vadd.f32 %v1605, %v1977
    %v2042 = vadd.f32 %v1634, %v1978
    %v2043 = vadd.f32 %v1663, %v1979
    %v2044 = vadd.f32 %v1692, %v1980
    %v2045 = vadd.f32 %v1721, %v1981
    %v2046 = vadd.f32 %v1750, %v1982
    %v2047 = vadd.f32 %v1779, %v1983
    %v2048 = vadd.f32 %v1808, %v1984
    %v2049 = vadd.f32 %v1607, %v1985
    %v2050 = vadd.f32 %v1636, %v1986
    %v2051 = vadd.f32 %v1665, %v1987
    %v2052 = vadd.f32 %v1694, %v1988
    %v2053 = vadd.f32 %v1723, %v1989
    %v2054 = vadd.f32 %v1752, %v1990
    %v2055 = vadd.f32 %v1781, %v1991
    %v2056 = vadd.f32 %v1810, %v1992
    %v2057 = vadd.f32 %v1610, %v1993
    %v2058 = vadd.f32 %v1639, %v1994
    %v2059 = vadd.f32 %v1668, %v1995
    %v2060 = vadd.f32 %v1697, %v1996
    %v2061 = vadd.f32 %v1726, %v1997
    %v2062 = vadd.f32 %v1755, %v1998
    %v2063 = vadd.f32 %v1784, %v1999
    %v2064 = vadd.f32 %v1813, %v2000
    %v2065 = vadd.f32 %v1612, %v2001
    %v2066 = vadd.f32 %v1641, %v2002
    %v2067 = vadd.f32 %v1670, %v2003
    %v2068 = vadd.f32 %v1699, %v2004
    %v2069 = vadd.f32 %v1728, %v2005
    %v2070 = vadd.f32 %v1757, %v2006
    %v2071 = vadd.f32 %v1786, %v2007
    %v2072 = vadd.f32 %v1815, %v2008
    %v2073 = vmul.f32 %v2009, 0.7978846
    %v2074 = vmul.f32 %v2010, 0.7978846
    %v2075 = vmul.f32 %v2011, 0.7978846
    %v2076 = vmul.f32 %v2012, 0.7978846
    %v2077 = vmul.f32 %v2013, 0.7978846
    %v2078 = vmul.f32 %v2014, 0.7978846
    %v2079 = vmul.f32 %v2015, 0.7978846
    %v2080 = vmul.f32 %v2016, 0.7978846
    %v2081 = vmul.f32 %v2017, 0.7978846
    %v2082 = vmul.f32 %v2018, 0.7978846
    %v2083 = vmul.f32 %v2019, 0.7978846
    %v2084 = vmul.f32 %v2020, 0.7978846
    %v2085 = vmul.f32 %v2021, 0.7978846
    %v2086 = vmul.f32 %v2022, 0.7978846
    %v2087 = vmul.f32 %v2023, 0.7978846
    %v2088 = vmul.f32 %v2024, 0.7978846
    %v2089 = vmul.f32 %v2025, 0.7978846
    %v2090 = vmul.f32 %v2026, 0.7978846
    %v2091 = vmul.f32 %v2027, 0.7978846
    %v2092 = vmul.f32 %v2028, 0.7978846
    %v2093 = vmul.f32 %v2029, 0.7978846
    %v2094 = vmul.f32 %v2030, 0.7978846
    %v2095 = vmul.f32 %v2031, 0.7978846
    %v2096 = vmul.f32 %v2032, 0.7978846
    %v2097 = vmul.f32 %v2033, 0.7978846
    %v2098 = vmul.f32 %v2034, 0.7978846
    %v2099 = vmul.f32 %v2035, 0.7978846
    %v2100 = vmul.f32 %v2036, 0.7978846
    %v2101 = vmul.f32 %v2037, 0.7978846
    %v2102 = vmul.f32 %v2038, 0.7978846
    %v2103 = vmul.f32 %v2039, 0.7978846
    %v2104 = vmul.f32 %v2040, 0.7978846
    %v2105 = vmul.f32 %v2041, 0.7978846
    %v2106 = vmul.f32 %v2042, 0.7978846
    %v2107 = vmul.f32 %v2043, 0.7978846
    %v2108 = vmul.f32 %v2044, 0.7978846
    %v2109 = vmul.f32 %v2045, 0.7978846
    %v2110 = vmul.f32 %v2046, 0.7978846
    %v2111 = vmul.f32 %v2047, 0.7978846
    %v2112 = vmul.f32 %v2048, 0.7978846
    %v2113 = vmul.f32 %v2049, 0.7978846
    %v2114 = vmul.f32 %v2050, 0.7978846
    %v2115 = vmul.f32 %v2051, 0.7978846
    %v2116 = vmul.f32 %v2052, 0.7978846
    %v2117 = vmul.f32 %v2053, 0.7978846
    %v2118 = vmul.f32 %v2054, 0.7978846
    %v2119 = vmul.f32 %v2055, 0.7978846
    %v2120 = vmul.f32 %v2056, 0.7978846
    %v2121 = vmul.f32 %v2057, 0.7978846
    %v2122 = vmul.f32 %v2058, 0.7978846
    %v2123 = vmul.f32 %v2059, 0.7978846
    %v2124 = vmul.f32 %v2060, 0.7978846
    %v2125 = vmul.f32 %v2061, 0.7978846
    %v2126 = vmul.f32 %v2062, 0.7978846
    %v2127 = vmul.f32 %v2063, 0.7978846
    %v2128 = vmul.f32 %v2064, 0.7978846
    %v2129 = vmul.f32 %v2065, 0.7978846
    %v2130 = vmul.f32 %v2066, 0.7978846
    %v2131 = vmul.f32 %v2067, 0.7978846
    %v2132 = vmul.f32 %v2068, 0.7978846
    %v2133 = vmul.f32 %v2069, 0.7978846
    %v2134 = vmul.f32 %v2070, 0.7978846
    %v2135 = vmul.f32 %v2071, 0.7978846
    %v2136 = vmul.f32 %v2072, 0.7978846
    %v2137 = vtanh.pop %v2073
    %v2138 = vtanh.pop %v2074
    %v2139 = vtanh.pop %v2075
    %v2140 = vtanh.pop %v2076
    %v2141 = vtanh.pop %v2077
    %v2142 = vtanh.pop %v2078
    %v2143 = vtanh.pop %v2079
    %v2144 = vtanh.pop %v2080
    %v2145 = vtanh.pop %v2081
    %v2146 = vtanh.pop %v2082
    %v2147 = vtanh.pop %v2083
    %v2148 = vtanh.pop %v2084
    %v2149 = vtanh.pop %v2085
    %v2150 = vtanh.pop %v2086
    %v2151 = vtanh.pop %v2087
    %v2152 = vtanh.pop %v2088
    %v2153 = vtanh.pop %v2089
    %v2154 = vtanh.pop %v2090
    %v2155 = vtanh.pop %v2091
    %v2156 = vtanh.pop %v2092
    %v2157 = vtanh.pop %v2093
    %v2158 = vtanh.pop %v2094
    %v2159 = vtanh.pop %v2095
    %v2160 = vtanh.pop %v2096
    %v2161 = vtanh.pop %v2097
    %v2162 = vtanh.pop %v2098
    %v2163 = vtanh.pop %v2099
    %v2164 = vtanh.pop %v2100
    %v2165 = vtanh.pop %v2101
    %v2166 = vtanh.pop %v2102
    %v2167 = vtanh.pop %v2103
    %v2168 = vtanh.pop %v2104
    %v2169 = vtanh.pop %v2105
    %v2170 = vtanh.pop %v2106
    %v2171 = vtanh.pop %v2107
    %v2172 = vtanh.pop %v2108
    %v2173 = vtanh.pop %v2109
    %v2174 = vtanh.pop %v2110
    %v2175 = vtanh.pop %v2111
    %v2176 = vtanh.pop %v2112
    %v2177 = vtanh.pop %v2113
    %v2178 = vtanh.pop %v2114
    %v2179 = vtanh.pop %v2115
    %v2180 = vtanh.pop %v2116
    %v2181 = vtanh.pop %v2117
    %v2182 = vtanh.pop %v2118
    %v2183 = vtanh.pop %v2119
    %v2184 = vtanh.pop %v2120
    %v2185 = vtanh.pop %v2121
    %v2186 = vtanh.pop %v2122
    %v2187 = vtanh.pop %v2123
    %v2188 = vtanh.pop %v2124
    %v2189 = vtanh.pop %v2125
    %v2190 = vtanh.pop %v2126
    %v2191 = vtanh.pop %v2127
    %v2192 = vtanh.pop %v2128
    %v2193 = vtanh.pop %v2129
    %v2194 = vtanh.pop %v2130
    %v2195 = vtanh.pop %v2131
    %v2196 = vtanh.pop %v2132
    %v2197 = vtanh.pop %v2133
    %v2198 = vtanh.pop %v2134
    %v2199 = vtanh.pop %v2135
    %v2200 = vtanh.pop %v2136
    %v2201 = vadd.f32 %v2137, 1.0
    %v2202 = vadd.f32 %v2138, 1.0
    %v2203 = vadd.f32 %v2139, 1.0
    %v2204 = vadd.f32 %v2140, 1.0
    %v2205 = vadd.f32 %v2141, 1.0
    %v2206 = vadd.f32 %v2142, 1.0
    %v2207 = vadd.f32 %v2143, 1.0
    %v2208 = vadd.f32 %v2144, 1.0
    %v2209 = vadd.f32 %v2145, 1.0
    %v2210 = vadd.f32 %v2146, 1.0
    %v2211 = vadd.f32 %v2147, 1.0
    %v2212 = vadd.f32 %v2148, 1.0
    %v2213 = vadd.f32 %v2149, 1.0
    %v2214 = vadd.f32 %v2150, 1.0
    %v2215 = vadd.f32 %v2151, 1.0
    %v2216 = vadd.f32 %v2152, 1.0
    %v2217 = vadd.f32 %v2153, 1.0
    %v2218 = vadd.f32 %v2154, 1.0
    %v2219 = vadd.f32 %v2155, 1.0
    %v2220 = vadd.f32 %v2156, 1.0
    %v2221 = vadd.f32 %v2157, 1.0
    %v2222 = vadd.f32 %v2158, 1.0
    %v2223 = vadd.f32 %v2159, 1.0
    %v2224 = vadd.f32 %v2160, 1.0
    %v2225 = vadd.f32 %v2161, 1.0
    %v2226 = vadd.f32 %v2162, 1.0
    %v2227 = vadd.f32 %v2163, 1.0
    %v2228 = vadd.f32 %v2164, 1.0
    %v2229 = vadd.f32 %v2165, 1.0
    %v2230 = vadd.f32 %v2166, 1.0
    %v2231 = vadd.f32 %v2167, 1.0
    %v2232 = vadd.f32 %v2168, 1.0
    %v2233 = vadd.f32 %v2169, 1.0
    %v2234 = vadd.f32 %v2170, 1.0
    %v2235 = vadd.f32 %v2171, 1.0
    %v2236 = vadd.f32 %v2172, 1.0
    %v2237 = vadd.f32 %v2173, 1.0
    %v2238 = vadd.f32 %v2174, 1.0
    %v2239 = vadd.f32 %v2175, 1.0
    %v2240 = vadd.f32 %v2176, 1.0
    %v2241 = vadd.f32 %v2177, 1.0
    %v2242 = vadd.f32 %v2178, 1.0
    %v2243 = vadd.f32 %v2179, 1.0
    %v2244 = vadd.f32 %v2180, 1.0
    %v2245 = vadd.f32 %v2181, 1.0
    %v2246 = vadd.f32 %v2182, 1.0
    %v2247 = vadd.f32 %v2183, 1.0
    %v2248 = vadd.f32 %v2184, 1.0
    %v2249 = vadd.f32 %v2185, 1.0
    %v2250 = vadd.f32 %v2186, 1.0
    %v2251 = vadd.f32 %v2187, 1.0
    %v2252 = vadd.f32 %v2188, 1.0
    %v2253 = vadd.f32 %v2189, 1.0
    %v2254 = vadd.f32 %v2190, 1.0
    %v2255 = vadd.f32 %v2191, 1.0
    %v2256 = vadd.f32 %v2192, 1.0
    %v2257 = vadd.f32 %v2193, 1.0
    %v2258 = vadd.f32 %v2194, 1.0
    %v2259 = vadd.f32 %v2195, 1.0
    %v2260 = vadd.f32 %v2196, 1.0
    %v2261 = vadd.f32 %v2197, 1.0
    %v2262 = vadd.f32 %v2198, 1.0
    %v2263 = vadd.f32 %v2199, 1.0
    %v2264 = vadd.f32 %v2200, 1.0
    %v2265 = vmul.f32 %v2201, 0.5
    %v2266 = vmul.f32 %v2202, 0.5
    %v2267 = vmul.f32 %v2203, 0.5
    %v2268 = vmul.f32 %v2204, 0.5
    %v2269 = vmul.f32 %v2205, 0.5
    %v2270 = vmul.f32 %v2206, 0.5
    %v2271 = vmul.f32 %v2207, 0.5
    %v2272 = vmul.f32 %v2208, 0.5
    %v2273 = vmul.f32 %v2209, 0.5
    %v2274 = vmul.f32 %v2210, 0.5
    %v2275 = vmul.f32 %v2211, 0.5
    %v2276 = vmul.f32 %v2212, 0.5
    %v2277 = vmul.f32 %v2213, 0.5
    %v2278 = vmul.f32 %v2214, 0.5
    %v2279 = vmul.f32 %v2215, 0.5
    %v2280 = vmul.f32 %v2216, 0.5
    %v2281 = vmul.f32 %v2217, 0.5
    %v2282 = vmul.f32 %v2218, 0.5
    %v2283 = vmul.f32 %v2219, 0.5
    %v2284 = vmul.f32 %v2220, 0.5
    %v2285 = vmul.f32 %v2221, 0.5
    %v2286 = vmul.f32 %v2222, 0.5
    %v2287 = vmul.f32 %v2223, 0.5
    %v2288 = vmul.f32 %v2224, 0.5
    %v2289 = vmul.f32 %v2225, 0.5
    %v2290 = vmul.f32 %v2226, 0.5
    %v2291 = vmul.f32 %v2227, 0.5
    %v2292 = vmul.f32 %v2228, 0.5
    %v2293 = vmul.f32 %v2229, 0.5
    %v2294 = vmul.f32 %v2230, 0.5
    %v2295 = vmul.f32 %v2231, 0.5
    %v2296 = vmul.f32 %v2232, 0.5
    %v2297 = vmul.f32 %v2233, 0.5
    %v2298 = vmul.f32 %v2234, 0.5
    %v2299 = vmul.f32 %v2235, 0.5
    %v2300 = vmul.f32 %v2236, 0.5
    %v2301 = vmul.f32 %v2237, 0.5
    %v2302 = vmul.f32 %v2238, 0.5
    %v2303 = vmul.f32 %v2239, 0.5
    %v2304 = vmul.f32 %v2240, 0.5
    %v2305 = vmul.f32 %v2241, 0.5
    %v2306 = vmul.f32 %v2242, 0.5
    %v2307 = vmul.f32 %v2243, 0.5
    %v2308 = vmul.f32 %v2244, 0.5
    %v2309 = vmul.f32 %v2245, 0.5
    %v2310 = vmul.f32 %v2246, 0.5
    %v2311 = vmul.f32 %v2247, 0.5
    %v2312 = vmul.f32 %v2248, 0.5
    %v2313 = vmul.f32 %v2249, 0.5
    %v2314 = vmul.f32 %v2250, 0.5
    %v2315 = vmul.f32 %v2251, 0.5
    %v2316 = vmul.f32 %v2252, 0.5
    %v2317 = vmul.f32 %v2253, 0.5
    %v2318 = vmul.f32 %v2254, 0.5
    %v2319 = vmul.f32 %v2255, 0.5
    %v2320 = vmul.f32 %v2256, 0.5
    %v2321 = vmul.f32 %v2257, 0.5
    %v2322 = vmul.f32 %v2258, 0.5
    %v2323 = vmul.f32 %v2259, 0.5
    %v2324 = vmul.f32 %v2260, 0.5
    %v2325 = vmul.f32 %v2261, 0.5
    %v2326 = vmul.f32 %v2262, 0.5
    %v2327 = vmul.f32 %v2263, 0.5
    %v2328 = vmul.f32 %v2264, 0.5
    %v2329 = vmul.f32 %v1595, %v2265
    %v2330 = vmul.f32 %v1624, %v2266
    %v2331 = vmul.f32 %v1653, %v2267
    %v2332 = vmul.f32 %v1682, %v2268
    %v2333 = vmul.f32 %v1711, %v2269
    %v2334 = vmul.f32 %v1740, %v2270
    %v2335 = vmul.f32 %v1769, %v2271
    %v2336 = vmul.f32 %v1798, %v2272
    %v2337 = vmul.f32 %v1597, %v2273
    %v2338 = vmul.f32 %v1626, %v2274
    %v2339 = vmul.f32 %v1655, %v2275
    %v2340 = vmul.f32 %v1684, %v2276
    %v2341 = vmul.f32 %v1713, %v2277
    %v2342 = vmul.f32 %v1742, %v2278
    %v2343 = vmul.f32 %v1771, %v2279
    %v2344 = vmul.f32 %v1800, %v2280
    %v2345 = vmul.f32 %v1600, %v2281
    %v2346 = vmul.f32 %v1629, %v2282
    %v2347 = vmul.f32 %v1658, %v2283
    %v2348 = vmul.f32 %v1687, %v2284
    %v2349 = vmul.f32 %v1716, %v2285
    %v2350 = vmul.f32 %v1745, %v2286
    %v2351 = vmul.f32 %v1774, %v2287
    %v2352 = vmul.f32 %v1803, %v2288
    %v2353 = vmul.f32 %v1602, %v2289
    %v2354 = vmul.f32 %v1631, %v2290
    %v2355 = vmul.f32 %v1660, %v2291
    %v2356 = vmul.f32 %v1689, %v2292
    %v2357 = vmul.f32 %v1718, %v2293
    %v2358 = vmul.f32 %v1747, %v2294
    %v2359 = vmul.f32 %v1776, %v2295
    %v2360 = vmul.f32 %v1805, %v2296
    %v2361 = vmul.f32 %v1605, %v2297
    %v2362 = vmul.f32 %v1634, %v2298
    %v2363 = vmul.f32 %v1663, %v2299
    %v2364 = vmul.f32 %v1692, %v2300
    %v2365 = vmul.f32 %v1721, %v2301
    %v2366 = vmul.f32 %v1750, %v2302
    %v2367 = vmul.f32 %v1779, %v2303
    %v2368 = vmul.f32 %v1808, %v2304
    %v2369 = vmul.f32 %v1607, %v2305
    %v2370 = vmul.f32 %v1636, %v2306
    %v2371 = vmul.f32 %v1665, %v2307
    %v2372 = vmul.f32 %v1694, %v2308
    %v2373 = vmul.f32 %v1723, %v2309
    %v2374 = vmul.f32 %v1752, %v2310
    %v2375 = vmul.f32 %v1781, %v2311
    %v2376 = vmul.f32 %v1810, %v2312
    %v2377 = vmul.f32 %v1610, %v2313
    %v2378 = vmul.f32 %v1639, %v2314
    %v2379 = vmul.f32 %v1668, %v2315
    %v2380 = vmul.f32 %v1697, %v2316
    %v2381 = vmul.f32 %v1726, %v2317
    %v2382 = vmul.f32 %v1755, %v2318
    %v2383 = vmul.f32 %v1784, %v2319
    %v2384 = vmul.f32 %v1813, %v2320
    %v2385 = vmul.f32 %v1612, %v2321
    %v2386 = vmul.f32 %v1641, %v2322
    %v2387 = vmul.f32 %v1670, %v2323
    %v2388 = vmul.f32 %v1699, %v2324
    %v2389 = vmul.f32 %v1728, %v2325
    %v2390 = vmul.f32 %v1757, %v2326
    %v2391 = vmul.f32 %v1786, %v2327
    %v2392 = vmul.f32 %v1815, %v2328
    %v2393 = vld [vmem:[%s5] sm:$0xf]
    %v2394 = vld [vmem:[%s5 + $0x4] sm:$0xf]
    %v2395 = vld [vmem:[%s5 + $0x8] sm:$0xf]
    %v2396 = vld [vmem:[%s5 + $0xc] sm:$0xf]
    %v2397 = vld [vmem:[%s5 + $0x10] sm:$0xf]
    %v2398 = vld [vmem:[%s5 + $0x14] sm:$0xf]
    %v2399 = vld [vmem:[%s5 + $0x18] sm:$0xf]
    %v2400 = vld [vmem:[%s5 + $0x1c] sm:$0xf]
    %v2401 = vld [vmem:[%s5 + $0x20] sm:$0xf]
    %v2402 = vld [vmem:[%s5 + $0x24] sm:$0xf]
    %v2403 = vld [vmem:[%s5 + $0x28] sm:$0xf]
    %v2404 = vld [vmem:[%s5 + $0x2c] sm:$0xf]
    %v2405 = vld [vmem:[%s5 + $0x30] sm:$0xf]
    %v2406 = vld [vmem:[%s5 + $0x34] sm:$0xf]
    %v2407 = vld [vmem:[%s5 + $0x38] sm:$0xf]
    %v2408 = vld [vmem:[%s5 + $0x3c] sm:$0xf]
    %v2409 = vpack.c.bf16 %v2337, %v2329
    %v2410 = vpack.c.bf16 %v2338, %v2330
    %v2411 = vpack.c.bf16 %v2339, %v2331
    %v2412 = vpack.c.bf16 %v2340, %v2332
    %v2413 = vpack.c.bf16 %v2341, %v2333
    %v2414 = vpack.c.bf16 %v2342, %v2334
    %v2415 = vpack.c.bf16 %v2343, %v2335
    %v2416 = vpack.c.bf16 %v2344, %v2336
    %v2417 = vpack.c.bf16 %v2353, %v2345
    %v2418 = vpack.c.bf16 %v2354, %v2346
    %v2419 = vpack.c.bf16 %v2355, %v2347
    %v2420 = vpack.c.bf16 %v2356, %v2348
    %v2421 = vpack.c.bf16 %v2357, %v2349
    %v2422 = vpack.c.bf16 %v2358, %v2350
    %v2423 = vpack.c.bf16 %v2359, %v2351
    %v2424 = vpack.c.bf16 %v2360, %v2352
    %v2425 = vpack.c.bf16 %v2369, %v2361
    %v2426 = vpack.c.bf16 %v2370, %v2362
    %v2427 = vpack.c.bf16 %v2371, %v2363
    %v2428 = vpack.c.bf16 %v2372, %v2364
    %v2429 = vpack.c.bf16 %v2373, %v2365
    %v2430 = vpack.c.bf16 %v2374, %v2366
    %v2431 = vpack.c.bf16 %v2375, %v2367
    %v2432 = vpack.c.bf16 %v2376, %v2368
    %v2433 = vpack.c.bf16 %v2385, %v2377
    %v2434 = vpack.c.bf16 %v2386, %v2378
    %v2435 = vpack.c.bf16 %v2387, %v2379
    %v2436 = vpack.c.bf16 %v2388, %v2380
    %v2437 = vpack.c.bf16 %v2389, %v2381
    %v2438 = vpack.c.bf16 %v2390, %v2382
    %v2439 = vpack.c.bf16 %v2391, %v2383
    %v2440 = vpack.c.bf16 %v2392, %v2384
    %v2441 = vld [vmem:[%s6] sm:$0xff]
    %v2442 = vld [vmem:[%s6 + $0x8] sm:$0xff]
    %v2443 = vld [vmem:[%s6 + $0x10] sm:$0xff]
    %v2444 = vld [vmem:[%s6 + $0x18] sm:$0xff]
    %v2445 = vld [vmem:[%s6 + $0x20] sm:$0xff]
    %v2446 = vld [vmem:[%s6 + $0x28] sm:$0xff]
    %v2447 = vld [vmem:[%s6 + $0x30] sm:$0xff]
    %v2448 = vld [vmem:[%s6 + $0x38] sm:$0xff]
    %v2449 = vld [vmem:[%s6 + $0x40] sm:$0xff]
    %v2450 = vld [vmem:[%s6 + $0x48] sm:$0xff]
    %v2451 = vld [vmem:[%s6 + $0x50] sm:$0xff]
    %v2452 = vld [vmem:[%s6 + $0x58] sm:$0xff]
    %v2453 = vld [vmem:[%s6 + $0x60] sm:$0xff]
    %v2454 = vld [vmem:[%s6 + $0x68] sm:$0xff]
    %v2455 = vld [vmem:[%s6 + $0x70] sm:$0xff]
    %v2456 = vld [vmem:[%s6 + $0x78] sm:$0xff]
    %2458 = vset.pattern.permute.xlu0 0
    %2459 = vperm.xlu0 %2458, %v2441
    %v2460 = vpop.permute.xlu0 %2459
    %2463 = vset.pattern.permute.xlu0 0
    %2464 = vperm.xlu0 %2463, %v2442
    %v2465 = vpop.permute.xlu0 %2464
    %2468 = vset.pattern.permute.xlu0 0
    %2469 = vperm.xlu0 %2468, %v2443
    %v2470 = vpop.permute.xlu0 %2469
    %2473 = vset.pattern.permute.xlu0 0
    %2474 = vperm.xlu0 %2473, %v2444
    %v2475 = vpop.permute.xlu0 %2474
    %2478 = vset.pattern.permute.xlu0 0
    %2479 = vperm.xlu0 %2478, %v2445
    %v2480 = vpop.permute.xlu0 %2479
    %2483 = vset.pattern.permute.xlu0 0
    %2484 = vperm.xlu0 %2483, %v2446
    %v2485 = vpop.permute.xlu0 %2484
    %2488 = vset.pattern.permute.xlu0 0
    %2489 = vperm.xlu0 %2488, %v2447
    %v2490 = vpop.permute.xlu0 %2489
    %2493 = vset.pattern.permute.xlu0 0
    %2494 = vperm.xlu0 %2493, %v2448
    %v2495 = vpop.permute.xlu0 %2494
    %2498 = vset.pattern.permute.xlu0 0
    %2499 = vperm.xlu0 %2498, %v2449
    %v2500 = vpop.permute.xlu0 %2499
    %2503 = vset.pattern.permute.xlu0 0
    %2504 = vperm.xlu0 %2503, %v2450
    %v2505 = vpop.permute.xlu0 %2504
    %2508 = vset.pattern.permute.xlu0 0
    %2509 = vperm.xlu0 %2508, %v2451
    %v2510 = vpop.permute.xlu0 %2509
    %2513 = vset.pattern.permute.xlu0 0
    %2514 = vperm.xlu0 %2513, %v2452
    %v2515 = vpop.permute.xlu0 %2514
    %2518 = vset.pattern.permute.xlu0 0
    %2519 = vperm.xlu0 %2518, %v2453
    %v2520 = vpop.permute.xlu0 %2519
    %2523 = vset.pattern.permute.xlu0 0
    %2524 = vperm.xlu0 %2523, %v2454
    %v2525 = vpop.permute.xlu0 %2524
    %2528 = vset.pattern.permute.xlu0 0
    %2529 = vperm.xlu0 %2528, %v2455
    %v2530 = vpop.permute.xlu0 %2529
    %2533 = vset.pattern.permute.xlu0 0
    %2534 = vperm.xlu0 %2533, %v2456
    %v2535 = vpop.permute.xlu0 %2534
    %v2553 = vunpack.c.l.b16 %v2393
    %v2554 = vunpack.c.l.b16 %v2394
    %v2555 = vunpack.c.l.b16 %v2395
    %v2556 = vunpack.c.l.b16 %v2396
    %v2557 = vunpack.c.l.b16 %v2397
    %v2558 = vunpack.c.l.b16 %v2398
    %v2559 = vunpack.c.l.b16 %v2399
    %v2560 = vunpack.c.l.b16 %v2400
    %v2561 = vunpack.c.l.b16 %v2401
    %v2562 = vunpack.c.l.b16 %v2402
    %v2563 = vunpack.c.l.b16 %v2403
    %v2564 = vunpack.c.l.b16 %v2404
    %v2565 = vunpack.c.l.b16 %v2405
    %v2566 = vunpack.c.l.b16 %v2406
    %v2567 = vunpack.c.l.b16 %v2407
    %v2568 = vunpack.c.l.b16 %v2408
    %v2569 = vpack.c.b16 %v2554, %v2553
    %v2570 = vpack.c.b16 %v2556, %v2555
    %v2571 = vpack.c.b16 %v2558, %v2557
    %v2572 = vpack.c.b16 %v2560, %v2559
    %v2573 = vpack.c.b16 %v2562, %v2561
    %v2574 = vpack.c.b16 %v2564, %v2563
    %v2575 = vpack.c.b16 %v2566, %v2565
    %v2576 = vpack.c.b16 %v2568, %v2567
    %v2578 = vsel %vm1572, %v2569, 0
    %v2581 = vsel %vm1572, %v2570, 0
    %v2584 = vsel %vm1572, %v2571, 0
    %v2587 = vsel %vm1572, %v2572, 0
    %v2590 = vsel %vm1572, %v2573, 0
    %v2593 = vsel %vm1572, %v2574, 0
    %v2596 = vsel %vm1572, %v2575, 0
    %v2599 = vsel %vm1572, %v2576, 0
    %2601 = vmatpush.bf16.msra.mxu0 0
    %2602 = vmatpush.bf16.msra.mxu0 0
    %2603 = vmatpush.bf16.msra.mxu0 0
    %2604 = vmatpush.bf16.msra.mxu0 0
    %2605 = vmatpush.bf16.msra.mxu0 %v2433
    %2606 = vmatpush.bf16.msra.mxu0 %v2425
    %2607 = vmatpush.bf16.msra.mxu0 %v2417
    %2608 = vmatpush.bf16.msra.mxu0 %v2409
    %2609 = vmatmul.bf16.gmra.mxu0 %v2578
    %v2610 = vpop.f32.mrf.mxu0
    %v2611 = vadd.f32 %v2460, %v2610
    %v2612 = vpop.f32.mrf.mxu0
    %v2613 = vadd.f32 %v2465, %v2612
    %2614 = vmatmul.bf16.gmra.mxu0 %v2581
    %v2615 = vpop.f32.mrf.mxu0
    %v2616 = vadd.f32 %v2470, %v2615
    %v2617 = vpop.f32.mrf.mxu0
    %v2618 = vadd.f32 %v2475, %v2617
    %2619 = vmatmul.bf16.gmra.mxu0 %v2584
    %v2620 = vpop.f32.mrf.mxu0
    %v2621 = vadd.f32 %v2480, %v2620
    %v2622 = vpop.f32.mrf.mxu0
    %v2623 = vadd.f32 %v2485, %v2622
    %2624 = vmatmul.bf16.gmra.mxu0 %v2587
    %v2625 = vpop.f32.mrf.mxu0
    %v2626 = vadd.f32 %v2490, %v2625
    %v2627 = vpop.f32.mrf.mxu0
    %v2628 = vadd.f32 %v2495, %v2627
    %2629 = vmatmul.bf16.gmra.mxu0 %v2590
    %v2630 = vpop.f32.mrf.mxu0
    %v2631 = vadd.f32 %v2500, %v2630
    %v2632 = vpop.f32.mrf.mxu0
    %v2633 = vadd.f32 %v2505, %v2632
    %2634 = vmatmul.bf16.gmra.mxu0 %v2593
    %v2635 = vpop.f32.mrf.mxu0
    %v2636 = vadd.f32 %v2510, %v2635
    %v2637 = vpop.f32.mrf.mxu0
    %v2638 = vadd.f32 %v2515, %v2637
    %2639 = vmatmul.bf16.gmra.mxu0 %v2596
    %v2640 = vpop.f32.mrf.mxu0
    %v2641 = vadd.f32 %v2520, %v2640
    %v2642 = vpop.f32.mrf.mxu0
    %v2643 = vadd.f32 %v2525, %v2642
    %2644 = vmatmul.bf16.gmra.mxu0 %v2599
    %v2645 = vpop.f32.mrf.mxu0
    %v2646 = vadd.f32 %v2530, %v2645
    %v2647 = vpop.f32.mrf.mxu0
    %v2648 = vadd.f32 %v2535, %v2647
    %2649 = vdwg.mxu0
    %2650 = vmatpush.bf16.msra.mxu0 0
    %2651 = vmatpush.bf16.msra.mxu0 0
    %2652 = vmatpush.bf16.msra.mxu0 0
    %2653 = vmatpush.bf16.msra.mxu0 0
    %2654 = vmatpush.bf16.msra.mxu0 %v2434
    %2655 = vmatpush.bf16.msra.mxu0 %v2426
    %2656 = vmatpush.bf16.msra.mxu0 %v2418
    %2657 = vmatpush.bf16.msra.mxu0 %v2410
    %2658 = vmatmul.bf16.gmra.mxu0 %v2578
    %v2659 = vpop.f32.mrf.mxu0
    %v2660 = vadd.f32 %v2460, %v2659
    %v2661 = vpop.f32.mrf.mxu0
    %v2662 = vadd.f32 %v2465, %v2661
    %2663 = vmatmul.bf16.gmra.mxu0 %v2581
    %v2664 = vpop.f32.mrf.mxu0
    %v2665 = vadd.f32 %v2470, %v2664
    %v2666 = vpop.f32.mrf.mxu0
    %v2667 = vadd.f32 %v2475, %v2666
    %2668 = vmatmul.bf16.gmra.mxu0 %v2584
    %v2669 = vpop.f32.mrf.mxu0
    %v2670 = vadd.f32 %v2480, %v2669
    %v2671 = vpop.f32.mrf.mxu0
    %v2672 = vadd.f32 %v2485, %v2671
    %2673 = vmatmul.bf16.gmra.mxu0 %v2587
    %v2674 = vpop.f32.mrf.mxu0
    %v2675 = vadd.f32 %v2490, %v2674
    %v2676 = vpop.f32.mrf.mxu0
    %v2677 = vadd.f32 %v2495, %v2676
    %2678 = vmatmul.bf16.gmra.mxu0 %v2590
    %v2679 = vpop.f32.mrf.mxu0
    %v2680 = vadd.f32 %v2500, %v2679
    %v2681 = vpop.f32.mrf.mxu0
    %v2682 = vadd.f32 %v2505, %v2681
    %2683 = vmatmul.bf16.gmra.mxu0 %v2593
    %v2684 = vpop.f32.mrf.mxu0
    %v2685 = vadd.f32 %v2510, %v2684
    %v2686 = vpop.f32.mrf.mxu0
    %v2687 = vadd.f32 %v2515, %v2686
    %2688 = vmatmul.bf16.gmra.mxu0 %v2596
    %v2689 = vpop.f32.mrf.mxu0
    %v2690 = vadd.f32 %v2520, %v2689
    %v2691 = vpop.f32.mrf.mxu0
    %v2692 = vadd.f32 %v2525, %v2691
    %2693 = vmatmul.bf16.gmra.mxu0 %v2599
    %v2694 = vpop.f32.mrf.mxu0
    %v2695 = vadd.f32 %v2530, %v2694
    %v2696 = vpop.f32.mrf.mxu0
    %v2697 = vadd.f32 %v2535, %v2696
    %2698 = vdwg.mxu0
    %2699 = vmatpush.bf16.msra.mxu0 0
    %2700 = vmatpush.bf16.msra.mxu0 0
    %2701 = vmatpush.bf16.msra.mxu0 0
    %2702 = vmatpush.bf16.msra.mxu0 0
    %2703 = vmatpush.bf16.msra.mxu0 %v2435
    %2704 = vmatpush.bf16.msra.mxu0 %v2427
    %2705 = vmatpush.bf16.msra.mxu0 %v2419
    %2706 = vmatpush.bf16.msra.mxu0 %v2411
    %2707 = vmatmul.bf16.gmra.mxu0 %v2578
    %v2708 = vpop.f32.mrf.mxu0
    %v2709 = vadd.f32 %v2460, %v2708
    %v2710 = vpop.f32.mrf.mxu0
    %v2711 = vadd.f32 %v2465, %v2710
    %2712 = vmatmul.bf16.gmra.mxu0 %v2581
    %v2713 = vpop.f32.mrf.mxu0
    %v2714 = vadd.f32 %v2470, %v2713
    %v2715 = vpop.f32.mrf.mxu0
    %v2716 = vadd.f32 %v2475, %v2715
    %2717 = vmatmul.bf16.gmra.mxu0 %v2584
    %v2718 = vpop.f32.mrf.mxu0
    %v2719 = vadd.f32 %v2480, %v2718
    %v2720 = vpop.f32.mrf.mxu0
    %v2721 = vadd.f32 %v2485, %v2720
    %2722 = vmatmul.bf16.gmra.mxu0 %v2587
    %v2723 = vpop.f32.mrf.mxu0
    %v2724 = vadd.f32 %v2490, %v2723
    %v2725 = vpop.f32.mrf.mxu0
    %v2726 = vadd.f32 %v2495, %v2725
    %2727 = vmatmul.bf16.gmra.mxu0 %v2590
    %v2728 = vpop.f32.mrf.mxu0
    %v2729 = vadd.f32 %v2500, %v2728
    %v2730 = vpop.f32.mrf.mxu0
    %v2731 = vadd.f32 %v2505, %v2730
    %2732 = vmatmul.bf16.gmra.mxu0 %v2593
    %v2733 = vpop.f32.mrf.mxu0
    %v2734 = vadd.f32 %v2510, %v2733
    %v2735 = vpop.f32.mrf.mxu0
    %v2736 = vadd.f32 %v2515, %v2735
    %2737 = vmatmul.bf16.gmra.mxu0 %v2596
    %v2738 = vpop.f32.mrf.mxu0
    %v2739 = vadd.f32 %v2520, %v2738
    %v2740 = vpop.f32.mrf.mxu0
    %v2741 = vadd.f32 %v2525, %v2740
    %2742 = vmatmul.bf16.gmra.mxu0 %v2599
    %v2743 = vpop.f32.mrf.mxu0
    %v2744 = vadd.f32 %v2530, %v2743
    %v2745 = vpop.f32.mrf.mxu0
    %v2746 = vadd.f32 %v2535, %v2745
    %2747 = vdwg.mxu0
    %2748 = vmatpush.bf16.msra.mxu0 0
    %2749 = vmatpush.bf16.msra.mxu0 0
    %2750 = vmatpush.bf16.msra.mxu0 0
    %2751 = vmatpush.bf16.msra.mxu0 0
    %2752 = vmatpush.bf16.msra.mxu0 %v2436
    %2753 = vmatpush.bf16.msra.mxu0 %v2428
    %2754 = vmatpush.bf16.msra.mxu0 %v2420
    %2755 = vmatpush.bf16.msra.mxu0 %v2412
    %2756 = vmatmul.bf16.gmra.mxu0 %v2578
    %v2757 = vpop.f32.mrf.mxu0
    %v2758 = vadd.f32 %v2460, %v2757
    %v2759 = vpop.f32.mrf.mxu0
    %v2760 = vadd.f32 %v2465, %v2759
    %2761 = vmatmul.bf16.gmra.mxu0 %v2581
    %v2762 = vpop.f32.mrf.mxu0
    %v2763 = vadd.f32 %v2470, %v2762
    %v2764 = vpop.f32.mrf.mxu0
    %v2765 = vadd.f32 %v2475, %v2764
    %2766 = vmatmul.bf16.gmra.mxu0 %v2584
    %v2767 = vpop.f32.mrf.mxu0
    %v2768 = vadd.f32 %v2480, %v2767
    %v2769 = vpop.f32.mrf.mxu0
    %v2770 = vadd.f32 %v2485, %v2769
    %2771 = vmatmul.bf16.gmra.mxu0 %v2587
    %v2772 = vpop.f32.mrf.mxu0
    %v2773 = vadd.f32 %v2490, %v2772
    %v2774 = vpop.f32.mrf.mxu0
    %v2775 = vadd.f32 %v2495, %v2774
    %2776 = vmatmul.bf16.gmra.mxu0 %v2590
    %v2777 = vpop.f32.mrf.mxu0
    %v2778 = vadd.f32 %v2500, %v2777
    %v2779 = vpop.f32.mrf.mxu0
    %v2780 = vadd.f32 %v2505, %v2779
    %2781 = vmatmul.bf16.gmra.mxu0 %v2593
    %v2782 = vpop.f32.mrf.mxu0
    %v2783 = vadd.f32 %v2510, %v2782
    %v2784 = vpop.f32.mrf.mxu0
    %v2785 = vadd.f32 %v2515, %v2784
    %2786 = vmatmul.bf16.gmra.mxu0 %v2596
    %v2787 = vpop.f32.mrf.mxu0
    %v2788 = vadd.f32 %v2520, %v2787
    %v2789 = vpop.f32.mrf.mxu0
    %v2790 = vadd.f32 %v2525, %v2789
    %2791 = vmatmul.bf16.gmra.mxu0 %v2599
    %v2792 = vpop.f32.mrf.mxu0
    %v2793 = vadd.f32 %v2530, %v2792
    %v2794 = vpop.f32.mrf.mxu0
    %v2795 = vadd.f32 %v2535, %v2794
    %2796 = vdwg.mxu0
    %2797 = vmatpush.bf16.msra.mxu0 0
    %2798 = vmatpush.bf16.msra.mxu0 0
    %2799 = vmatpush.bf16.msra.mxu0 0
    %2800 = vmatpush.bf16.msra.mxu0 0
    %2801 = vmatpush.bf16.msra.mxu0 %v2437
    %2802 = vmatpush.bf16.msra.mxu0 %v2429
    %2803 = vmatpush.bf16.msra.mxu0 %v2421
    %2804 = vmatpush.bf16.msra.mxu0 %v2413
    %2805 = vmatmul.bf16.gmra.mxu0 %v2578
    %v2806 = vpop.f32.mrf.mxu0
    %v2807 = vadd.f32 %v2460, %v2806
    %v2808 = vpop.f32.mrf.mxu0
    %v2809 = vadd.f32 %v2465, %v2808
    %2810 = vmatmul.bf16.gmra.mxu0 %v2581
    %v2811 = vpop.f32.mrf.mxu0
    %v2812 = vadd.f32 %v2470, %v2811
    %v2813 = vpop.f32.mrf.mxu0
    %v2814 = vadd.f32 %v2475, %v2813
    %2815 = vmatmul.bf16.gmra.mxu0 %v2584
    %v2816 = vpop.f32.mrf.mxu0
    %v2817 = vadd.f32 %v2480, %v2816
    %v2818 = vpop.f32.mrf.mxu0
    %v2819 = vadd.f32 %v2485, %v2818
    %2820 = vmatmul.bf16.gmra.mxu0 %v2587
    %v2821 = vpop.f32.mrf.mxu0
    %v2822 = vadd.f32 %v2490, %v2821
    %v2823 = vpop.f32.mrf.mxu0
    %v2824 = vadd.f32 %v2495, %v2823
    %2825 = vmatmul.bf16.gmra.mxu0 %v2590
    %v2826 = vpop.f32.mrf.mxu0
    %v2827 = vadd.f32 %v2500, %v2826
    %v2828 = vpop.f32.mrf.mxu0
    %v2829 = vadd.f32 %v2505, %v2828
    %2830 = vmatmul.bf16.gmra.mxu0 %v2593
    %v2831 = vpop.f32.mrf.mxu0
    %v2832 = vadd.f32 %v2510, %v2831
    %v2833 = vpop.f32.mrf.mxu0
    %v2834 = vadd.f32 %v2515, %v2833
    %2835 = vmatmul.bf16.gmra.mxu0 %v2596
    %v2836 = vpop.f32.mrf.mxu0
    %v2837 = vadd.f32 %v2520, %v2836
    %v2838 = vpop.f32.mrf.mxu0
    %v2839 = vadd.f32 %v2525, %v2838
    %2840 = vmatmul.bf16.gmra.mxu0 %v2599
    %v2841 = vpop.f32.mrf.mxu0
    %v2842 = vadd.f32 %v2530, %v2841
    %v2843 = vpop.f32.mrf.mxu0
    %v2844 = vadd.f32 %v2535, %v2843
    %2845 = vdwg.mxu0
    %2846 = vmatpush.bf16.msra.mxu0 0
    %2847 = vmatpush.bf16.msra.mxu0 0
    %2848 = vmatpush.bf16.msra.mxu0 0
    %2849 = vmatpush.bf16.msra.mxu0 0
    %2850 = vmatpush.bf16.msra.mxu0 %v2438
    %2851 = vmatpush.bf16.msra.mxu0 %v2430
    %2852 = vmatpush.bf16.msra.mxu0 %v2422
    %2853 = vmatpush.bf16.msra.mxu0 %v2414
    %2854 = vmatmul.bf16.gmra.mxu0 %v2578
    %v2855 = vpop.f32.mrf.mxu0
    %v2856 = vadd.f32 %v2460, %v2855
    %v2857 = vpop.f32.mrf.mxu0
    %v2858 = vadd.f32 %v2465, %v2857
    %2859 = vmatmul.bf16.gmra.mxu0 %v2581
    %v2860 = vpop.f32.mrf.mxu0
    %v2861 = vadd.f32 %v2470, %v2860
    %v2862 = vpop.f32.mrf.mxu0
    %v2863 = vadd.f32 %v2475, %v2862
    %2864 = vmatmul.bf16.gmra.mxu0 %v2584
    %v2865 = vpop.f32.mrf.mxu0
    %v2866 = vadd.f32 %v2480, %v2865
    %v2867 = vpop.f32.mrf.mxu0
    %v2868 = vadd.f32 %v2485, %v2867
    %2869 = vmatmul.bf16.gmra.mxu0 %v2587
    %v2870 = vpop.f32.mrf.mxu0
    %v2871 = vadd.f32 %v2490, %v2870
    %v2872 = vpop.f32.mrf.mxu0
    %v2873 = vadd.f32 %v2495, %v2872
    %2874 = vmatmul.bf16.gmra.mxu0 %v2590
    %v2875 = vpop.f32.mrf.mxu0
    %v2876 = vadd.f32 %v2500, %v2875
    %v2877 = vpop.f32.mrf.mxu0
    %v2878 = vadd.f32 %v2505, %v2877
    %2879 = vmatmul.bf16.gmra.mxu0 %v2593
    %v2880 = vpop.f32.mrf.mxu0
    %v2881 = vadd.f32 %v2510, %v2880
    %v2882 = vpop.f32.mrf.mxu0
    %v2883 = vadd.f32 %v2515, %v2882
    %2884 = vmatmul.bf16.gmra.mxu0 %v2596
    %v2885 = vpop.f32.mrf.mxu0
    %v2886 = vadd.f32 %v2520, %v2885
    %v2887 = vpop.f32.mrf.mxu0
    %v2888 = vadd.f32 %v2525, %v2887
    %2889 = vmatmul.bf16.gmra.mxu0 %v2599
    %v2890 = vpop.f32.mrf.mxu0
    %v2891 = vadd.f32 %v2530, %v2890
    %v2892 = vpop.f32.mrf.mxu0
    %v2893 = vadd.f32 %v2535, %v2892
    %2894 = vdwg.mxu0
    %2895 = vmatpush.bf16.msra.mxu0 0
    %2896 = vmatpush.bf16.msra.mxu0 0
    %2897 = vmatpush.bf16.msra.mxu0 0
    %2898 = vmatpush.bf16.msra.mxu0 0
    %2899 = vmatpush.bf16.msra.mxu0 %v2439
    %2900 = vmatpush.bf16.msra.mxu0 %v2431
    %2901 = vmatpush.bf16.msra.mxu0 %v2423
    %2902 = vmatpush.bf16.msra.mxu0 %v2415
    %2903 = vmatmul.bf16.gmra.mxu0 %v2578
    %v2904 = vpop.f32.mrf.mxu0
    %v2905 = vadd.f32 %v2460, %v2904
    %v2906 = vpop.f32.mrf.mxu0
    %v2907 = vadd.f32 %v2465, %v2906
    %2908 = vmatmul.bf16.gmra.mxu0 %v2581
    %v2909 = vpop.f32.mrf.mxu0
    %v2910 = vadd.f32 %v2470, %v2909
    %v2911 = vpop.f32.mrf.mxu0
    %v2912 = vadd.f32 %v2475, %v2911
    %2913 = vmatmul.bf16.gmra.mxu0 %v2584
    %v2914 = vpop.f32.mrf.mxu0
    %v2915 = vadd.f32 %v2480, %v2914
    %v2916 = vpop.f32.mrf.mxu0
    %v2917 = vadd.f32 %v2485, %v2916
    %2918 = vmatmul.bf16.gmra.mxu0 %v2587
    %v2919 = vpop.f32.mrf.mxu0
    %v2920 = vadd.f32 %v2490, %v2919
    %v2921 = vpop.f32.mrf.mxu0
    %v2922 = vadd.f32 %v2495, %v2921
    %2923 = vmatmul.bf16.gmra.mxu0 %v2590
    %v2924 = vpop.f32.mrf.mxu0
    %v2925 = vadd.f32 %v2500, %v2924
    %v2926 = vpop.f32.mrf.mxu0
    %v2927 = vadd.f32 %v2505, %v2926
    %2928 = vmatmul.bf16.gmra.mxu0 %v2593
    %v2929 = vpop.f32.mrf.mxu0
    %v2930 = vadd.f32 %v2510, %v2929
    %v2931 = vpop.f32.mrf.mxu0
    %v2932 = vadd.f32 %v2515, %v2931
    %2933 = vmatmul.bf16.gmra.mxu0 %v2596
    %v2934 = vpop.f32.mrf.mxu0
    %v2935 = vadd.f32 %v2520, %v2934
    %v2936 = vpop.f32.mrf.mxu0
    %v2937 = vadd.f32 %v2525, %v2936
    %2938 = vmatmul.bf16.gmra.mxu0 %v2599
    %v2939 = vpop.f32.mrf.mxu0
    %v2940 = vadd.f32 %v2530, %v2939
    %v2941 = vpop.f32.mrf.mxu0
    %v2942 = vadd.f32 %v2535, %v2941
    %2943 = vdwg.mxu0
    %2944 = vmatpush.bf16.msra.mxu0 0
    %2945 = vmatpush.bf16.msra.mxu0 0
    %2946 = vmatpush.bf16.msra.mxu0 0
    %2947 = vmatpush.bf16.msra.mxu0 0
    %2948 = vmatpush.bf16.msra.mxu0 %v2440
    %2949 = vmatpush.bf16.msra.mxu0 %v2432
    %2950 = vmatpush.bf16.msra.mxu0 %v2424
    %2951 = vmatpush.bf16.msra.mxu0 %v2416
    %2952 = vmatmul.bf16.gmra.mxu0 %v2578
    %v2953 = vpop.f32.mrf.mxu0
    %v2954 = vadd.f32 %v2460, %v2953
    %v2955 = vpop.f32.mrf.mxu0
    %v2956 = vadd.f32 %v2465, %v2955
    %2957 = vmatmul.bf16.gmra.mxu0 %v2581
    %v2958 = vpop.f32.mrf.mxu0
    %v2959 = vadd.f32 %v2470, %v2958
    %v2960 = vpop.f32.mrf.mxu0
    %v2961 = vadd.f32 %v2475, %v2960
    %2962 = vmatmul.bf16.gmra.mxu0 %v2584
    %v2963 = vpop.f32.mrf.mxu0
    %v2964 = vadd.f32 %v2480, %v2963
    %v2965 = vpop.f32.mrf.mxu0
    %v2966 = vadd.f32 %v2485, %v2965
    %2967 = vmatmul.bf16.gmra.mxu0 %v2587
    %v2968 = vpop.f32.mrf.mxu0
    %v2969 = vadd.f32 %v2490, %v2968
    %v2970 = vpop.f32.mrf.mxu0
    %v2971 = vadd.f32 %v2495, %v2970
    %2972 = vmatmul.bf16.gmra.mxu0 %v2590
    %v2973 = vpop.f32.mrf.mxu0
    %v2974 = vadd.f32 %v2500, %v2973
    %v2975 = vpop.f32.mrf.mxu0
    %v2976 = vadd.f32 %v2505, %v2975
    %2977 = vmatmul.bf16.gmra.mxu0 %v2593
    %v2978 = vpop.f32.mrf.mxu0
    %v2979 = vadd.f32 %v2510, %v2978
    %v2980 = vpop.f32.mrf.mxu0
    %v2981 = vadd.f32 %v2515, %v2980
    %2982 = vmatmul.bf16.gmra.mxu0 %v2596
    %v2983 = vpop.f32.mrf.mxu0
    %v2984 = vadd.f32 %v2520, %v2983
    %v2985 = vpop.f32.mrf.mxu0
    %v2986 = vadd.f32 %v2525, %v2985
    %2987 = vmatmul.bf16.gmra.mxu0 %v2599
    %v2988 = vpop.f32.mrf.mxu0
    %v2989 = vadd.f32 %v2530, %v2988
    %v2990 = vpop.f32.mrf.mxu0
    %v2991 = vadd.f32 %v2535, %v2990
    %2992 = vdwg.mxu0
    %v2993 = vmul.f32 %v2611, %v2611
    %v2994 = vmul.f32 %v2660, %v2660
    %v2995 = vmul.f32 %v2709, %v2709
    %v2996 = vmul.f32 %v2758, %v2758
    %v2997 = vmul.f32 %v2807, %v2807
    %v2998 = vmul.f32 %v2856, %v2856
    %v2999 = vmul.f32 %v2905, %v2905
    %v3000 = vmul.f32 %v2954, %v2954
    %v3001 = vmul.f32 %v2613, %v2613
    %v3002 = vmul.f32 %v2662, %v2662
    %v3003 = vmul.f32 %v2711, %v2711
    %v3004 = vmul.f32 %v2760, %v2760
    %v3005 = vmul.f32 %v2809, %v2809
    %v3006 = vmul.f32 %v2858, %v2858
    %v3007 = vmul.f32 %v2907, %v2907
    %v3008 = vmul.f32 %v2956, %v2956
    %v3009 = vmul.f32 %v2616, %v2616
    %v3010 = vmul.f32 %v2665, %v2665
    %v3011 = vmul.f32 %v2714, %v2714
    %v3012 = vmul.f32 %v2763, %v2763
    %v3013 = vmul.f32 %v2812, %v2812
    %v3014 = vmul.f32 %v2861, %v2861
    %v3015 = vmul.f32 %v2910, %v2910
    %v3016 = vmul.f32 %v2959, %v2959
    %v3017 = vmul.f32 %v2618, %v2618
    %v3018 = vmul.f32 %v2667, %v2667
    %v3019 = vmul.f32 %v2716, %v2716
    %v3020 = vmul.f32 %v2765, %v2765
    %v3021 = vmul.f32 %v2814, %v2814
    %v3022 = vmul.f32 %v2863, %v2863
    %v3023 = vmul.f32 %v2912, %v2912
    %v3024 = vmul.f32 %v2961, %v2961
    %v3025 = vmul.f32 %v2621, %v2621
    %v3026 = vmul.f32 %v2670, %v2670
    %v3027 = vmul.f32 %v2719, %v2719
    %v3028 = vmul.f32 %v2768, %v2768
    %v3029 = vmul.f32 %v2817, %v2817
    %v3030 = vmul.f32 %v2866, %v2866
    %v3031 = vmul.f32 %v2915, %v2915
    %v3032 = vmul.f32 %v2964, %v2964
    %v3033 = vmul.f32 %v2623, %v2623
    %v3034 = vmul.f32 %v2672, %v2672
    %v3035 = vmul.f32 %v2721, %v2721
    %v3036 = vmul.f32 %v2770, %v2770
    %v3037 = vmul.f32 %v2819, %v2819
    %v3038 = vmul.f32 %v2868, %v2868
    %v3039 = vmul.f32 %v2917, %v2917
    %v3040 = vmul.f32 %v2966, %v2966
    %v3041 = vmul.f32 %v2626, %v2626
    %v3042 = vmul.f32 %v2675, %v2675
    %v3043 = vmul.f32 %v2724, %v2724
    %v3044 = vmul.f32 %v2773, %v2773
    %v3045 = vmul.f32 %v2822, %v2822
    %v3046 = vmul.f32 %v2871, %v2871
    %v3047 = vmul.f32 %v2920, %v2920
    %v3048 = vmul.f32 %v2969, %v2969
    %v3049 = vmul.f32 %v2628, %v2628
    %v3050 = vmul.f32 %v2677, %v2677
    %v3051 = vmul.f32 %v2726, %v2726
    %v3052 = vmul.f32 %v2775, %v2775
    %v3053 = vmul.f32 %v2824, %v2824
    %v3054 = vmul.f32 %v2873, %v2873
    %v3055 = vmul.f32 %v2922, %v2922
    %v3056 = vmul.f32 %v2971, %v2971
    %v3057 = vmul.f32 %v2631, %v2631
    %v3058 = vmul.f32 %v2680, %v2680
    %v3059 = vmul.f32 %v2729, %v2729
    %v3060 = vmul.f32 %v2778, %v2778
    %v3061 = vmul.f32 %v2827, %v2827
    %v3062 = vmul.f32 %v2876, %v2876
    %v3063 = vmul.f32 %v2925, %v2925
    %v3064 = vmul.f32 %v2974, %v2974
    %v3065 = vmul.f32 %v2633, %v2633
    %v3066 = vmul.f32 %v2682, %v2682
    %v3067 = vmul.f32 %v2731, %v2731
    %v3068 = vmul.f32 %v2780, %v2780
    %v3069 = vmul.f32 %v2829, %v2829
    %v3070 = vmul.f32 %v2878, %v2878
    %v3071 = vmul.f32 %v2927, %v2927
    %v3072 = vmul.f32 %v2976, %v2976
    %v3073 = vmul.f32 %v2636, %v2636
    %v3074 = vmul.f32 %v2685, %v2685
    %v3075 = vmul.f32 %v2734, %v2734
    %v3076 = vmul.f32 %v2783, %v2783
    %v3077 = vmul.f32 %v2832, %v2832
    %v3078 = vmul.f32 %v2881, %v2881
    %v3079 = vmul.f32 %v2930, %v2930
    %v3080 = vmul.f32 %v2979, %v2979
    %v3081 = vmul.f32 %v2638, %v2638
    %v3082 = vmul.f32 %v2687, %v2687
    %v3083 = vmul.f32 %v2736, %v2736
    %v3084 = vmul.f32 %v2785, %v2785
    %v3085 = vmul.f32 %v2834, %v2834
    %v3086 = vmul.f32 %v2883, %v2883
    %v3087 = vmul.f32 %v2932, %v2932
    %v3088 = vmul.f32 %v2981, %v2981
    %v3089 = vmul.f32 %v2641, %v2641
    %v3090 = vmul.f32 %v2690, %v2690
    %v3091 = vmul.f32 %v2739, %v2739
    %v3092 = vmul.f32 %v2788, %v2788
    %v3093 = vmul.f32 %v2837, %v2837
    %v3094 = vmul.f32 %v2886, %v2886
    %v3095 = vmul.f32 %v2935, %v2935
    %v3096 = vmul.f32 %v2984, %v2984
    %v3097 = vmul.f32 %v2643, %v2643
    %v3098 = vmul.f32 %v2692, %v2692
    %v3099 = vmul.f32 %v2741, %v2741
    %v3100 = vmul.f32 %v2790, %v2790
    %v3101 = vmul.f32 %v2839, %v2839
    %v3102 = vmul.f32 %v2888, %v2888
    %v3103 = vmul.f32 %v2937, %v2937
    %v3104 = vmul.f32 %v2986, %v2986
    %v3105 = vmul.f32 %v2646, %v2646
    %v3106 = vmul.f32 %v2695, %v2695
    %v3107 = vmul.f32 %v2744, %v2744
    %v3108 = vmul.f32 %v2793, %v2793
    %v3109 = vmul.f32 %v2842, %v2842
    %v3110 = vmul.f32 %v2891, %v2891
    %v3111 = vmul.f32 %v2940, %v2940
    %v3112 = vmul.f32 %v2989, %v2989
    %v3113 = vmul.f32 %v2648, %v2648
    %v3114 = vmul.f32 %v2697, %v2697
    %v3115 = vmul.f32 %v2746, %v2746
    %v3116 = vmul.f32 %v2795, %v2795
    %v3117 = vmul.f32 %v2844, %v2844
    %v3118 = vmul.f32 %v2893, %v2893
    %v3119 = vmul.f32 %v2942, %v2942
    %v3120 = vmul.f32 %v2991, %v2991
    %v3121 = vmul.f32 %v2611, %v2993
    %v3122 = vmul.f32 %v2660, %v2994
    %v3123 = vmul.f32 %v2709, %v2995
    %v3124 = vmul.f32 %v2758, %v2996
    %v3125 = vmul.f32 %v2807, %v2997
    %v3126 = vmul.f32 %v2856, %v2998
    %v3127 = vmul.f32 %v2905, %v2999
    %v3128 = vmul.f32 %v2954, %v3000
    %v3129 = vmul.f32 %v2613, %v3001
    %v3130 = vmul.f32 %v2662, %v3002
    %v3131 = vmul.f32 %v2711, %v3003
    %v3132 = vmul.f32 %v2760, %v3004
    %v3133 = vmul.f32 %v2809, %v3005
    %v3134 = vmul.f32 %v2858, %v3006
    %v3135 = vmul.f32 %v2907, %v3007
    %v3136 = vmul.f32 %v2956, %v3008
    %v3137 = vmul.f32 %v2616, %v3009
    %v3138 = vmul.f32 %v2665, %v3010
    %v3139 = vmul.f32 %v2714, %v3011
    %v3140 = vmul.f32 %v2763, %v3012
    %v3141 = vmul.f32 %v2812, %v3013
    %v3142 = vmul.f32 %v2861, %v3014
    %v3143 = vmul.f32 %v2910, %v3015
    %v3144 = vmul.f32 %v2959, %v3016
    %v3145 = vmul.f32 %v2618, %v3017
    %v3146 = vmul.f32 %v2667, %v3018
    %v3147 = vmul.f32 %v2716, %v3019
    %v3148 = vmul.f32 %v2765, %v3020
    %v3149 = vmul.f32 %v2814, %v3021
    %v3150 = vmul.f32 %v2863, %v3022
    %v3151 = vmul.f32 %v2912, %v3023
    %v3152 = vmul.f32 %v2961, %v3024
    %v3153 = vmul.f32 %v2621, %v3025
    %v3154 = vmul.f32 %v2670, %v3026
    %v3155 = vmul.f32 %v2719, %v3027
    %v3156 = vmul.f32 %v2768, %v3028
    %v3157 = vmul.f32 %v2817, %v3029
    %v3158 = vmul.f32 %v2866, %v3030
    %v3159 = vmul.f32 %v2915, %v3031
    %v3160 = vmul.f32 %v2964, %v3032
    %v3161 = vmul.f32 %v2623, %v3033
    %v3162 = vmul.f32 %v2672, %v3034
    %v3163 = vmul.f32 %v2721, %v3035
    %v3164 = vmul.f32 %v2770, %v3036
    %v3165 = vmul.f32 %v2819, %v3037
    %v3166 = vmul.f32 %v2868, %v3038
    %v3167 = vmul.f32 %v2917, %v3039
    %v3168 = vmul.f32 %v2966, %v3040
    %v3169 = vmul.f32 %v2626, %v3041
    %v3170 = vmul.f32 %v2675, %v3042
    %v3171 = vmul.f32 %v2724, %v3043
    %v3172 = vmul.f32 %v2773, %v3044
    %v3173 = vmul.f32 %v2822, %v3045
    %v3174 = vmul.f32 %v2871, %v3046
    %v3175 = vmul.f32 %v2920, %v3047
    %v3176 = vmul.f32 %v2969, %v3048
    %v3177 = vmul.f32 %v2628, %v3049
    %v3178 = vmul.f32 %v2677, %v3050
    %v3179 = vmul.f32 %v2726, %v3051
    %v3180 = vmul.f32 %v2775, %v3052
    %v3181 = vmul.f32 %v2824, %v3053
    %v3182 = vmul.f32 %v2873, %v3054
    %v3183 = vmul.f32 %v2922, %v3055
    %v3184 = vmul.f32 %v2971, %v3056
    %v3185 = vmul.f32 %v2631, %v3057
    %v3186 = vmul.f32 %v2680, %v3058
    %v3187 = vmul.f32 %v2729, %v3059
    %v3188 = vmul.f32 %v2778, %v3060
    %v3189 = vmul.f32 %v2827, %v3061
    %v3190 = vmul.f32 %v2876, %v3062
    %v3191 = vmul.f32 %v2925, %v3063
    %v3192 = vmul.f32 %v2974, %v3064
    %v3193 = vmul.f32 %v2633, %v3065
    %v3194 = vmul.f32 %v2682, %v3066
    %v3195 = vmul.f32 %v2731, %v3067
    %v3196 = vmul.f32 %v2780, %v3068
    %v3197 = vmul.f32 %v2829, %v3069
    %v3198 = vmul.f32 %v2878, %v3070
    %v3199 = vmul.f32 %v2927, %v3071
    %v3200 = vmul.f32 %v2976, %v3072
    %v3201 = vmul.f32 %v2636, %v3073
    %v3202 = vmul.f32 %v2685, %v3074
    %v3203 = vmul.f32 %v2734, %v3075
    %v3204 = vmul.f32 %v2783, %v3076
    %v3205 = vmul.f32 %v2832, %v3077
    %v3206 = vmul.f32 %v2881, %v3078
    %v3207 = vmul.f32 %v2930, %v3079
    %v3208 = vmul.f32 %v2979, %v3080
    %v3209 = vmul.f32 %v2638, %v3081
    %v3210 = vmul.f32 %v2687, %v3082
    %v3211 = vmul.f32 %v2736, %v3083
    %v3212 = vmul.f32 %v2785, %v3084
    %v3213 = vmul.f32 %v2834, %v3085
    %v3214 = vmul.f32 %v2883, %v3086
    %v3215 = vmul.f32 %v2932, %v3087
    %v3216 = vmul.f32 %v2981, %v3088
    %v3217 = vmul.f32 %v2641, %v3089
    %v3218 = vmul.f32 %v2690, %v3090
    %v3219 = vmul.f32 %v2739, %v3091
    %v3220 = vmul.f32 %v2788, %v3092
    %v3221 = vmul.f32 %v2837, %v3093
    %v3222 = vmul.f32 %v2886, %v3094
    %v3223 = vmul.f32 %v2935, %v3095
    %v3224 = vmul.f32 %v2984, %v3096
    %v3225 = vmul.f32 %v2643, %v3097
    %v3226 = vmul.f32 %v2692, %v3098
    %v3227 = vmul.f32 %v2741, %v3099
    %v3228 = vmul.f32 %v2790, %v3100
    %v3229 = vmul.f32 %v2839, %v3101
    %v3230 = vmul.f32 %v2888, %v3102
    %v3231 = vmul.f32 %v2937, %v3103
    %v3232 = vmul.f32 %v2986, %v3104
    %v3233 = vmul.f32 %v2646, %v3105
    %v3234 = vmul.f32 %v2695, %v3106
    %v3235 = vmul.f32 %v2744, %v3107
    %v3236 = vmul.f32 %v2793, %v3108
    %v3237 = vmul.f32 %v2842, %v3109
    %v3238 = vmul.f32 %v2891, %v3110
    %v3239 = vmul.f32 %v2940, %v3111
    %v3240 = vmul.f32 %v2989, %v3112
    %v3241 = vmul.f32 %v2648, %v3113
    %v3242 = vmul.f32 %v2697, %v3114
    %v3243 = vmul.f32 %v2746, %v3115
    %v3244 = vmul.f32 %v2795, %v3116
    %v3245 = vmul.f32 %v2844, %v3117
    %v3246 = vmul.f32 %v2893, %v3118
    %v3247 = vmul.f32 %v2942, %v3119
    %v3248 = vmul.f32 %v2991, %v3120
    %v3249 = vmul.f32 %v3121, 0.044715
    %v3250 = vmul.f32 %v3122, 0.044715
    %v3251 = vmul.f32 %v3123, 0.044715
    %v3252 = vmul.f32 %v3124, 0.044715
    %v3253 = vmul.f32 %v3125, 0.044715
    %v3254 = vmul.f32 %v3126, 0.044715
    %v3255 = vmul.f32 %v3127, 0.044715
    %v3256 = vmul.f32 %v3128, 0.044715
    %v3257 = vmul.f32 %v3129, 0.044715
    %v3258 = vmul.f32 %v3130, 0.044715
    %v3259 = vmul.f32 %v3131, 0.044715
    %v3260 = vmul.f32 %v3132, 0.044715
    %v3261 = vmul.f32 %v3133, 0.044715
    %v3262 = vmul.f32 %v3134, 0.044715
    %v3263 = vmul.f32 %v3135, 0.044715
    %v3264 = vmul.f32 %v3136, 0.044715
    %v3265 = vmul.f32 %v3137, 0.044715
    %v3266 = vmul.f32 %v3138, 0.044715
    %v3267 = vmul.f32 %v3139, 0.044715
    %v3268 = vmul.f32 %v3140, 0.044715
    %v3269 = vmul.f32 %v3141, 0.044715
    %v3270 = vmul.f32 %v3142, 0.044715
    %v3271 = vmul.f32 %v3143, 0.044715
    %v3272 = vmul.f32 %v3144, 0.044715
    %v3273 = vmul.f32 %v3145, 0.044715
    %v3274 = vmul.f32 %v3146, 0.044715
    %v3275 = vmul.f32 %v3147, 0.044715
    %v3276 = vmul.f32 %v3148, 0.044715
    %v3277 = vmul.f32 %v3149, 0.044715
    %v3278 = vmul.f32 %v3150, 0.044715
    %v3279 = vmul.f32 %v3151, 0.044715
    %v3280 = vmul.f32 %v3152, 0.044715
    %v3281 = vmul.f32 %v3153, 0.044715
    %v3282 = vmul.f32 %v3154, 0.044715
    %v3283 = vmul.f32 %v3155, 0.044715
    %v3284 = vmul.f32 %v3156, 0.044715
    %v3285 = vmul.f32 %v3157, 0.044715
    %v3286 = vmul.f32 %v3158, 0.044715
    %v3287 = vmul.f32 %v3159, 0.044715
    %v3288 = vmul.f32 %v3160, 0.044715
    %v3289 = vmul.f32 %v3161, 0.044715
    %v3290 = vmul.f32 %v3162, 0.044715
    %v3291 = vmul.f32 %v3163, 0.044715
    %v3292 = vmul.f32 %v3164, 0.044715
    %v3293 = vmul.f32 %v3165, 0.044715
    %v3294 = vmul.f32 %v3166, 0.044715
    %v3295 = vmul.f32 %v3167, 0.044715
    %v3296 = vmul.f32 %v3168, 0.044715
    %v3297 = vmul.f32 %v3169, 0.044715
    %v3298 = vmul.f32 %v3170, 0.044715
    %v3299 = vmul.f32 %v3171, 0.044715
    %v3300 = vmul.f32 %v3172, 0.044715
    %v3301 = vmul.f32 %v3173, 0.044715
    %v3302 = vmul.f32 %v3174, 0.044715
    %v3303 = vmul.f32 %v3175, 0.044715
    %v3304 = vmul.f32 %v3176, 0.044715
    %v3305 = vmul.f32 %v3177, 0.044715
    %v3306 = vmul.f32 %v3178, 0.044715
    %v3307 = vmul.f32 %v3179, 0.044715
    %v3308 = vmul.f32 %v3180, 0.044715
    %v3309 = vmul.f32 %v3181, 0.044715
    %v3310 = vmul.f32 %v3182, 0.044715
    %v3311 = vmul.f32 %v3183, 0.044715
    %v3312 = vmul.f32 %v3184, 0.044715
    %v3313 = vmul.f32 %v3185, 0.044715
    %v3314 = vmul.f32 %v3186, 0.044715
    %v3315 = vmul.f32 %v3187, 0.044715
    %v3316 = vmul.f32 %v3188, 0.044715
    %v3317 = vmul.f32 %v3189, 0.044715
    %v3318 = vmul.f32 %v3190, 0.044715
    %v3319 = vmul.f32 %v3191, 0.044715
    %v3320 = vmul.f32 %v3192, 0.044715
    %v3321 = vmul.f32 %v3193, 0.044715
    %v3322 = vmul.f32 %v3194, 0.044715
    %v3323 = vmul.f32 %v3195, 0.044715
    %v3324 = vmul.f32 %v3196, 0.044715
    %v3325 = vmul.f32 %v3197, 0.044715
    %v3326 = vmul.f32 %v3198, 0.044715
    %v3327 = vmul.f32 %v3199, 0.044715
    %v3328 = vmul.f32 %v3200, 0.044715
    %v3329 = vmul.f32 %v3201, 0.044715
    %v3330 = vmul.f32 %v3202, 0.044715
    %v3331 = vmul.f32 %v3203, 0.044715
    %v3332 = vmul.f32 %v3204, 0.044715
    %v3333 = vmul.f32 %v3205, 0.044715
    %v3334 = vmul.f32 %v3206, 0.044715
    %v3335 = vmul.f32 %v3207, 0.044715
    %v3336 = vmul.f32 %v3208, 0.044715
    %v3337 = vmul.f32 %v3209, 0.044715
    %v3338 = vmul.f32 %v3210, 0.044715
    %v3339 = vmul.f32 %v3211, 0.044715
    %v3340 = vmul.f32 %v3212, 0.044715
    %v3341 = vmul.f32 %v3213, 0.044715
    %v3342 = vmul.f32 %v3214, 0.044715
    %v3343 = vmul.f32 %v3215, 0.044715
    %v3344 = vmul.f32 %v3216, 0.044715
    %v3345 = vmul.f32 %v3217, 0.044715
    %v3346 = vmul.f32 %v3218, 0.044715
    %v3347 = vmul.f32 %v3219, 0.044715
    %v3348 = vmul.f32 %v3220, 0.044715
    %v3349 = vmul.f32 %v3221, 0.044715
    %v3350 = vmul.f32 %v3222, 0.044715
    %v3351 = vmul.f32 %v3223, 0.044715
    %v3352 = vmul.f32 %v3224, 0.044715
    %v3353 = vmul.f32 %v3225, 0.044715
    %v3354 = vmul.f32 %v3226, 0.044715
    %v3355 = vmul.f32 %v3227, 0.044715
    %v3356 = vmul.f32 %v3228, 0.044715
    %v3357 = vmul.f32 %v3229, 0.044715
    %v3358 = vmul.f32 %v3230, 0.044715
    %v3359 = vmul.f32 %v3231, 0.044715
    %v3360 = vmul.f32 %v3232, 0.044715
    %v3361 = vmul.f32 %v3233, 0.044715
    %v3362 = vmul.f32 %v3234, 0.044715
    %v3363 = vmul.f32 %v3235, 0.044715
    %v3364 = vmul.f32 %v3236, 0.044715
    %v3365 = vmul.f32 %v3237, 0.044715
    %v3366 = vmul.f32 %v3238, 0.044715
    %v3367 = vmul.f32 %v3239, 0.044715
    %v3368 = vmul.f32 %v3240, 0.044715
    %v3369 = vmul.f32 %v3241, 0.044715
    %v3370 = vmul.f32 %v3242, 0.044715
    %v3371 = vmul.f32 %v3243, 0.044715
    %v3372 = vmul.f32 %v3244, 0.044715
    %v3373 = vmul.f32 %v3245, 0.044715
    %v3374 = vmul.f32 %v3246, 0.044715
    %v3375 = vmul.f32 %v3247, 0.044715
    %v3376 = vmul.f32 %v3248, 0.044715
    %v3377 = vadd.f32 %v2611, %v3249
    %v3378 = vadd.f32 %v2660, %v3250
    %v3379 = vadd.f32 %v2709, %v3251
    %v3380 = vadd.f32 %v2758, %v3252
    %v3381 = vadd.f32 %v2807, %v3253
    %v3382 = vadd.f32 %v2856, %v3254
    %v3383 = vadd.f32 %v2905, %v3255
    %v3384 = vadd.f32 %v2954, %v3256
    %v3385 = vadd.f32 %v2613, %v3257
    %v3386 = vadd.f32 %v2662, %v3258
    %v3387 = vadd.f32 %v2711, %v3259
    %v3388 = vadd.f32 %v2760, %v3260
    %v3389 = vadd.f32 %v2809, %v3261
    %v3390 = vadd.f32 %v2858, %v3262
    %v3391 = vadd.f32 %v2907, %v3263
    %v3392 = vadd.f32 %v2956, %v3264
    %v3393 = vadd.f32 %v2616, %v3265
    %v3394 = vadd.f32 %v2665, %v3266
    %v3395 = vadd.f32 %v2714, %v3267
    %v3396 = vadd.f32 %v2763, %v3268
    %v3397 = vadd.f32 %v2812, %v3269
    %v3398 = vadd.f32 %v2861, %v3270
    %v3399 = vadd.f32 %v2910, %v3271
    %v3400 = vadd.f32 %v2959, %v3272
    %v3401 = vadd.f32 %v2618, %v3273
    %v3402 = vadd.f32 %v2667, %v3274
    %v3403 = vadd.f32 %v2716, %v3275
    %v3404 = vadd.f32 %v2765, %v3276
    %v3405 = vadd.f32 %v2814, %v3277
    %v3406 = vadd.f32 %v2863, %v3278
    %v3407 = vadd.f32 %v2912, %v3279
    %v3408 = vadd.f32 %v2961, %v3280
    %v3409 = vadd.f32 %v2621, %v3281
    %v3410 = vadd.f32 %v2670, %v3282
    %v3411 = vadd.f32 %v2719, %v3283
    %v3412 = vadd.f32 %v2768, %v3284
    %v3413 = vadd.f32 %v2817, %v3285
    %v3414 = vadd.f32 %v2866, %v3286
    %v3415 = vadd.f32 %v2915, %v3287
    %v3416 = vadd.f32 %v2964, %v3288
    %v3417 = vadd.f32 %v2623, %v3289
    %v3418 = vadd.f32 %v2672, %v3290
    %v3419 = vadd.f32 %v2721, %v3291
    %v3420 = vadd.f32 %v2770, %v3292
    %v3421 = vadd.f32 %v2819, %v3293
    %v3422 = vadd.f32 %v2868, %v3294
    %v3423 = vadd.f32 %v2917, %v3295
    %v3424 = vadd.f32 %v2966, %v3296
    %v3425 = vadd.f32 %v2626, %v3297
    %v3426 = vadd.f32 %v2675, %v3298
    %v3427 = vadd.f32 %v2724, %v3299
    %v3428 = vadd.f32 %v2773, %v3300
    %v3429 = vadd.f32 %v2822, %v3301
    %v3430 = vadd.f32 %v2871, %v3302
    %v3431 = vadd.f32 %v2920, %v3303
    %v3432 = vadd.f32 %v2969, %v3304
    %v3433 = vadd.f32 %v2628, %v3305
    %v3434 = vadd.f32 %v2677, %v3306
    %v3435 = vadd.f32 %v2726, %v3307
    %v3436 = vadd.f32 %v2775, %v3308
    %v3437 = vadd.f32 %v2824, %v3309
    %v3438 = vadd.f32 %v2873, %v3310
    %v3439 = vadd.f32 %v2922, %v3311
    %v3440 = vadd.f32 %v2971, %v3312
    %v3441 = vadd.f32 %v2631, %v3313
    %v3442 = vadd.f32 %v2680, %v3314
    %v3443 = vadd.f32 %v2729, %v3315
    %v3444 = vadd.f32 %v2778, %v3316
    %v3445 = vadd.f32 %v2827, %v3317
    %v3446 = vadd.f32 %v2876, %v3318
    %v3447 = vadd.f32 %v2925, %v3319
    %v3448 = vadd.f32 %v2974, %v3320
    %v3449 = vadd.f32 %v2633, %v3321
    %v3450 = vadd.f32 %v2682, %v3322
    %v3451 = vadd.f32 %v2731, %v3323
    %v3452 = vadd.f32 %v2780, %v3324
    %v3453 = vadd.f32 %v2829, %v3325
    %v3454 = vadd.f32 %v2878, %v3326
    %v3455 = vadd.f32 %v2927, %v3327
    %v3456 = vadd.f32 %v2976, %v3328
    %v3457 = vadd.f32 %v2636, %v3329
    %v3458 = vadd.f32 %v2685, %v3330
    %v3459 = vadd.f32 %v2734, %v3331
    %v3460 = vadd.f32 %v2783, %v3332
    %v3461 = vadd.f32 %v2832, %v3333
    %v3462 = vadd.f32 %v2881, %v3334
    %v3463 = vadd.f32 %v2930, %v3335
    %v3464 = vadd.f32 %v2979, %v3336
    %v3465 = vadd.f32 %v2638, %v3337
    %v3466 = vadd.f32 %v2687, %v3338
    %v3467 = vadd.f32 %v2736, %v3339
    %v3468 = vadd.f32 %v2785, %v3340
    %v3469 = vadd.f32 %v2834, %v3341
    %v3470 = vadd.f32 %v2883, %v3342
    %v3471 = vadd.f32 %v2932, %v3343
    %v3472 = vadd.f32 %v2981, %v3344
    %v3473 = vadd.f32 %v2641, %v3345
    %v3474 = vadd.f32 %v2690, %v3346
    %v3475 = vadd.f32 %v2739, %v3347
    %v3476 = vadd.f32 %v2788, %v3348
    %v3477 = vadd.f32 %v2837, %v3349
    %v3478 = vadd.f32 %v2886, %v3350
    %v3479 = vadd.f32 %v2935, %v3351
    %v3480 = vadd.f32 %v2984, %v3352
    %v3481 = vadd.f32 %v2643, %v3353
    %v3482 = vadd.f32 %v2692, %v3354
    %v3483 = vadd.f32 %v2741, %v3355
    %v3484 = vadd.f32 %v2790, %v3356
    %v3485 = vadd.f32 %v2839, %v3357
    %v3486 = vadd.f32 %v2888, %v3358
    %v3487 = vadd.f32 %v2937, %v3359
    %v3488 = vadd.f32 %v2986, %v3360
    %v3489 = vadd.f32 %v2646, %v3361
    %v3490 = vadd.f32 %v2695, %v3362
    %v3491 = vadd.f32 %v2744, %v3363
    %v3492 = vadd.f32 %v2793, %v3364
    %v3493 = vadd.f32 %v2842, %v3365
    %v3494 = vadd.f32 %v2891, %v3366
    %v3495 = vadd.f32 %v2940, %v3367
    %v3496 = vadd.f32 %v2989, %v3368
    %v3497 = vadd.f32 %v2648, %v3369
    %v3498 = vadd.f32 %v2697, %v3370
    %v3499 = vadd.f32 %v2746, %v3371
    %v3500 = vadd.f32 %v2795, %v3372
    %v3501 = vadd.f32 %v2844, %v3373
    %v3502 = vadd.f32 %v2893, %v3374
    %v3503 = vadd.f32 %v2942, %v3375
    %v3504 = vadd.f32 %v2991, %v3376
    %v3505 = vmul.f32 %v3377, 0.7978846
    %v3506 = vmul.f32 %v3378, 0.7978846
    %v3507 = vmul.f32 %v3379, 0.7978846
    %v3508 = vmul.f32 %v3380, 0.7978846
    %v3509 = vmul.f32 %v3381, 0.7978846
    %v3510 = vmul.f32 %v3382, 0.7978846
    %v3511 = vmul.f32 %v3383, 0.7978846
    %v3512 = vmul.f32 %v3384, 0.7978846
    %v3513 = vmul.f32 %v3385, 0.7978846
    %v3514 = vmul.f32 %v3386, 0.7978846
    %v3515 = vmul.f32 %v3387, 0.7978846
    %v3516 = vmul.f32 %v3388, 0.7978846
    %v3517 = vmul.f32 %v3389, 0.7978846
    %v3518 = vmul.f32 %v3390, 0.7978846
    %v3519 = vmul.f32 %v3391, 0.7978846
    %v3520 = vmul.f32 %v3392, 0.7978846
    %v3521 = vmul.f32 %v3393, 0.7978846
    %v3522 = vmul.f32 %v3394, 0.7978846
    %v3523 = vmul.f32 %v3395, 0.7978846
    %v3524 = vmul.f32 %v3396, 0.7978846
    %v3525 = vmul.f32 %v3397, 0.7978846
    %v3526 = vmul.f32 %v3398, 0.7978846
    %v3527 = vmul.f32 %v3399, 0.7978846
    %v3528 = vmul.f32 %v3400, 0.7978846
    %v3529 = vmul.f32 %v3401, 0.7978846
    %v3530 = vmul.f32 %v3402, 0.7978846
    %v3531 = vmul.f32 %v3403, 0.7978846
    %v3532 = vmul.f32 %v3404, 0.7978846
    %v3533 = vmul.f32 %v3405, 0.7978846
    %v3534 = vmul.f32 %v3406, 0.7978846
    %v3535 = vmul.f32 %v3407, 0.7978846
    %v3536 = vmul.f32 %v3408, 0.7978846
    %v3537 = vmul.f32 %v3409, 0.7978846
    %v3538 = vmul.f32 %v3410, 0.7978846
    %v3539 = vmul.f32 %v3411, 0.7978846
    %v3540 = vmul.f32 %v3412, 0.7978846
    %v3541 = vmul.f32 %v3413, 0.7978846
    %v3542 = vmul.f32 %v3414, 0.7978846
    %v3543 = vmul.f32 %v3415, 0.7978846
    %v3544 = vmul.f32 %v3416, 0.7978846
    %v3545 = vmul.f32 %v3417, 0.7978846
    %v3546 = vmul.f32 %v3418, 0.7978846
    %v3547 = vmul.f32 %v3419, 0.7978846
    %v3548 = vmul.f32 %v3420, 0.7978846
    %v3549 = vmul.f32 %v3421, 0.7978846
    %v3550 = vmul.f32 %v3422, 0.7978846
    %v3551 = vmul.f32 %v3423, 0.7978846
    %v3552 = vmul.f32 %v3424, 0.7978846
    %v3553 = vmul.f32 %v3425, 0.7978846
    %v3554 = vmul.f32 %v3426, 0.7978846
    %v3555 = vmul.f32 %v3427, 0.7978846
    %v3556 = vmul.f32 %v3428, 0.7978846
    %v3557 = vmul.f32 %v3429, 0.7978846
    %v3558 = vmul.f32 %v3430, 0.7978846
    %v3559 = vmul.f32 %v3431, 0.7978846
    %v3560 = vmul.f32 %v3432, 0.7978846
    %v3561 = vmul.f32 %v3433, 0.7978846
    %v3562 = vmul.f32 %v3434, 0.7978846
    %v3563 = vmul.f32 %v3435, 0.7978846
    %v3564 = vmul.f32 %v3436, 0.7978846
    %v3565 = vmul.f32 %v3437, 0.7978846
    %v3566 = vmul.f32 %v3438, 0.7978846
    %v3567 = vmul.f32 %v3439, 0.7978846
    %v3568 = vmul.f32 %v3440, 0.7978846
    %v3569 = vmul.f32 %v3441, 0.7978846
    %v3570 = vmul.f32 %v3442, 0.7978846
    %v3571 = vmul.f32 %v3443, 0.7978846
    %v3572 = vmul.f32 %v3444, 0.7978846
    %v3573 = vmul.f32 %v3445, 0.7978846
    %v3574 = vmul.f32 %v3446, 0.7978846
    %v3575 = vmul.f32 %v3447, 0.7978846
    %v3576 = vmul.f32 %v3448, 0.7978846
    %v3577 = vmul.f32 %v3449, 0.7978846
    %v3578 = vmul.f32 %v3450, 0.7978846
    %v3579 = vmul.f32 %v3451, 0.7978846
    %v3580 = vmul.f32 %v3452, 0.7978846
    %v3581 = vmul.f32 %v3453, 0.7978846
    %v3582 = vmul.f32 %v3454, 0.7978846
    %v3583 = vmul.f32 %v3455, 0.7978846
    %v3584 = vmul.f32 %v3456, 0.7978846
    %v3585 = vmul.f32 %v3457, 0.7978846
    %v3586 = vmul.f32 %v3458, 0.7978846
    %v3587 = vmul.f32 %v3459, 0.7978846
    %v3588 = vmul.f32 %v3460, 0.7978846
    %v3589 = vmul.f32 %v3461, 0.7978846
    %v3590 = vmul.f32 %v3462, 0.7978846
    %v3591 = vmul.f32 %v3463, 0.7978846
    %v3592 = vmul.f32 %v3464, 0.7978846
    %v3593 = vmul.f32 %v3465, 0.7978846
    %v3594 = vmul.f32 %v3466, 0.7978846
    %v3595 = vmul.f32 %v3467, 0.7978846
    %v3596 = vmul.f32 %v3468, 0.7978846
    %v3597 = vmul.f32 %v3469, 0.7978846
    %v3598 = vmul.f32 %v3470, 0.7978846
    %v3599 = vmul.f32 %v3471, 0.7978846
    %v3600 = vmul.f32 %v3472, 0.7978846
    %v3601 = vmul.f32 %v3473, 0.7978846
    %v3602 = vmul.f32 %v3474, 0.7978846
    %v3603 = vmul.f32 %v3475, 0.7978846
    %v3604 = vmul.f32 %v3476, 0.7978846
    %v3605 = vmul.f32 %v3477, 0.7978846
    %v3606 = vmul.f32 %v3478, 0.7978846
    %v3607 = vmul.f32 %v3479, 0.7978846
    %v3608 = vmul.f32 %v3480, 0.7978846
    %v3609 = vmul.f32 %v3481, 0.7978846
    %v3610 = vmul.f32 %v3482, 0.7978846
    %v3611 = vmul.f32 %v3483, 0.7978846
    %v3612 = vmul.f32 %v3484, 0.7978846
    %v3613 = vmul.f32 %v3485, 0.7978846
    %v3614 = vmul.f32 %v3486, 0.7978846
    %v3615 = vmul.f32 %v3487, 0.7978846
    %v3616 = vmul.f32 %v3488, 0.7978846
    %v3617 = vmul.f32 %v3489, 0.7978846
    %v3618 = vmul.f32 %v3490, 0.7978846
    %v3619 = vmul.f32 %v3491, 0.7978846
    %v3620 = vmul.f32 %v3492, 0.7978846
    %v3621 = vmul.f32 %v3493, 0.7978846
    %v3622 = vmul.f32 %v3494, 0.7978846
    %v3623 = vmul.f32 %v3495, 0.7978846
    %v3624 = vmul.f32 %v3496, 0.7978846
    %v3625 = vmul.f32 %v3497, 0.7978846
    %v3626 = vmul.f32 %v3498, 0.7978846
    %v3627 = vmul.f32 %v3499, 0.7978846
    %v3628 = vmul.f32 %v3500, 0.7978846
    %v3629 = vmul.f32 %v3501, 0.7978846
    %v3630 = vmul.f32 %v3502, 0.7978846
    %v3631 = vmul.f32 %v3503, 0.7978846
    %v3632 = vmul.f32 %v3504, 0.7978846
    %v3633 = vtanh.pop %v3505
    %v3634 = vtanh.pop %v3506
    %v3635 = vtanh.pop %v3507
    %v3636 = vtanh.pop %v3508
    %v3637 = vtanh.pop %v3509
    %v3638 = vtanh.pop %v3510
    %v3639 = vtanh.pop %v3511
    %v3640 = vtanh.pop %v3512
    %v3641 = vtanh.pop %v3513
    %v3642 = vtanh.pop %v3514
    %v3643 = vtanh.pop %v3515
    %v3644 = vtanh.pop %v3516
    %v3645 = vtanh.pop %v3517
    %v3646 = vtanh.pop %v3518
    %v3647 = vtanh.pop %v3519
    %v3648 = vtanh.pop %v3520
    %v3649 = vtanh.pop %v3521
    %v3650 = vtanh.pop %v3522
    %v3651 = vtanh.pop %v3523
    %v3652 = vtanh.pop %v3524
    %v3653 = vtanh.pop %v3525
    %v3654 = vtanh.pop %v3526
    %v3655 = vtanh.pop %v3527
    %v3656 = vtanh.pop %v3528
    %v3657 = vtanh.pop %v3529
    %v3658 = vtanh.pop %v3530
    %v3659 = vtanh.pop %v3531
    %v3660 = vtanh.pop %v3532
    %v3661 = vtanh.pop %v3533
    %v3662 = vtanh.pop %v3534
    %v3663 = vtanh.pop %v3535
    %v3664 = vtanh.pop %v3536
    %v3665 = vtanh.pop %v3537
    %v3666 = vtanh.pop %v3538
    %v3667 = vtanh.pop %v3539
    %v3668 = vtanh.pop %v3540
    %v3669 = vtanh.pop %v3541
    %v3670 = vtanh.pop %v3542
    %v3671 = vtanh.pop %v3543
    %v3672 = vtanh.pop %v3544
    %v3673 = vtanh.pop %v3545
    %v3674 = vtanh.pop %v3546
    %v3675 = vtanh.pop %v3547
    %v3676 = vtanh.pop %v3548
    %v3677 = vtanh.pop %v3549
    %v3678 = vtanh.pop %v3550
    %v3679 = vtanh.pop %v3551
    %v3680 = vtanh.pop %v3552
    %v3681 = vtanh.pop %v3553
    %v3682 = vtanh.pop %v3554
    %v3683 = vtanh.pop %v3555
    %v3684 = vtanh.pop %v3556
    %v3685 = vtanh.pop %v3557
    %v3686 = vtanh.pop %v3558
    %v3687 = vtanh.pop %v3559
    %v3688 = vtanh.pop %v3560
    %v3689 = vtanh.pop %v3561
    %v3690 = vtanh.pop %v3562
    %v3691 = vtanh.pop %v3563
    %v3692 = vtanh.pop %v3564
    %v3693 = vtanh.pop %v3565
    %v3694 = vtanh.pop %v3566
    %v3695 = vtanh.pop %v3567
    %v3696 = vtanh.pop %v3568
    %v3697 = vtanh.pop %v3569
    %v3698 = vtanh.pop %v3570
    %v3699 = vtanh.pop %v3571
    %v3700 = vtanh.pop %v3572
    %v3701 = vtanh.pop %v3573
    %v3702 = vtanh.pop %v3574
    %v3703 = vtanh.pop %v3575
    %v3704 = vtanh.pop %v3576
    %v3705 = vtanh.pop %v3577
    %v3706 = vtanh.pop %v3578
    %v3707 = vtanh.pop %v3579
    %v3708 = vtanh.pop %v3580
    %v3709 = vtanh.pop %v3581
    %v3710 = vtanh.pop %v3582
    %v3711 = vtanh.pop %v3583
    %v3712 = vtanh.pop %v3584
    %v3713 = vtanh.pop %v3585
    %v3714 = vtanh.pop %v3586
    %v3715 = vtanh.pop %v3587
    %v3716 = vtanh.pop %v3588
    %v3717 = vtanh.pop %v3589
    %v3718 = vtanh.pop %v3590
    %v3719 = vtanh.pop %v3591
    %v3720 = vtanh.pop %v3592
    %v3721 = vtanh.pop %v3593
    %v3722 = vtanh.pop %v3594
    %v3723 = vtanh.pop %v3595
    %v3724 = vtanh.pop %v3596
    %v3725 = vtanh.pop %v3597
    %v3726 = vtanh.pop %v3598
    %v3727 = vtanh.pop %v3599
    %v3728 = vtanh.pop %v3600
    %v3729 = vtanh.pop %v3601
    %v3730 = vtanh.pop %v3602
    %v3731 = vtanh.pop %v3603
    %v3732 = vtanh.pop %v3604
    %v3733 = vtanh.pop %v3605
    %v3734 = vtanh.pop %v3606
    %v3735 = vtanh.pop %v3607
    %v3736 = vtanh.pop %v3608
    %v3737 = vtanh.pop %v3609
    %v3738 = vtanh.pop %v3610
    %v3739 = vtanh.pop %v3611
    %v3740 = vtanh.pop %v3612
    %v3741 = vtanh.pop %v3613
    %v3742 = vtanh.pop %v3614
    %v3743 = vtanh.pop %v3615
    %v3744 = vtanh.pop %v3616
    %v3745 = vtanh.pop %v3617
    %v3746 = vtanh.pop %v3618
    %v3747 = vtanh.pop %v3619
    %v3748 = vtanh.pop %v3620
    %v3749 = vtanh.pop %v3621
    %v3750 = vtanh.pop %v3622
    %v3751 = vtanh.pop %v3623
    %v3752 = vtanh.pop %v3624
    %v3753 = vtanh.pop %v3625
    %v3754 = vtanh.pop %v3626
    %v3755 = vtanh.pop %v3627
    %v3756 = vtanh.pop %v3628
    %v3757 = vtanh.pop %v3629
    %v3758 = vtanh.pop %v3630
    %v3759 = vtanh.pop %v3631
    %v3760 = vtanh.pop %v3632
    %v3761 = vadd.f32 %v3633, 1.0
    %v3762 = vadd.f32 %v3634, 1.0
    %v3763 = vadd.f32 %v3635, 1.0
    %v3764 = vadd.f32 %v3636, 1.0
    %v3765 = vadd.f32 %v3637, 1.0
    %v3766 = vadd.f32 %v3638, 1.0
    %v3767 = vadd.f32 %v3639, 1.0
    %v3768 = vadd.f32 %v3640, 1.0
    %v3769 = vadd.f32 %v3641, 1.0
    %v3770 = vadd.f32 %v3642, 1.0
    %v3771 = vadd.f32 %v3643, 1.0
    %v3772 = vadd.f32 %v3644, 1.0
    %v3773 = vadd.f32 %v3645, 1.0
    %v3774 = vadd.f32 %v3646, 1.0
    %v3775 = vadd.f32 %v3647, 1.0
    %v3776 = vadd.f32 %v3648, 1.0
    %v3777 = vadd.f32 %v3649, 1.0
    %v3778 = vadd.f32 %v3650, 1.0
    %v3779 = vadd.f32 %v3651, 1.0
    %v3780 = vadd.f32 %v3652, 1.0
    %v3781 = vadd.f32 %v3653, 1.0
    %v3782 = vadd.f32 %v3654, 1.0
    %v3783 = vadd.f32 %v3655, 1.0
    %v3784 = vadd.f32 %v3656, 1.0
    %v3785 = vadd.f32 %v3657, 1.0
    %v3786 = vadd.f32 %v3658, 1.0
    %v3787 = vadd.f32 %v3659, 1.0
    %v3788 = vadd.f32 %v3660, 1.0
    %v3789 = vadd.f32 %v3661, 1.0
    %v3790 = vadd.f32 %v3662, 1.0
    %v3791 = vadd.f32 %v3663, 1.0
    %v3792 = vadd.f32 %v3664, 1.0
    %v3793 = vadd.f32 %v3665, 1.0
    %v3794 = vadd.f32 %v3666, 1.0
    %v3795 = vadd.f32 %v3667, 1.0
    %v3796 = vadd.f32 %v3668, 1.0
    %v3797 = vadd.f32 %v3669, 1.0
    %v3798 = vadd.f32 %v3670, 1.0
    %v3799 = vadd.f32 %v3671, 1.0
    %v3800 = vadd.f32 %v3672, 1.0
    %v3801 = vadd.f32 %v3673, 1.0
    %v3802 = vadd.f32 %v3674, 1.0
    %v3803 = vadd.f32 %v3675, 1.0
    %v3804 = vadd.f32 %v3676, 1.0
    %v3805 = vadd.f32 %v3677, 1.0
    %v3806 = vadd.f32 %v3678, 1.0
    %v3807 = vadd.f32 %v3679, 1.0
    %v3808 = vadd.f32 %v3680, 1.0
    %v3809 = vadd.f32 %v3681, 1.0
    %v3810 = vadd.f32 %v3682, 1.0
    %v3811 = vadd.f32 %v3683, 1.0
    %v3812 = vadd.f32 %v3684, 1.0
    %v3813 = vadd.f32 %v3685, 1.0
    %v3814 = vadd.f32 %v3686, 1.0
    %v3815 = vadd.f32 %v3687, 1.0
    %v3816 = vadd.f32 %v3688, 1.0
    %v3817 = vadd.f32 %v3689, 1.0
    %v3818 = vadd.f32 %v3690, 1.0
    %v3819 = vadd.f32 %v3691, 1.0
    %v3820 = vadd.f32 %v3692, 1.0
    %v3821 = vadd.f32 %v3693, 1.0
    %v3822 = vadd.f32 %v3694, 1.0
    %v3823 = vadd.f32 %v3695, 1.0
    %v3824 = vadd.f32 %v3696, 1.0
    %v3825 = vadd.f32 %v3697, 1.0
    %v3826 = vadd.f32 %v3698, 1.0
    %v3827 = vadd.f32 %v3699, 1.0
    %v3828 = vadd.f32 %v3700, 1.0
    %v3829 = vadd.f32 %v3701, 1.0
    %v3830 = vadd.f32 %v3702, 1.0
    %v3831 = vadd.f32 %v3703, 1.0
    %v3832 = vadd.f32 %v3704, 1.0
    %v3833 = vadd.f32 %v3705, 1.0
    %v3834 = vadd.f32 %v3706, 1.0
    %v3835 = vadd.f32 %v3707, 1.0
    %v3836 = vadd.f32 %v3708, 1.0
    %v3837 = vadd.f32 %v3709, 1.0
    %v3838 = vadd.f32 %v3710, 1.0
    %v3839 = vadd.f32 %v3711, 1.0
    %v3840 = vadd.f32 %v3712, 1.0
    %v3841 = vadd.f32 %v3713, 1.0
    %v3842 = vadd.f32 %v3714, 1.0
    %v3843 = vadd.f32 %v3715, 1.0
    %v3844 = vadd.f32 %v3716, 1.0
    %v3845 = vadd.f32 %v3717, 1.0
    %v3846 = vadd.f32 %v3718, 1.0
    %v3847 = vadd.f32 %v3719, 1.0
    %v3848 = vadd.f32 %v3720, 1.0
    %v3849 = vadd.f32 %v3721, 1.0
    %v3850 = vadd.f32 %v3722, 1.0
    %v3851 = vadd.f32 %v3723, 1.0
    %v3852 = vadd.f32 %v3724, 1.0
    %v3853 = vadd.f32 %v3725, 1.0
    %v3854 = vadd.f32 %v3726, 1.0
    %v3855 = vadd.f32 %v3727, 1.0
    %v3856 = vadd.f32 %v3728, 1.0
    %v3857 = vadd.f32 %v3729, 1.0
    %v3858 = vadd.f32 %v3730, 1.0
    %v3859 = vadd.f32 %v3731, 1.0
    %v3860 = vadd.f32 %v3732, 1.0
    %v3861 = vadd.f32 %v3733, 1.0
    %v3862 = vadd.f32 %v3734, 1.0
    %v3863 = vadd.f32 %v3735, 1.0
    %v3864 = vadd.f32 %v3736, 1.0
    %v3865 = vadd.f32 %v3737, 1.0
    %v3866 = vadd.f32 %v3738, 1.0
    %v3867 = vadd.f32 %v3739, 1.0
    %v3868 = vadd.f32 %v3740, 1.0
    %v3869 = vadd.f32 %v3741, 1.0
    %v3870 = vadd.f32 %v3742, 1.0
    %v3871 = vadd.f32 %v3743, 1.0
    %v3872 = vadd.f32 %v3744, 1.0
    %v3873 = vadd.f32 %v3745, 1.0
    %v3874 = vadd.f32 %v3746, 1.0
    %v3875 = vadd.f32 %v3747, 1.0
    %v3876 = vadd.f32 %v3748, 1.0
    %v3877 = vadd.f32 %v3749, 1.0
    %v3878 = vadd.f32 %v3750, 1.0
    %v3879 = vadd.f32 %v3751, 1.0
    %v3880 = vadd.f32 %v3752, 1.0
    %v3881 = vadd.f32 %v3753, 1.0
    %v3882 = vadd.f32 %v3754, 1.0
    %v3883 = vadd.f32 %v3755, 1.0
    %v3884 = vadd.f32 %v3756, 1.0
    %v3885 = vadd.f32 %v3757, 1.0
    %v3886 = vadd.f32 %v3758, 1.0
    %v3887 = vadd.f32 %v3759, 1.0
    %v3888 = vadd.f32 %v3760, 1.0
    %v3889 = vmul.f32 %v3761, 0.5
    %v3890 = vmul.f32 %v3762, 0.5
    %v3891 = vmul.f32 %v3763, 0.5
    %v3892 = vmul.f32 %v3764, 0.5
    %v3893 = vmul.f32 %v3765, 0.5
    %v3894 = vmul.f32 %v3766, 0.5
    %v3895 = vmul.f32 %v3767, 0.5
    %v3896 = vmul.f32 %v3768, 0.5
    %v3897 = vmul.f32 %v3769, 0.5
    %v3898 = vmul.f32 %v3770, 0.5
    %v3899 = vmul.f32 %v3771, 0.5
    %v3900 = vmul.f32 %v3772, 0.5
    %v3901 = vmul.f32 %v3773, 0.5
    %v3902 = vmul.f32 %v3774, 0.5
    %v3903 = vmul.f32 %v3775, 0.5
    %v3904 = vmul.f32 %v3776, 0.5
    %v3905 = vmul.f32 %v3777, 0.5
    %v3906 = vmul.f32 %v3778, 0.5
    %v3907 = vmul.f32 %v3779, 0.5
    %v3908 = vmul.f32 %v3780, 0.5
    %v3909 = vmul.f32 %v3781, 0.5
    %v3910 = vmul.f32 %v3782, 0.5
    %v3911 = vmul.f32 %v3783, 0.5
    %v3912 = vmul.f32 %v3784, 0.5
    %v3913 = vmul.f32 %v3785, 0.5
    %v3914 = vmul.f32 %v3786, 0.5
    %v3915 = vmul.f32 %v3787, 0.5
    %v3916 = vmul.f32 %v3788, 0.5
    %v3917 = vmul.f32 %v3789, 0.5
    %v3918 = vmul.f32 %v3790, 0.5
    %v3919 = vmul.f32 %v3791, 0.5
    %v3920 = vmul.f32 %v3792, 0.5
    %v3921 = vmul.f32 %v3793, 0.5
    %v3922 = vmul.f32 %v3794, 0.5
    %v3923 = vmul.f32 %v3795, 0.5
    %v3924 = vmul.f32 %v3796, 0.5
    %v3925 = vmul.f32 %v3797, 0.5
    %v3926 = vmul.f32 %v3798, 0.5
    %v3927 = vmul.f32 %v3799, 0.5
    %v3928 = vmul.f32 %v3800, 0.5
    %v3929 = vmul.f32 %v3801, 0.5
    %v3930 = vmul.f32 %v3802, 0.5
    %v3931 = vmul.f32 %v3803, 0.5
    %v3932 = vmul.f32 %v3804, 0.5
    %v3933 = vmul.f32 %v3805, 0.5
    %v3934 = vmul.f32 %v3806, 0.5
    %v3935 = vmul.f32 %v3807, 0.5
    %v3936 = vmul.f32 %v3808, 0.5
    %v3937 = vmul.f32 %v3809, 0.5
    %v3938 = vmul.f32 %v3810, 0.5
    %v3939 = vmul.f32 %v3811, 0.5
    %v3940 = vmul.f32 %v3812, 0.5
    %v3941 = vmul.f32 %v3813, 0.5
    %v3942 = vmul.f32 %v3814, 0.5
    %v3943 = vmul.f32 %v3815, 0.5
    %v3944 = vmul.f32 %v3816, 0.5
    %v3945 = vmul.f32 %v3817, 0.5
    %v3946 = vmul.f32 %v3818, 0.5
    %v3947 = vmul.f32 %v3819, 0.5
    %v3948 = vmul.f32 %v3820, 0.5
    %v3949 = vmul.f32 %v3821, 0.5
    %v3950 = vmul.f32 %v3822, 0.5
    %v3951 = vmul.f32 %v3823, 0.5
    %v3952 = vmul.f32 %v3824, 0.5
    %v3953 = vmul.f32 %v3825, 0.5
    %v3954 = vmul.f32 %v3826, 0.5
    %v3955 = vmul.f32 %v3827, 0.5
    %v3956 = vmul.f32 %v3828, 0.5
    %v3957 = vmul.f32 %v3829, 0.5
    %v3958 = vmul.f32 %v3830, 0.5
    %v3959 = vmul.f32 %v3831, 0.5
    %v3960 = vmul.f32 %v3832, 0.5
    %v3961 = vmul.f32 %v3833, 0.5
    %v3962 = vmul.f32 %v3834, 0.5
    %v3963 = vmul.f32 %v3835, 0.5
    %v3964 = vmul.f32 %v3836, 0.5
    %v3965 = vmul.f32 %v3837, 0.5
    %v3966 = vmul.f32 %v3838, 0.5
    %v3967 = vmul.f32 %v3839, 0.5
    %v3968 = vmul.f32 %v3840, 0.5
    %v3969 = vmul.f32 %v3841, 0.5
    %v3970 = vmul.f32 %v3842, 0.5
    %v3971 = vmul.f32 %v3843, 0.5
    %v3972 = vmul.f32 %v3844, 0.5
    %v3973 = vmul.f32 %v3845, 0.5
    %v3974 = vmul.f32 %v3846, 0.5
    %v3975 = vmul.f32 %v3847, 0.5
    %v3976 = vmul.f32 %v3848, 0.5
    %v3977 = vmul.f32 %v3849, 0.5
    %v3978 = vmul.f32 %v3850, 0.5
    %v3979 = vmul.f32 %v3851, 0.5
    %v3980 = vmul.f32 %v3852, 0.5
    %v3981 = vmul.f32 %v3853, 0.5
    %v3982 = vmul.f32 %v3854, 0.5
    %v3983 = vmul.f32 %v3855, 0.5
    %v3984 = vmul.f32 %v3856, 0.5
    %v3985 = vmul.f32 %v3857, 0.5
    %v3986 = vmul.f32 %v3858, 0.5
    %v3987 = vmul.f32 %v3859, 0.5
    %v3988 = vmul.f32 %v3860, 0.5
    %v3989 = vmul.f32 %v3861, 0.5
    %v3990 = vmul.f32 %v3862, 0.5
    %v3991 = vmul.f32 %v3863, 0.5
    %v3992 = vmul.f32 %v3864, 0.5
    %v3993 = vmul.f32 %v3865, 0.5
    %v3994 = vmul.f32 %v3866, 0.5
    %v3995 = vmul.f32 %v3867, 0.5
    %v3996 = vmul.f32 %v3868, 0.5
    %v3997 = vmul.f32 %v3869, 0.5
    %v3998 = vmul.f32 %v3870, 0.5
    %v3999 = vmul.f32 %v3871, 0.5
    %v4000 = vmul.f32 %v3872, 0.5
    %v4001 = vmul.f32 %v3873, 0.5
    %v4002 = vmul.f32 %v3874, 0.5
    %v4003 = vmul.f32 %v3875, 0.5
    %v4004 = vmul.f32 %v3876, 0.5
    %v4005 = vmul.f32 %v3877, 0.5
    %v4006 = vmul.f32 %v3878, 0.5
    %v4007 = vmul.f32 %v3879, 0.5
    %v4008 = vmul.f32 %v3880, 0.5
    %v4009 = vmul.f32 %v3881, 0.5
    %v4010 = vmul.f32 %v3882, 0.5
    %v4011 = vmul.f32 %v3883, 0.5
    %v4012 = vmul.f32 %v3884, 0.5
    %v4013 = vmul.f32 %v3885, 0.5
    %v4014 = vmul.f32 %v3886, 0.5
    %v4015 = vmul.f32 %v3887, 0.5
    %v4016 = vmul.f32 %v3888, 0.5
    %v4017 = vmul.f32 %v2611, %v3889
    %v4018 = vmul.f32 %v2660, %v3890
    %v4019 = vmul.f32 %v2709, %v3891
    %v4020 = vmul.f32 %v2758, %v3892
    %v4021 = vmul.f32 %v2807, %v3893
    %v4022 = vmul.f32 %v2856, %v3894
    %v4023 = vmul.f32 %v2905, %v3895
    %v4024 = vmul.f32 %v2954, %v3896
    %v4025 = vmul.f32 %v2613, %v3897
    %v4026 = vmul.f32 %v2662, %v3898
    %v4027 = vmul.f32 %v2711, %v3899
    %v4028 = vmul.f32 %v2760, %v3900
    %v4029 = vmul.f32 %v2809, %v3901
    %v4030 = vmul.f32 %v2858, %v3902
    %v4031 = vmul.f32 %v2907, %v3903
    %v4032 = vmul.f32 %v2956, %v3904
    %v4033 = vmul.f32 %v2616, %v3905
    %v4034 = vmul.f32 %v2665, %v3906
    %v4035 = vmul.f32 %v2714, %v3907
    %v4036 = vmul.f32 %v2763, %v3908
    %v4037 = vmul.f32 %v2812, %v3909
    %v4038 = vmul.f32 %v2861, %v3910
    %v4039 = vmul.f32 %v2910, %v3911
    %v4040 = vmul.f32 %v2959, %v3912
    %v4041 = vmul.f32 %v2618, %v3913
    %v4042 = vmul.f32 %v2667, %v3914
    %v4043 = vmul.f32 %v2716, %v3915
    %v4044 = vmul.f32 %v2765, %v3916
    %v4045 = vmul.f32 %v2814, %v3917
    %v4046 = vmul.f32 %v2863, %v3918
    %v4047 = vmul.f32 %v2912, %v3919
    %v4048 = vmul.f32 %v2961, %v3920
    %v4049 = vmul.f32 %v2621, %v3921
    %v4050 = vmul.f32 %v2670, %v3922
    %v4051 = vmul.f32 %v2719, %v3923
    %v4052 = vmul.f32 %v2768, %v3924
    %v4053 = vmul.f32 %v2817, %v3925
    %v4054 = vmul.f32 %v2866, %v3926
    %v4055 = vmul.f32 %v2915, %v3927
    %v4056 = vmul.f32 %v2964, %v3928
    %v4057 = vmul.f32 %v2623, %v3929
    %v4058 = vmul.f32 %v2672, %v3930
    %v4059 = vmul.f32 %v2721, %v3931
    %v4060 = vmul.f32 %v2770, %v3932
    %v4061 = vmul.f32 %v2819, %v3933
    %v4062 = vmul.f32 %v2868, %v3934
    %v4063 = vmul.f32 %v2917, %v3935
    %v4064 = vmul.f32 %v2966, %v3936
    %v4065 = vmul.f32 %v2626, %v3937
    %v4066 = vmul.f32 %v2675, %v3938
    %v4067 = vmul.f32 %v2724, %v3939
    %v4068 = vmul.f32 %v2773, %v3940
    %v4069 = vmul.f32 %v2822, %v3941
    %v4070 = vmul.f32 %v2871, %v3942
    %v4071 = vmul.f32 %v2920, %v3943
    %v4072 = vmul.f32 %v2969, %v3944
    %v4073 = vmul.f32 %v2628, %v3945
    %v4074 = vmul.f32 %v2677, %v3946
    %v4075 = vmul.f32 %v2726, %v3947
    %v4076 = vmul.f32 %v2775, %v3948
    %v4077 = vmul.f32 %v2824, %v3949
    %v4078 = vmul.f32 %v2873, %v3950
    %v4079 = vmul.f32 %v2922, %v3951
    %v4080 = vmul.f32 %v2971, %v3952
    %v4081 = vmul.f32 %v2631, %v3953
    %v4082 = vmul.f32 %v2680, %v3954
    %v4083 = vmul.f32 %v2729, %v3955
    %v4084 = vmul.f32 %v2778, %v3956
    %v4085 = vmul.f32 %v2827, %v3957
    %v4086 = vmul.f32 %v2876, %v3958
    %v4087 = vmul.f32 %v2925, %v3959
    %v4088 = vmul.f32 %v2974, %v3960
    %v4089 = vmul.f32 %v2633, %v3961
    %v4090 = vmul.f32 %v2682, %v3962
    %v4091 = vmul.f32 %v2731, %v3963
    %v4092 = vmul.f32 %v2780, %v3964
    %v4093 = vmul.f32 %v2829, %v3965
    %v4094 = vmul.f32 %v2878, %v3966
    %v4095 = vmul.f32 %v2927, %v3967
    %v4096 = vmul.f32 %v2976, %v3968
    %v4097 = vmul.f32 %v2636, %v3969
    %v4098 = vmul.f32 %v2685, %v3970
    %v4099 = vmul.f32 %v2734, %v3971
    %v4100 = vmul.f32 %v2783, %v3972
    %v4101 = vmul.f32 %v2832, %v3973
    %v4102 = vmul.f32 %v2881, %v3974
    %v4103 = vmul.f32 %v2930, %v3975
    %v4104 = vmul.f32 %v2979, %v3976
    %v4105 = vmul.f32 %v2638, %v3977
    %v4106 = vmul.f32 %v2687, %v3978
    %v4107 = vmul.f32 %v2736, %v3979
    %v4108 = vmul.f32 %v2785, %v3980
    %v4109 = vmul.f32 %v2834, %v3981
    %v4110 = vmul.f32 %v2883, %v3982
    %v4111 = vmul.f32 %v2932, %v3983
    %v4112 = vmul.f32 %v2981, %v3984
    %v4113 = vmul.f32 %v2641, %v3985
    %v4114 = vmul.f32 %v2690, %v3986
    %v4115 = vmul.f32 %v2739, %v3987
    %v4116 = vmul.f32 %v2788, %v3988
    %v4117 = vmul.f32 %v2837, %v3989
    %v4118 = vmul.f32 %v2886, %v3990
    %v4119 = vmul.f32 %v2935, %v3991
    %v4120 = vmul.f32 %v2984, %v3992
    %v4121 = vmul.f32 %v2643, %v3993
    %v4122 = vmul.f32 %v2692, %v3994
    %v4123 = vmul.f32 %v2741, %v3995
    %v4124 = vmul.f32 %v2790, %v3996
    %v4125 = vmul.f32 %v2839, %v3997
    %v4126 = vmul.f32 %v2888, %v3998
    %v4127 = vmul.f32 %v2937, %v3999
    %v4128 = vmul.f32 %v2986, %v4000
    %v4129 = vmul.f32 %v2646, %v4001
    %v4130 = vmul.f32 %v2695, %v4002
    %v4131 = vmul.f32 %v2744, %v4003
    %v4132 = vmul.f32 %v2793, %v4004
    %v4133 = vmul.f32 %v2842, %v4005
    %v4134 = vmul.f32 %v2891, %v4006
    %v4135 = vmul.f32 %v2940, %v4007
    %v4136 = vmul.f32 %v2989, %v4008
    %v4137 = vmul.f32 %v2648, %v4009
    %v4138 = vmul.f32 %v2697, %v4010
    %v4139 = vmul.f32 %v2746, %v4011
    %v4140 = vmul.f32 %v2795, %v4012
    %v4141 = vmul.f32 %v2844, %v4013
    %v4142 = vmul.f32 %v2893, %v4014
    %v4143 = vmul.f32 %v2942, %v4015
    %v4144 = vmul.f32 %v2991, %v4016
    %v4145 = vld [vmem:[%s7] sm:$0xf]
    %v4146 = vld [vmem:[%s7 + $0x4] sm:$0xf]
    %v4147 = vld [vmem:[%s7 + $0x8] sm:$0xf]
    %v4148 = vld [vmem:[%s7 + $0xc] sm:$0xf]
    %v4149 = vld [vmem:[%s7 + $0x10] sm:$0xf]
    %v4150 = vld [vmem:[%s7 + $0x14] sm:$0xf]
    %v4151 = vld [vmem:[%s7 + $0x18] sm:$0xf]
    %v4152 = vld [vmem:[%s7 + $0x1c] sm:$0xf]
    %v4153 = vld [vmem:[%s7 + $0x20] sm:$0xf]
    %v4154 = vld [vmem:[%s7 + $0x24] sm:$0xf]
    %v4155 = vld [vmem:[%s7 + $0x28] sm:$0xf]
    %v4156 = vld [vmem:[%s7 + $0x2c] sm:$0xf]
    %v4157 = vld [vmem:[%s7 + $0x30] sm:$0xf]
    %v4158 = vld [vmem:[%s7 + $0x34] sm:$0xf]
    %v4159 = vld [vmem:[%s7 + $0x38] sm:$0xf]
    %v4160 = vld [vmem:[%s7 + $0x3c] sm:$0xf]
    %v4161 = vld [vmem:[%s7 + $0x40] sm:$0xf]
    %v4162 = vld [vmem:[%s7 + $0x44] sm:$0xf]
    %v4163 = vld [vmem:[%s7 + $0x48] sm:$0xf]
    %v4164 = vld [vmem:[%s7 + $0x4c] sm:$0xf]
    %v4165 = vld [vmem:[%s7 + $0x50] sm:$0xf]
    %v4166 = vld [vmem:[%s7 + $0x54] sm:$0xf]
    %v4167 = vld [vmem:[%s7 + $0x58] sm:$0xf]
    %v4168 = vld [vmem:[%s7 + $0x5c] sm:$0xf]
    %v4169 = vld [vmem:[%s7 + $0x60] sm:$0xf]
    %v4170 = vld [vmem:[%s7 + $0x64] sm:$0xf]
    %v4171 = vld [vmem:[%s7 + $0x68] sm:$0xf]
    %v4172 = vld [vmem:[%s7 + $0x6c] sm:$0xf]
    %v4173 = vld [vmem:[%s7 + $0x70] sm:$0xf]
    %v4174 = vld [vmem:[%s7 + $0x74] sm:$0xf]
    %v4175 = vld [vmem:[%s7 + $0x78] sm:$0xf]
    %v4176 = vld [vmem:[%s7 + $0x7c] sm:$0xf]
    %v4177 = vpack.c.bf16 %v4025, %v4017
    %v4178 = vpack.c.bf16 %v4026, %v4018
    %v4179 = vpack.c.bf16 %v4027, %v4019
    %v4180 = vpack.c.bf16 %v4028, %v4020
    %v4181 = vpack.c.bf16 %v4029, %v4021
    %v4182 = vpack.c.bf16 %v4030, %v4022
    %v4183 = vpack.c.bf16 %v4031, %v4023
    %v4184 = vpack.c.bf16 %v4032, %v4024
    %v4185 = vpack.c.bf16 %v4041, %v4033
    %v4186 = vpack.c.bf16 %v4042, %v4034
    %v4187 = vpack.c.bf16 %v4043, %v4035
    %v4188 = vpack.c.bf16 %v4044, %v4036
    %v4189 = vpack.c.bf16 %v4045, %v4037
    %v4190 = vpack.c.bf16 %v4046, %v4038
    %v4191 = vpack.c.bf16 %v4047, %v4039
    %v4192 = vpack.c.bf16 %v4048, %v4040
    %v4193 = vpack.c.bf16 %v4057, %v4049
    %v4194 = vpack.c.bf16 %v4058, %v4050
    %v4195 = vpack.c.bf16 %v4059, %v4051
    %v4196 = vpack.c.bf16 %v4060, %v4052
    %v4197 = vpack.c.bf16 %v4061, %v4053
    %v4198 = vpack.c.bf16 %v4062, %v4054
    %v4199 = vpack.c.bf16 %v4063, %v4055
    %v4200 = vpack.c.bf16 %v4064, %v4056
    %v4201 = vpack.c.bf16 %v4073, %v4065
    %v4202 = vpack.c.bf16 %v4074, %v4066
    %v4203 = vpack.c.bf16 %v4075, %v4067
    %v4204 = vpack.c.bf16 %v4076, %v4068
    %v4205 = vpack.c.bf16 %v4077, %v4069
    %v4206 = vpack.c.bf16 %v4078, %v4070
    %v4207 = vpack.c.bf16 %v4079, %v4071
    %v4208 = vpack.c.bf16 %v4080, %v4072
    %v4209 = vpack.c.bf16 %v4089, %v4081
    %v4210 = vpack.c.bf16 %v4090, %v4082
    %v4211 = vpack.c.bf16 %v4091, %v4083
    %v4212 = vpack.c.bf16 %v4092, %v4084
    %v4213 = vpack.c.bf16 %v4093, %v4085
    %v4214 = vpack.c.bf16 %v4094, %v4086
    %v4215 = vpack.c.bf16 %v4095, %v4087
    %v4216 = vpack.c.bf16 %v4096, %v4088
    %v4217 = vpack.c.bf16 %v4105, %v4097
    %v4218 = vpack.c.bf16 %v4106, %v4098
    %v4219 = vpack.c.bf16 %v4107, %v4099
    %v4220 = vpack.c.bf16 %v4108, %v4100
    %v4221 = vpack.c.bf16 %v4109, %v4101
    %v4222 = vpack.c.bf16 %v4110, %v4102
    %v4223 = vpack.c.bf16 %v4111, %v4103
    %v4224 = vpack.c.bf16 %v4112, %v4104
    %v4225 = vpack.c.bf16 %v4121, %v4113
    %v4226 = vpack.c.bf16 %v4122, %v4114
    %v4227 = vpack.c.bf16 %v4123, %v4115
    %v4228 = vpack.c.bf16 %v4124, %v4116
    %v4229 = vpack.c.bf16 %v4125, %v4117
    %v4230 = vpack.c.bf16 %v4126, %v4118
    %v4231 = vpack.c.bf16 %v4127, %v4119
    %v4232 = vpack.c.bf16 %v4128, %v4120
    %v4233 = vpack.c.bf16 %v4137, %v4129
    %v4234 = vpack.c.bf16 %v4138, %v4130
    %v4235 = vpack.c.bf16 %v4139, %v4131
    %v4236 = vpack.c.bf16 %v4140, %v4132
    %v4237 = vpack.c.bf16 %v4141, %v4133
    %v4238 = vpack.c.bf16 %v4142, %v4134
    %v4239 = vpack.c.bf16 %v4143, %v4135
    %v4240 = vpack.c.bf16 %v4144, %v4136
    %v4241 = vld [vmem:[%s8] sm:$0xff]
    %v4242 = vld [vmem:[%s8 + $0x8] sm:$0xff]
    %v4243 = vld [vmem:[%s8 + $0x10] sm:$0xff]
    %v4244 = vld [vmem:[%s8 + $0x18] sm:$0xff]
    %v4245 = vld [vmem:[%s8 + $0x20] sm:$0xff]
    %v4246 = vld [vmem:[%s8 + $0x28] sm:$0xff]
    %v4247 = vld [vmem:[%s8 + $0x30] sm:$0xff]
    %v4248 = vld [vmem:[%s8 + $0x38] sm:$0xff]
    %v4249 = vld [vmem:[%s8 + $0x40] sm:$0xff]
    %v4250 = vld [vmem:[%s8 + $0x48] sm:$0xff]
    %v4251 = vld [vmem:[%s8 + $0x50] sm:$0xff]
    %v4252 = vld [vmem:[%s8 + $0x58] sm:$0xff]
    %v4253 = vld [vmem:[%s8 + $0x60] sm:$0xff]
    %v4254 = vld [vmem:[%s8 + $0x68] sm:$0xff]
    %v4255 = vld [vmem:[%s8 + $0x70] sm:$0xff]
    %v4256 = vld [vmem:[%s8 + $0x78] sm:$0xff]
    %v4257 = vld [vmem:[%s8 + $0x80] sm:$0xff]
    %v4258 = vld [vmem:[%s8 + $0x88] sm:$0xff]
    %v4259 = vld [vmem:[%s8 + $0x90] sm:$0xff]
    %v4260 = vld [vmem:[%s8 + $0x98] sm:$0xff]
    %v4261 = vld [vmem:[%s8 + $0xa0] sm:$0xff]
    %v4262 = vld [vmem:[%s8 + $0xa8] sm:$0xff]
    %v4263 = vld [vmem:[%s8 + $0xb0] sm:$0xff]
    %v4264 = vld [vmem:[%s8 + $0xb8] sm:$0xff]
    %v4265 = vld [vmem:[%s8 + $0xc0] sm:$0xff]
    %v4266 = vld [vmem:[%s8 + $0xc8] sm:$0xff]
    %v4267 = vld [vmem:[%s8 + $0xd0] sm:$0xff]
    %v4268 = vld [vmem:[%s8 + $0xd8] sm:$0xff]
    %v4269 = vld [vmem:[%s8 + $0xe0] sm:$0xff]
    %v4270 = vld [vmem:[%s8 + $0xe8] sm:$0xff]
    %v4271 = vld [vmem:[%s8 + $0xf0] sm:$0xff]
    %v4272 = vld [vmem:[%s8 + $0xf8] sm:$0xff]
    %4274 = vset.pattern.permute.xlu0 0
    %4275 = vperm.xlu0 %4274, %v4241
    %v4276 = vpop.permute.xlu0 %4275
    %4279 = vset.pattern.permute.xlu0 0
    %4280 = vperm.xlu0 %4279, %v4242
    %v4281 = vpop.permute.xlu0 %4280
    %4284 = vset.pattern.permute.xlu0 0
    %4285 = vperm.xlu0 %4284, %v4243
    %v4286 = vpop.permute.xlu0 %4285
    %4289 = vset.pattern.permute.xlu0 0
    %4290 = vperm.xlu0 %4289, %v4244
    %v4291 = vpop.permute.xlu0 %4290
    %4294 = vset.pattern.permute.xlu0 0
    %4295 = vperm.xlu0 %4294, %v4245
    %v4296 = vpop.permute.xlu0 %4295
    %4299 = vset.pattern.permute.xlu0 0
    %4300 = vperm.xlu0 %4299, %v4246
    %v4301 = vpop.permute.xlu0 %4300
    %4304 = vset.pattern.permute.xlu0 0
    %4305 = vperm.xlu0 %4304, %v4247
    %v4306 = vpop.permute.xlu0 %4305
    %4309 = vset.pattern.permute.xlu0 0
    %4310 = vperm.xlu0 %4309, %v4248
    %v4311 = vpop.permute.xlu0 %4310
    %4314 = vset.pattern.permute.xlu0 0
    %4315 = vperm.xlu0 %4314, %v4249
    %v4316 = vpop.permute.xlu0 %4315
    %4319 = vset.pattern.permute.xlu0 0
    %4320 = vperm.xlu0 %4319, %v4250
    %v4321 = vpop.permute.xlu0 %4320
    %4324 = vset.pattern.permute.xlu0 0
    %4325 = vperm.xlu0 %4324, %v4251
    %v4326 = vpop.permute.xlu0 %4325
    %4329 = vset.pattern.permute.xlu0 0
    %4330 = vperm.xlu0 %4329, %v4252
    %v4331 = vpop.permute.xlu0 %4330
    %4334 = vset.pattern.permute.xlu0 0
    %4335 = vperm.xlu0 %4334, %v4253
    %v4336 = vpop.permute.xlu0 %4335
    %4339 = vset.pattern.permute.xlu0 0
    %4340 = vperm.xlu0 %4339, %v4254
    %v4341 = vpop.permute.xlu0 %4340
    %4344 = vset.pattern.permute.xlu0 0
    %4345 = vperm.xlu0 %4344, %v4255
    %v4346 = vpop.permute.xlu0 %4345
    %4349 = vset.pattern.permute.xlu0 0
    %4350 = vperm.xlu0 %4349, %v4256
    %v4351 = vpop.permute.xlu0 %4350
    %4354 = vset.pattern.permute.xlu0 0
    %4355 = vperm.xlu0 %4354, %v4257
    %v4356 = vpop.permute.xlu0 %4355
    %4359 = vset.pattern.permute.xlu0 0
    %4360 = vperm.xlu0 %4359, %v4258
    %v4361 = vpop.permute.xlu0 %4360
    %4364 = vset.pattern.permute.xlu0 0
    %4365 = vperm.xlu0 %4364, %v4259
    %v4366 = vpop.permute.xlu0 %4365
    %4369 = vset.pattern.permute.xlu0 0
    %4370 = vperm.xlu0 %4369, %v4260
    %v4371 = vpop.permute.xlu0 %4370
    %4374 = vset.pattern.permute.xlu0 0
    %4375 = vperm.xlu0 %4374, %v4261
    %v4376 = vpop.permute.xlu0 %4375
    %4379 = vset.pattern.permute.xlu0 0
    %4380 = vperm.xlu0 %4379, %v4262
    %v4381 = vpop.permute.xlu0 %4380
    %4384 = vset.pattern.permute.xlu0 0
    %4385 = vperm.xlu0 %4384, %v4263
    %v4386 = vpop.permute.xlu0 %4385
    %4389 = vset.pattern.permute.xlu0 0
    %4390 = vperm.xlu0 %4389, %v4264
    %v4391 = vpop.permute.xlu0 %4390
    %4394 = vset.pattern.permute.xlu0 0
    %4395 = vperm.xlu0 %4394, %v4265
    %v4396 = vpop.permute.xlu0 %4395
    %4399 = vset.pattern.permute.xlu0 0
    %4400 = vperm.xlu0 %4399, %v4266
    %v4401 = vpop.permute.xlu0 %4400
    %4404 = vset.pattern.permute.xlu0 0
    %4405 = vperm.xlu0 %4404, %v4267
    %v4406 = vpop.permute.xlu0 %4405
    %4409 = vset.pattern.permute.xlu0 0
    %4410 = vperm.xlu0 %4409, %v4268
    %v4411 = vpop.permute.xlu0 %4410
    %4414 = vset.pattern.permute.xlu0 0
    %4415 = vperm.xlu0 %4414, %v4269
    %v4416 = vpop.permute.xlu0 %4415
    %4419 = vset.pattern.permute.xlu0 0
    %4420 = vperm.xlu0 %4419, %v4270
    %v4421 = vpop.permute.xlu0 %4420
    %4424 = vset.pattern.permute.xlu0 0
    %4425 = vperm.xlu0 %4424, %v4271
    %v4426 = vpop.permute.xlu0 %4425
    %4429 = vset.pattern.permute.xlu0 0
    %4430 = vperm.xlu0 %4429, %v4272
    %v4431 = vpop.permute.xlu0 %4430
    %v4465 = vunpack.c.l.b16 %v4145
    %v4466 = vunpack.c.l.b16 %v4146
    %v4467 = vunpack.c.l.b16 %v4147
    %v4468 = vunpack.c.l.b16 %v4148
    %v4469 = vunpack.c.l.b16 %v4149
    %v4470 = vunpack.c.l.b16 %v4150
    %v4471 = vunpack.c.l.b16 %v4151
    %v4472 = vunpack.c.l.b16 %v4152
    %v4473 = vunpack.c.l.b16 %v4153
    %v4474 = vunpack.c.l.b16 %v4154
    %v4475 = vunpack.c.l.b16 %v4155
    %v4476 = vunpack.c.l.b16 %v4156
    %v4477 = vunpack.c.l.b16 %v4157
    %v4478 = vunpack.c.l.b16 %v4158
    %v4479 = vunpack.c.l.b16 %v4159
    %v4480 = vunpack.c.l.b16 %v4160
    %v4481 = vunpack.c.l.b16 %v4161
    %v4482 = vunpack.c.l.b16 %v4162
    %v4483 = vunpack.c.l.b16 %v4163
    %v4484 = vunpack.c.l.b16 %v4164
    %v4485 = vunpack.c.l.b16 %v4165
    %v4486 = vunpack.c.l.b16 %v4166
    %v4487 = vunpack.c.l.b16 %v4167
    %v4488 = vunpack.c.l.b16 %v4168
    %v4489 = vunpack.c.l.b16 %v4169
    %v4490 = vunpack.c.l.b16 %v4170
    %v4491 = vunpack.c.l.b16 %v4171
    %v4492 = vunpack.c.l.b16 %v4172
    %v4493 = vunpack.c.l.b16 %v4173
    %v4494 = vunpack.c.l.b16 %v4174
    %v4495 = vunpack.c.l.b16 %v4175
    %v4496 = vunpack.c.l.b16 %v4176
    %v4497 = vpack.c.b16 %v4466, %v4465
    %v4498 = vpack.c.b16 %v4468, %v4467
    %v4499 = vpack.c.b16 %v4470, %v4469
    %v4500 = vpack.c.b16 %v4472, %v4471
    %v4501 = vpack.c.b16 %v4474, %v4473
    %v4502 = vpack.c.b16 %v4476, %v4475
    %v4503 = vpack.c.b16 %v4478, %v4477
    %v4504 = vpack.c.b16 %v4480, %v4479
    %v4505 = vpack.c.b16 %v4482, %v4481
    %v4506 = vpack.c.b16 %v4484, %v4483
    %v4507 = vpack.c.b16 %v4486, %v4485
    %v4508 = vpack.c.b16 %v4488, %v4487
    %v4509 = vpack.c.b16 %v4490, %v4489
    %v4510 = vpack.c.b16 %v4492, %v4491
    %v4511 = vpack.c.b16 %v4494, %v4493
    %v4512 = vpack.c.b16 %v4496, %v4495
    %4529 = vmatpush.bf16.msra.mxu0 %v4233
    %4530 = vmatpush.bf16.msra.mxu0 %v4225
    %4531 = vmatpush.bf16.msra.mxu0 %v4217
    %4532 = vmatpush.bf16.msra.mxu0 %v4209
    %4533 = vmatpush.bf16.msra.mxu0 %v4201
    %4534 = vmatpush.bf16.msra.mxu0 %v4193
    %4535 = vmatpush.bf16.msra.mxu0 %v4185
    %4536 = vmatpush.bf16.msra.mxu0 %v4177
    %4537 = vmatmul.bf16.gmra.mxu0 %v4497
    %v4538 = vpop.f32.mrf.mxu0
    %v4539 = vadd.f32 %v4276, %v4538
    %v4540 = vpop.f32.mrf.mxu0
    %v4541 = vadd.f32 %v4281, %v4540
    %4542 = vmatmul.bf16.gmra.mxu0 %v4498
    %v4543 = vpop.f32.mrf.mxu0
    %v4544 = vadd.f32 %v4286, %v4543
    %v4545 = vpop.f32.mrf.mxu0
    %v4546 = vadd.f32 %v4291, %v4545
    %4547 = vmatmul.bf16.gmra.mxu0 %v4499
    %v4548 = vpop.f32.mrf.mxu0
    %v4549 = vadd.f32 %v4296, %v4548
    %v4550 = vpop.f32.mrf.mxu0
    %v4551 = vadd.f32 %v4301, %v4550
    %4552 = vmatmul.bf16.gmra.mxu0 %v4500
    %v4553 = vpop.f32.mrf.mxu0
    %v4554 = vadd.f32 %v4306, %v4553
    %v4555 = vpop.f32.mrf.mxu0
    %v4556 = vadd.f32 %v4311, %v4555
    %4557 = vmatmul.bf16.gmra.mxu0 %v4501
    %v4558 = vpop.f32.mrf.mxu0
    %v4559 = vadd.f32 %v4316, %v4558
    %v4560 = vpop.f32.mrf.mxu0
    %v4561 = vadd.f32 %v4321, %v4560
    %4562 = vmatmul.bf16.gmra.mxu0 %v4502
    %v4563 = vpop.f32.mrf.mxu0
    %v4564 = vadd.f32 %v4326, %v4563
    %v4565 = vpop.f32.mrf.mxu0
    %v4566 = vadd.f32 %v4331, %v4565
    %4567 = vmatmul.bf16.gmra.mxu0 %v4503
    %v4568 = vpop.f32.mrf.mxu0
    %v4569 = vadd.f32 %v4336, %v4568
    %v4570 = vpop.f32.mrf.mxu0
    %v4571 = vadd.f32 %v4341, %v4570
    %4572 = vmatmul.bf16.gmra.mxu0 %v4504
    %v4573 = vpop.f32.mrf.mxu0
    %v4574 = vadd.f32 %v4346, %v4573
    %v4575 = vpop.f32.mrf.mxu0
    %v4576 = vadd.f32 %v4351, %v4575
    %4577 = vmatmul.bf16.gmra.mxu0 %v4505
    %v4578 = vpop.f32.mrf.mxu0
    %v4579 = vadd.f32 %v4356, %v4578
    %v4580 = vpop.f32.mrf.mxu0
    %v4581 = vadd.f32 %v4361, %v4580
    %4582 = vmatmul.bf16.gmra.mxu0 %v4506
    %v4583 = vpop.f32.mrf.mxu0
    %v4584 = vadd.f32 %v4366, %v4583
    %v4585 = vpop.f32.mrf.mxu0
    %v4586 = vadd.f32 %v4371, %v4585
    %4587 = vmatmul.bf16.gmra.mxu0 %v4507
    %v4588 = vpop.f32.mrf.mxu0
    %v4589 = vadd.f32 %v4376, %v4588
    %v4590 = vpop.f32.mrf.mxu0
    %v4591 = vadd.f32 %v4381, %v4590
    %4592 = vmatmul.bf16.gmra.mxu0 %v4508
    %v4593 = vpop.f32.mrf.mxu0
    %v4594 = vadd.f32 %v4386, %v4593
    %v4595 = vpop.f32.mrf.mxu0
    %v4596 = vadd.f32 %v4391, %v4595
    %4597 = vmatmul.bf16.gmra.mxu0 %v4509
    %v4598 = vpop.f32.mrf.mxu0
    %v4599 = vadd.f32 %v4396, %v4598
    %v4600 = vpop.f32.mrf.mxu0
    %v4601 = vadd.f32 %v4401, %v4600
    %4602 = vmatmul.bf16.gmra.mxu0 %v4510
    %v4603 = vpop.f32.mrf.mxu0
    %v4604 = vadd.f32 %v4406, %v4603
    %v4605 = vpop.f32.mrf.mxu0
    %v4606 = vadd.f32 %v4411, %v4605
    %4607 = vmatmul.bf16.gmra.mxu0 %v4511
    %v4608 = vpop.f32.mrf.mxu0
    %v4609 = vadd.f32 %v4416, %v4608
    %v4610 = vpop.f32.mrf.mxu0
    %v4611 = vadd.f32 %v4421, %v4610
    %4612 = vmatmul.bf16.gmra.mxu0 %v4512
    %v4613 = vpop.f32.mrf.mxu0
    %v4614 = vadd.f32 %v4426, %v4613
    %v4615 = vpop.f32.mrf.mxu0
    %v4616 = vadd.f32 %v4431, %v4615
    %4617 = vdwg.mxu0
    %4618 = vmatpush.bf16.msra.mxu0 %v4234
    %4619 = vmatpush.bf16.msra.mxu0 %v4226
    %4620 = vmatpush.bf16.msra.mxu0 %v4218
    %4621 = vmatpush.bf16.msra.mxu0 %v4210
    %4622 = vmatpush.bf16.msra.mxu0 %v4202
    %4623 = vmatpush.bf16.msra.mxu0 %v4194
    %4624 = vmatpush.bf16.msra.mxu0 %v4186
    %4625 = vmatpush.bf16.msra.mxu0 %v4178
    %4626 = vmatmul.bf16.gmra.mxu0 %v4497
    %v4627 = vpop.f32.mrf.mxu0
    %v4628 = vadd.f32 %v4276, %v4627
    %v4629 = vpop.f32.mrf.mxu0
    %v4630 = vadd.f32 %v4281, %v4629
    %4631 = vmatmul.bf16.gmra.mxu0 %v4498
    %v4632 = vpop.f32.mrf.mxu0
    %v4633 = vadd.f32 %v4286, %v4632
    %v4634 = vpop.f32.mrf.mxu0
    %v4635 = vadd.f32 %v4291, %v4634
    %4636 = vmatmul.bf16.gmra.mxu0 %v4499
    %v4637 = vpop.f32.mrf.mxu0
    %v4638 = vadd.f32 %v4296, %v4637
    %v4639 = vpop.f32.mrf.mxu0
    %v4640 = vadd.f32 %v4301, %v4639
    %4641 = vmatmul.bf16.gmra.mxu0 %v4500
    %v4642 = vpop.f32.mrf.mxu0
    %v4643 = vadd.f32 %v4306, %v4642
    %v4644 = vpop.f32.mrf.mxu0
    %v4645 = vadd.f32 %v4311, %v4644
    %4646 = vmatmul.bf16.gmra.mxu0 %v4501
    %v4647 = vpop.f32.mrf.mxu0
    %v4648 = vadd.f32 %v4316, %v4647
    %v4649 = vpop.f32.mrf.mxu0
    %v4650 = vadd.f32 %v4321, %v4649
    %4651 = vmatmul.bf16.gmra.mxu0 %v4502
    %v4652 = vpop.f32.mrf.mxu0
    %v4653 = vadd.f32 %v4326, %v4652
    %v4654 = vpop.f32.mrf.mxu0
    %v4655 = vadd.f32 %v4331, %v4654
    %4656 = vmatmul.bf16.gmra.mxu0 %v4503
    %v4657 = vpop.f32.mrf.mxu0
    %v4658 = vadd.f32 %v4336, %v4657
    %v4659 = vpop.f32.mrf.mxu0
    %v4660 = vadd.f32 %v4341, %v4659
    %4661 = vmatmul.bf16.gmra.mxu0 %v4504
    %v4662 = vpop.f32.mrf.mxu0
    %v4663 = vadd.f32 %v4346, %v4662
    %v4664 = vpop.f32.mrf.mxu0
    %v4665 = vadd.f32 %v4351, %v4664
    %4666 = vmatmul.bf16.gmra.mxu0 %v4505
    %v4667 = vpop.f32.mrf.mxu0
    %v4668 = vadd.f32 %v4356, %v4667
    %v4669 = vpop.f32.mrf.mxu0
    %v4670 = vadd.f32 %v4361, %v4669
    %4671 = vmatmul.bf16.gmra.mxu0 %v4506
    %v4672 = vpop.f32.mrf.mxu0
    %v4673 = vadd.f32 %v4366, %v4672
    %v4674 = vpop.f32.mrf.mxu0
    %v4675 = vadd.f32 %v4371, %v4674
    %4676 = vmatmul.bf16.gmra.mxu0 %v4507
    %v4677 = vpop.f32.mrf.mxu0
    %v4678 = vadd.f32 %v4376, %v4677
    %v4679 = vpop.f32.mrf.mxu0
    %v4680 = vadd.f32 %v4381, %v4679
    %4681 = vmatmul.bf16.gmra.mxu0 %v4508
    %v4682 = vpop.f32.mrf.mxu0
    %v4683 = vadd.f32 %v4386, %v4682
    %v4684 = vpop.f32.mrf.mxu0
    %v4685 = vadd.f32 %v4391, %v4684
    %4686 = vmatmul.bf16.gmra.mxu0 %v4509
    %v4687 = vpop.f32.mrf.mxu0
    %v4688 = vadd.f32 %v4396, %v4687
    %v4689 = vpop.f32.mrf.mxu0
    %v4690 = vadd.f32 %v4401, %v4689
    %4691 = vmatmul.bf16.gmra.mxu0 %v4510
    %v4692 = vpop.f32.mrf.mxu0
    %v4693 = vadd.f32 %v4406, %v4692
    %v4694 = vpop.f32.mrf.mxu0
    %v4695 = vadd.f32 %v4411, %v4694
    %4696 = vmatmul.bf16.gmra.mxu0 %v4511
    %v4697 = vpop.f32.mrf.mxu0
    %v4698 = vadd.f32 %v4416, %v4697
    %v4699 = vpop.f32.mrf.mxu0
    %v4700 = vadd.f32 %v4421, %v4699
    %4701 = vmatmul.bf16.gmra.mxu0 %v4512
    %v4702 = vpop.f32.mrf.mxu0
    %v4703 = vadd.f32 %v4426, %v4702
    %v4704 = vpop.f32.mrf.mxu0
    %v4705 = vadd.f32 %v4431, %v4704
    %4706 = vdwg.mxu0
    %4707 = vmatpush.bf16.msra.mxu0 %v4235
    %4708 = vmatpush.bf16.msra.mxu0 %v4227
    %4709 = vmatpush.bf16.msra.mxu0 %v4219
    %4710 = vmatpush.bf16.msra.mxu0 %v4211
    %4711 = vmatpush.bf16.msra.mxu0 %v4203
    %4712 = vmatpush.bf16.msra.mxu0 %v4195
    %4713 = vmatpush.bf16.msra.mxu0 %v4187
    %4714 = vmatpush.bf16.msra.mxu0 %v4179
    %4715 = vmatmul.bf16.gmra.mxu0 %v4497
    %v4716 = vpop.f32.mrf.mxu0
    %v4717 = vadd.f32 %v4276, %v4716
    %v4718 = vpop.f32.mrf.mxu0
    %v4719 = vadd.f32 %v4281, %v4718
    %4720 = vmatmul.bf16.gmra.mxu0 %v4498
    %v4721 = vpop.f32.mrf.mxu0
    %v4722 = vadd.f32 %v4286, %v4721
    %v4723 = vpop.f32.mrf.mxu0
    %v4724 = vadd.f32 %v4291, %v4723
    %4725 = vmatmul.bf16.gmra.mxu0 %v4499
    %v4726 = vpop.f32.mrf.mxu0
    %v4727 = vadd.f32 %v4296, %v4726
    %v4728 = vpop.f32.mrf.mxu0
    %v4729 = vadd.f32 %v4301, %v4728
    %4730 = vmatmul.bf16.gmra.mxu0 %v4500
    %v4731 = vpop.f32.mrf.mxu0
    %v4732 = vadd.f32 %v4306, %v4731
    %v4733 = vpop.f32.mrf.mxu0
    %v4734 = vadd.f32 %v4311, %v4733
    %4735 = vmatmul.bf16.gmra.mxu0 %v4501
    %v4736 = vpop.f32.mrf.mxu0
    %v4737 = vadd.f32 %v4316, %v4736
    %v4738 = vpop.f32.mrf.mxu0
    %v4739 = vadd.f32 %v4321, %v4738
    %4740 = vmatmul.bf16.gmra.mxu0 %v4502
    %v4741 = vpop.f32.mrf.mxu0
    %v4742 = vadd.f32 %v4326, %v4741
    %v4743 = vpop.f32.mrf.mxu0
    %v4744 = vadd.f32 %v4331, %v4743
    %4745 = vmatmul.bf16.gmra.mxu0 %v4503
    %v4746 = vpop.f32.mrf.mxu0
    %v4747 = vadd.f32 %v4336, %v4746
    %v4748 = vpop.f32.mrf.mxu0
    %v4749 = vadd.f32 %v4341, %v4748
    %4750 = vmatmul.bf16.gmra.mxu0 %v4504
    %v4751 = vpop.f32.mrf.mxu0
    %v4752 = vadd.f32 %v4346, %v4751
    %v4753 = vpop.f32.mrf.mxu0
    %v4754 = vadd.f32 %v4351, %v4753
    %4755 = vmatmul.bf16.gmra.mxu0 %v4505
    %v4756 = vpop.f32.mrf.mxu0
    %v4757 = vadd.f32 %v4356, %v4756
    %v4758 = vpop.f32.mrf.mxu0
    %v4759 = vadd.f32 %v4361, %v4758
    %4760 = vmatmul.bf16.gmra.mxu0 %v4506
    %v4761 = vpop.f32.mrf.mxu0
    %v4762 = vadd.f32 %v4366, %v4761
    %v4763 = vpop.f32.mrf.mxu0
    %v4764 = vadd.f32 %v4371, %v4763
    %4765 = vmatmul.bf16.gmra.mxu0 %v4507
    %v4766 = vpop.f32.mrf.mxu0
    %v4767 = vadd.f32 %v4376, %v4766
    %v4768 = vpop.f32.mrf.mxu0
    %v4769 = vadd.f32 %v4381, %v4768
    %4770 = vmatmul.bf16.gmra.mxu0 %v4508
    %v4771 = vpop.f32.mrf.mxu0
    %v4772 = vadd.f32 %v4386, %v4771
    %v4773 = vpop.f32.mrf.mxu0
    %v4774 = vadd.f32 %v4391, %v4773
    %4775 = vmatmul.bf16.gmra.mxu0 %v4509
    %v4776 = vpop.f32.mrf.mxu0
    %v4777 = vadd.f32 %v4396, %v4776
    %v4778 = vpop.f32.mrf.mxu0
    %v4779 = vadd.f32 %v4401, %v4778
    %4780 = vmatmul.bf16.gmra.mxu0 %v4510
    %v4781 = vpop.f32.mrf.mxu0
    %v4782 = vadd.f32 %v4406, %v4781
    %v4783 = vpop.f32.mrf.mxu0
    %v4784 = vadd.f32 %v4411, %v4783
    %4785 = vmatmul.bf16.gmra.mxu0 %v4511
    %v4786 = vpop.f32.mrf.mxu0
    %v4787 = vadd.f32 %v4416, %v4786
    %v4788 = vpop.f32.mrf.mxu0
    %v4789 = vadd.f32 %v4421, %v4788
    %4790 = vmatmul.bf16.gmra.mxu0 %v4512
    %v4791 = vpop.f32.mrf.mxu0
    %v4792 = vadd.f32 %v4426, %v4791
    %v4793 = vpop.f32.mrf.mxu0
    %v4794 = vadd.f32 %v4431, %v4793
    %4795 = vdwg.mxu0
    %4796 = vmatpush.bf16.msra.mxu0 %v4236
    %4797 = vmatpush.bf16.msra.mxu0 %v4228
    %4798 = vmatpush.bf16.msra.mxu0 %v4220
    %4799 = vmatpush.bf16.msra.mxu0 %v4212
    %4800 = vmatpush.bf16.msra.mxu0 %v4204
    %4801 = vmatpush.bf16.msra.mxu0 %v4196
    %4802 = vmatpush.bf16.msra.mxu0 %v4188
    %4803 = vmatpush.bf16.msra.mxu0 %v4180
    %4804 = vmatmul.bf16.gmra.mxu0 %v4497
    %v4805 = vpop.f32.mrf.mxu0
    %v4806 = vadd.f32 %v4276, %v4805
    %v4807 = vpop.f32.mrf.mxu0
    %v4808 = vadd.f32 %v4281, %v4807
    %4809 = vmatmul.bf16.gmra.mxu0 %v4498
    %v4810 = vpop.f32.mrf.mxu0
    %v4811 = vadd.f32 %v4286, %v4810
    %v4812 = vpop.f32.mrf.mxu0
    %v4813 = vadd.f32 %v4291, %v4812
    %4814 = vmatmul.bf16.gmra.mxu0 %v4499
    %v4815 = vpop.f32.mrf.mxu0
    %v4816 = vadd.f32 %v4296, %v4815
    %v4817 = vpop.f32.mrf.mxu0
    %v4818 = vadd.f32 %v4301, %v4817
    %4819 = vmatmul.bf16.gmra.mxu0 %v4500
    %v4820 = vpop.f32.mrf.mxu0
    %v4821 = vadd.f32 %v4306, %v4820
    %v4822 = vpop.f32.mrf.mxu0
    %v4823 = vadd.f32 %v4311, %v4822
    %4824 = vmatmul.bf16.gmra.mxu0 %v4501
    %v4825 = vpop.f32.mrf.mxu0
    %v4826 = vadd.f32 %v4316, %v4825
    %v4827 = vpop.f32.mrf.mxu0
    %v4828 = vadd.f32 %v4321, %v4827
    %4829 = vmatmul.bf16.gmra.mxu0 %v4502
    %v4830 = vpop.f32.mrf.mxu0
    %v4831 = vadd.f32 %v4326, %v4830
    %v4832 = vpop.f32.mrf.mxu0
    %v4833 = vadd.f32 %v4331, %v4832
    %4834 = vmatmul.bf16.gmra.mxu0 %v4503
    %v4835 = vpop.f32.mrf.mxu0
    %v4836 = vadd.f32 %v4336, %v4835
    %v4837 = vpop.f32.mrf.mxu0
    %v4838 = vadd.f32 %v4341, %v4837
    %4839 = vmatmul.bf16.gmra.mxu0 %v4504
    %v4840 = vpop.f32.mrf.mxu0
    %v4841 = vadd.f32 %v4346, %v4840
    %v4842 = vpop.f32.mrf.mxu0
    %v4843 = vadd.f32 %v4351, %v4842
    %4844 = vmatmul.bf16.gmra.mxu0 %v4505
    %v4845 = vpop.f32.mrf.mxu0
    %v4846 = vadd.f32 %v4356, %v4845
    %v4847 = vpop.f32.mrf.mxu0
    %v4848 = vadd.f32 %v4361, %v4847
    %4849 = vmatmul.bf16.gmra.mxu0 %v4506
    %v4850 = vpop.f32.mrf.mxu0
    %v4851 = vadd.f32 %v4366, %v4850
    %v4852 = vpop.f32.mrf.mxu0
    %v4853 = vadd.f32 %v4371, %v4852
    %4854 = vmatmul.bf16.gmra.mxu0 %v4507
    %v4855 = vpop.f32.mrf.mxu0
    %v4856 = vadd.f32 %v4376, %v4855
    %v4857 = vpop.f32.mrf.mxu0
    %v4858 = vadd.f32 %v4381, %v4857
    %4859 = vmatmul.bf16.gmra.mxu0 %v4508
    %v4860 = vpop.f32.mrf.mxu0
    %v4861 = vadd.f32 %v4386, %v4860
    %v4862 = vpop.f32.mrf.mxu0
    %v4863 = vadd.f32 %v4391, %v4862
    %4864 = vmatmul.bf16.gmra.mxu0 %v4509
    %v4865 = vpop.f32.mrf.mxu0
    %v4866 = vadd.f32 %v4396, %v4865
    %v4867 = vpop.f32.mrf.mxu0
    %v4868 = vadd.f32 %v4401, %v4867
    %4869 = vmatmul.bf16.gmra.mxu0 %v4510
    %v4870 = vpop.f32.mrf.mxu0
    %v4871 = vadd.f32 %v4406, %v4870
    %v4872 = vpop.f32.mrf.mxu0
    %v4873 = vadd.f32 %v4411, %v4872
    %4874 = vmatmul.bf16.gmra.mxu0 %v4511
    %v4875 = vpop.f32.mrf.mxu0
    %v4876 = vadd.f32 %v4416, %v4875
    %v4877 = vpop.f32.mrf.mxu0
    %v4878 = vadd.f32 %v4421, %v4877
    %4879 = vmatmul.bf16.gmra.mxu0 %v4512
    %v4880 = vpop.f32.mrf.mxu0
    %v4881 = vadd.f32 %v4426, %v4880
    %v4882 = vpop.f32.mrf.mxu0
    %v4883 = vadd.f32 %v4431, %v4882
    %4884 = vdwg.mxu0
    %4885 = vmatpush.bf16.msra.mxu0 %v4237
    %4886 = vmatpush.bf16.msra.mxu0 %v4229
    %4887 = vmatpush.bf16.msra.mxu0 %v4221
    %4888 = vmatpush.bf16.msra.mxu0 %v4213
    %4889 = vmatpush.bf16.msra.mxu0 %v4205
    %4890 = vmatpush.bf16.msra.mxu0 %v4197
    %4891 = vmatpush.bf16.msra.mxu0 %v4189
    %4892 = vmatpush.bf16.msra.mxu0 %v4181
    %4893 = vmatmul.bf16.gmra.mxu0 %v4497
    %v4894 = vpop.f32.mrf.mxu0
    %v4895 = vadd.f32 %v4276, %v4894
    %v4896 = vpop.f32.mrf.mxu0
    %v4897 = vadd.f32 %v4281, %v4896
    %4898 = vmatmul.bf16.gmra.mxu0 %v4498
    %v4899 = vpop.f32.mrf.mxu0
    %v4900 = vadd.f32 %v4286, %v4899
    %v4901 = vpop.f32.mrf.mxu0
    %v4902 = vadd.f32 %v4291, %v4901
    %4903 = vmatmul.bf16.gmra.mxu0 %v4499
    %v4904 = vpop.f32.mrf.mxu0
    %v4905 = vadd.f32 %v4296, %v4904
    %v4906 = vpop.f32.mrf.mxu0
    %v4907 = vadd.f32 %v4301, %v4906
    %4908 = vmatmul.bf16.gmra.mxu0 %v4500
    %v4909 = vpop.f32.mrf.mxu0
    %v4910 = vadd.f32 %v4306, %v4909
    %v4911 = vpop.f32.mrf.mxu0
    %v4912 = vadd.f32 %v4311, %v4911
    %4913 = vmatmul.bf16.gmra.mxu0 %v4501
    %v4914 = vpop.f32.mrf.mxu0
    %v4915 = vadd.f32 %v4316, %v4914
    %v4916 = vpop.f32.mrf.mxu0
    %v4917 = vadd.f32 %v4321, %v4916
    %4918 = vmatmul.bf16.gmra.mxu0 %v4502
    %v4919 = vpop.f32.mrf.mxu0
    %v4920 = vadd.f32 %v4326, %v4919
    %v4921 = vpop.f32.mrf.mxu0
    %v4922 = vadd.f32 %v4331, %v4921
    %4923 = vmatmul.bf16.gmra.mxu0 %v4503
    %v4924 = vpop.f32.mrf.mxu0
    %v4925 = vadd.f32 %v4336, %v4924
    %v4926 = vpop.f32.mrf.mxu0
    %v4927 = vadd.f32 %v4341, %v4926
    %4928 = vmatmul.bf16.gmra.mxu0 %v4504
    %v4929 = vpop.f32.mrf.mxu0
    %v4930 = vadd.f32 %v4346, %v4929
    %v4931 = vpop.f32.mrf.mxu0
    %v4932 = vadd.f32 %v4351, %v4931
    %4933 = vmatmul.bf16.gmra.mxu0 %v4505
    %v4934 = vpop.f32.mrf.mxu0
    %v4935 = vadd.f32 %v4356, %v4934
    %v4936 = vpop.f32.mrf.mxu0
    %v4937 = vadd.f32 %v4361, %v4936
    %4938 = vmatmul.bf16.gmra.mxu0 %v4506
    %v4939 = vpop.f32.mrf.mxu0
    %v4940 = vadd.f32 %v4366, %v4939
    %v4941 = vpop.f32.mrf.mxu0
    %v4942 = vadd.f32 %v4371, %v4941
    %4943 = vmatmul.bf16.gmra.mxu0 %v4507
    %v4944 = vpop.f32.mrf.mxu0
    %v4945 = vadd.f32 %v4376, %v4944
    %v4946 = vpop.f32.mrf.mxu0
    %v4947 = vadd.f32 %v4381, %v4946
    %4948 = vmatmul.bf16.gmra.mxu0 %v4508
    %v4949 = vpop.f32.mrf.mxu0
    %v4950 = vadd.f32 %v4386, %v4949
    %v4951 = vpop.f32.mrf.mxu0
    %v4952 = vadd.f32 %v4391, %v4951
    %4953 = vmatmul.bf16.gmra.mxu0 %v4509
    %v4954 = vpop.f32.mrf.mxu0
    %v4955 = vadd.f32 %v4396, %v4954
    %v4956 = vpop.f32.mrf.mxu0
    %v4957 = vadd.f32 %v4401, %v4956
    %4958 = vmatmul.bf16.gmra.mxu0 %v4510
    %v4959 = vpop.f32.mrf.mxu0
    %v4960 = vadd.f32 %v4406, %v4959
    %v4961 = vpop.f32.mrf.mxu0
    %v4962 = vadd.f32 %v4411, %v4961
    %4963 = vmatmul.bf16.gmra.mxu0 %v4511
    %v4964 = vpop.f32.mrf.mxu0
    %v4965 = vadd.f32 %v4416, %v4964
    %v4966 = vpop.f32.mrf.mxu0
    %v4967 = vadd.f32 %v4421, %v4966
    %4968 = vmatmul.bf16.gmra.mxu0 %v4512
    %v4969 = vpop.f32.mrf.mxu0
    %v4970 = vadd.f32 %v4426, %v4969
    %v4971 = vpop.f32.mrf.mxu0
    %v4972 = vadd.f32 %v4431, %v4971
    %4973 = vdwg.mxu0
    %4974 = vmatpush.bf16.msra.mxu0 %v4238
    %4975 = vmatpush.bf16.msra.mxu0 %v4230
    %4976 = vmatpush.bf16.msra.mxu0 %v4222
    %4977 = vmatpush.bf16.msra.mxu0 %v4214
    %4978 = vmatpush.bf16.msra.mxu0 %v4206
    %4979 = vmatpush.bf16.msra.mxu0 %v4198
    %4980 = vmatpush.bf16.msra.mxu0 %v4190
    %4981 = vmatpush.bf16.msra.mxu0 %v4182
    %4982 = vmatmul.bf16.gmra.mxu0 %v4497
    %v4983 = vpop.f32.mrf.mxu0
    %v4984 = vadd.f32 %v4276, %v4983
    %v4985 = vpop.f32.mrf.mxu0
    %v4986 = vadd.f32 %v4281, %v4985
    %4987 = vmatmul.bf16.gmra.mxu0 %v4498
    %v4988 = vpop.f32.mrf.mxu0
    %v4989 = vadd.f32 %v4286, %v4988
    %v4990 = vpop.f32.mrf.mxu0
    %v4991 = vadd.f32 %v4291, %v4990
    %4992 = vmatmul.bf16.gmra.mxu0 %v4499
    %v4993 = vpop.f32.mrf.mxu0
    %v4994 = vadd.f32 %v4296, %v4993
    %v4995 = vpop.f32.mrf.mxu0
    %v4996 = vadd.f32 %v4301, %v4995
    %4997 = vmatmul.bf16.gmra.mxu0 %v4500
    %v4998 = vpop.f32.mrf.mxu0
    %v4999 = vadd.f32 %v4306, %v4998
    %v5000 = vpop.f32.mrf.mxu0
    %v5001 = vadd.f32 %v4311, %v5000
    %5002 = vmatmul.bf16.gmra.mxu0 %v4501
    %v5003 = vpop.f32.mrf.mxu0
    %v5004 = vadd.f32 %v4316, %v5003
    %v5005 = vpop.f32.mrf.mxu0
    %v5006 = vadd.f32 %v4321, %v5005
    %5007 = vmatmul.bf16.gmra.mxu0 %v4502
    %v5008 = vpop.f32.mrf.mxu0
    %v5009 = vadd.f32 %v4326, %v5008
    %v5010 = vpop.f32.mrf.mxu0
    %v5011 = vadd.f32 %v4331, %v5010
    %5012 = vmatmul.bf16.gmra.mxu0 %v4503
    %v5013 = vpop.f32.mrf.mxu0
    %v5014 = vadd.f32 %v4336, %v5013
    %v5015 = vpop.f32.mrf.mxu0
    %v5016 = vadd.f32 %v4341, %v5015
    %5017 = vmatmul.bf16.gmra.mxu0 %v4504
    %v5018 = vpop.f32.mrf.mxu0
    %v5019 = vadd.f32 %v4346, %v5018
    %v5020 = vpop.f32.mrf.mxu0
    %v5021 = vadd.f32 %v4351, %v5020
    %5022 = vmatmul.bf16.gmra.mxu0 %v4505
    %v5023 = vpop.f32.mrf.mxu0
    %v5024 = vadd.f32 %v4356, %v5023
    %v5025 = vpop.f32.mrf.mxu0
    %v5026 = vadd.f32 %v4361, %v5025
    %5027 = vmatmul.bf16.gmra.mxu0 %v4506
    %v5028 = vpop.f32.mrf.mxu0
    %v5029 = vadd.f32 %v4366, %v5028
    %v5030 = vpop.f32.mrf.mxu0
    %v5031 = vadd.f32 %v4371, %v5030
    %5032 = vmatmul.bf16.gmra.mxu0 %v4507
    %v5033 = vpop.f32.mrf.mxu0
    %v5034 = vadd.f32 %v4376, %v5033
    %v5035 = vpop.f32.mrf.mxu0
    %v5036 = vadd.f32 %v4381, %v5035
    %5037 = vmatmul.bf16.gmra.mxu0 %v4508
    %v5038 = vpop.f32.mrf.mxu0
    %v5039 = vadd.f32 %v4386, %v5038
    %v5040 = vpop.f32.mrf.mxu0
    %v5041 = vadd.f32 %v4391, %v5040
    %5042 = vmatmul.bf16.gmra.mxu0 %v4509
    %v5043 = vpop.f32.mrf.mxu0
    %v5044 = vadd.f32 %v4396, %v5043
    %v5045 = vpop.f32.mrf.mxu0
    %v5046 = vadd.f32 %v4401, %v5045
    %5047 = vmatmul.bf16.gmra.mxu0 %v4510
    %v5048 = vpop.f32.mrf.mxu0
    %v5049 = vadd.f32 %v4406, %v5048
    %v5050 = vpop.f32.mrf.mxu0
    %v5051 = vadd.f32 %v4411, %v5050
    %5052 = vmatmul.bf16.gmra.mxu0 %v4511
    %v5053 = vpop.f32.mrf.mxu0
    %v5054 = vadd.f32 %v4416, %v5053
    %v5055 = vpop.f32.mrf.mxu0
    %v5056 = vadd.f32 %v4421, %v5055
    %5057 = vmatmul.bf16.gmra.mxu0 %v4512
    %v5058 = vpop.f32.mrf.mxu0
    %v5059 = vadd.f32 %v4426, %v5058
    %v5060 = vpop.f32.mrf.mxu0
    %v5061 = vadd.f32 %v4431, %v5060
    %5062 = vdwg.mxu0
    %5063 = vmatpush.bf16.msra.mxu0 %v4239
    %5064 = vmatpush.bf16.msra.mxu0 %v4231
    %5065 = vmatpush.bf16.msra.mxu0 %v4223
    %5066 = vmatpush.bf16.msra.mxu0 %v4215
    %5067 = vmatpush.bf16.msra.mxu0 %v4207
    %5068 = vmatpush.bf16.msra.mxu0 %v4199
    %5069 = vmatpush.bf16.msra.mxu0 %v4191
    %5070 = vmatpush.bf16.msra.mxu0 %v4183
    %5071 = vmatmul.bf16.gmra.mxu0 %v4497
    %v5072 = vpop.f32.mrf.mxu0
    %v5073 = vadd.f32 %v4276, %v5072
    %v5074 = vpop.f32.mrf.mxu0
    %v5075 = vadd.f32 %v4281, %v5074
    %5076 = vmatmul.bf16.gmra.mxu0 %v4498
    %v5077 = vpop.f32.mrf.mxu0
    %v5078 = vadd.f32 %v4286, %v5077
    %v5079 = vpop.f32.mrf.mxu0
    %v5080 = vadd.f32 %v4291, %v5079
    %5081 = vmatmul.bf16.gmra.mxu0 %v4499
    %v5082 = vpop.f32.mrf.mxu0
    %v5083 = vadd.f32 %v4296, %v5082
    %v5084 = vpop.f32.mrf.mxu0
    %v5085 = vadd.f32 %v4301, %v5084
    %5086 = vmatmul.bf16.gmra.mxu0 %v4500
    %v5087 = vpop.f32.mrf.mxu0
    %v5088 = vadd.f32 %v4306, %v5087
    %v5089 = vpop.f32.mrf.mxu0
    %v5090 = vadd.f32 %v4311, %v5089
    %5091 = vmatmul.bf16.gmra.mxu0 %v4501
    %v5092 = vpop.f32.mrf.mxu0
    %v5093 = vadd.f32 %v4316, %v5092
    %v5094 = vpop.f32.mrf.mxu0
    %v5095 = vadd.f32 %v4321, %v5094
    %5096 = vmatmul.bf16.gmra.mxu0 %v4502
    %v5097 = vpop.f32.mrf.mxu0
    %v5098 = vadd.f32 %v4326, %v5097
    %v5099 = vpop.f32.mrf.mxu0
    %v5100 = vadd.f32 %v4331, %v5099
    %5101 = vmatmul.bf16.gmra.mxu0 %v4503
    %v5102 = vpop.f32.mrf.mxu0
    %v5103 = vadd.f32 %v4336, %v5102
    %v5104 = vpop.f32.mrf.mxu0
    %v5105 = vadd.f32 %v4341, %v5104
    %5106 = vmatmul.bf16.gmra.mxu0 %v4504
    %v5107 = vpop.f32.mrf.mxu0
    %v5108 = vadd.f32 %v4346, %v5107
    %v5109 = vpop.f32.mrf.mxu0
    %v5110 = vadd.f32 %v4351, %v5109
    %5111 = vmatmul.bf16.gmra.mxu0 %v4505
    %v5112 = vpop.f32.mrf.mxu0
    %v5113 = vadd.f32 %v4356, %v5112
    %v5114 = vpop.f32.mrf.mxu0
    %v5115 = vadd.f32 %v4361, %v5114
    %5116 = vmatmul.bf16.gmra.mxu0 %v4506
    %v5117 = vpop.f32.mrf.mxu0
    %v5118 = vadd.f32 %v4366, %v5117
    %v5119 = vpop.f32.mrf.mxu0
    %v5120 = vadd.f32 %v4371, %v5119
    %5121 = vmatmul.bf16.gmra.mxu0 %v4507
    %v5122 = vpop.f32.mrf.mxu0
    %v5123 = vadd.f32 %v4376, %v5122
    %v5124 = vpop.f32.mrf.mxu0
    %v5125 = vadd.f32 %v4381, %v5124
    %5126 = vmatmul.bf16.gmra.mxu0 %v4508
    %v5127 = vpop.f32.mrf.mxu0
    %v5128 = vadd.f32 %v4386, %v5127
    %v5129 = vpop.f32.mrf.mxu0
    %v5130 = vadd.f32 %v4391, %v5129
    %5131 = vmatmul.bf16.gmra.mxu0 %v4509
    %v5132 = vpop.f32.mrf.mxu0
    %v5133 = vadd.f32 %v4396, %v5132
    %v5134 = vpop.f32.mrf.mxu0
    %v5135 = vadd.f32 %v4401, %v5134
    %5136 = vmatmul.bf16.gmra.mxu0 %v4510
    %v5137 = vpop.f32.mrf.mxu0
    %v5138 = vadd.f32 %v4406, %v5137
    %v5139 = vpop.f32.mrf.mxu0
    %v5140 = vadd.f32 %v4411, %v5139
    %5141 = vmatmul.bf16.gmra.mxu0 %v4511
    %v5142 = vpop.f32.mrf.mxu0
    %v5143 = vadd.f32 %v4416, %v5142
    %v5144 = vpop.f32.mrf.mxu0
    %v5145 = vadd.f32 %v4421, %v5144
    %5146 = vmatmul.bf16.gmra.mxu0 %v4512
    %v5147 = vpop.f32.mrf.mxu0
    %v5148 = vadd.f32 %v4426, %v5147
    %v5149 = vpop.f32.mrf.mxu0
    %v5150 = vadd.f32 %v4431, %v5149
    %5151 = vdwg.mxu0
    %5152 = vmatpush.bf16.msra.mxu0 %v4240
    %5153 = vmatpush.bf16.msra.mxu0 %v4232
    %5154 = vmatpush.bf16.msra.mxu0 %v4224
    %5155 = vmatpush.bf16.msra.mxu0 %v4216
    %5156 = vmatpush.bf16.msra.mxu0 %v4208
    %5157 = vmatpush.bf16.msra.mxu0 %v4200
    %5158 = vmatpush.bf16.msra.mxu0 %v4192
    %5159 = vmatpush.bf16.msra.mxu0 %v4184
    %5160 = vmatmul.bf16.gmra.mxu0 %v4497
    %v5161 = vpop.f32.mrf.mxu0
    %v5162 = vadd.f32 %v4276, %v5161
    %v5163 = vpop.f32.mrf.mxu0
    %v5164 = vadd.f32 %v4281, %v5163
    %5165 = vmatmul.bf16.gmra.mxu0 %v4498
    %v5166 = vpop.f32.mrf.mxu0
    %v5167 = vadd.f32 %v4286, %v5166
    %v5168 = vpop.f32.mrf.mxu0
    %v5169 = vadd.f32 %v4291, %v5168
    %5170 = vmatmul.bf16.gmra.mxu0 %v4499
    %v5171 = vpop.f32.mrf.mxu0
    %v5172 = vadd.f32 %v4296, %v5171
    %v5173 = vpop.f32.mrf.mxu0
    %v5174 = vadd.f32 %v4301, %v5173
    %5175 = vmatmul.bf16.gmra.mxu0 %v4500
    %v5176 = vpop.f32.mrf.mxu0
    %v5177 = vadd.f32 %v4306, %v5176
    %v5178 = vpop.f32.mrf.mxu0
    %v5179 = vadd.f32 %v4311, %v5178
    %5180 = vmatmul.bf16.gmra.mxu0 %v4501
    %v5181 = vpop.f32.mrf.mxu0
    %v5182 = vadd.f32 %v4316, %v5181
    %v5183 = vpop.f32.mrf.mxu0
    %v5184 = vadd.f32 %v4321, %v5183
    %5185 = vmatmul.bf16.gmra.mxu0 %v4502
    %v5186 = vpop.f32.mrf.mxu0
    %v5187 = vadd.f32 %v4326, %v5186
    %v5188 = vpop.f32.mrf.mxu0
    %v5189 = vadd.f32 %v4331, %v5188
    %5190 = vmatmul.bf16.gmra.mxu0 %v4503
    %v5191 = vpop.f32.mrf.mxu0
    %v5192 = vadd.f32 %v4336, %v5191
    %v5193 = vpop.f32.mrf.mxu0
    %v5194 = vadd.f32 %v4341, %v5193
    %5195 = vmatmul.bf16.gmra.mxu0 %v4504
    %v5196 = vpop.f32.mrf.mxu0
    %v5197 = vadd.f32 %v4346, %v5196
    %v5198 = vpop.f32.mrf.mxu0
    %v5199 = vadd.f32 %v4351, %v5198
    %5200 = vmatmul.bf16.gmra.mxu0 %v4505
    %v5201 = vpop.f32.mrf.mxu0
    %v5202 = vadd.f32 %v4356, %v5201
    %v5203 = vpop.f32.mrf.mxu0
    %v5204 = vadd.f32 %v4361, %v5203
    %5205 = vmatmul.bf16.gmra.mxu0 %v4506
    %v5206 = vpop.f32.mrf.mxu0
    %v5207 = vadd.f32 %v4366, %v5206
    %v5208 = vpop.f32.mrf.mxu0
    %v5209 = vadd.f32 %v4371, %v5208
    %5210 = vmatmul.bf16.gmra.mxu0 %v4507
    %v5211 = vpop.f32.mrf.mxu0
    %v5212 = vadd.f32 %v4376, %v5211
    %v5213 = vpop.f32.mrf.mxu0
    %v5214 = vadd.f32 %v4381, %v5213
    %5215 = vmatmul.bf16.gmra.mxu0 %v4508
    %v5216 = vpop.f32.mrf.mxu0
    %v5217 = vadd.f32 %v4386, %v5216
    %v5218 = vpop.f32.mrf.mxu0
    %v5219 = vadd.f32 %v4391, %v5218
    %5220 = vmatmul.bf16.gmra.mxu0 %v4509
    %v5221 = vpop.f32.mrf.mxu0
    %v5222 = vadd.f32 %v4396, %v5221
    %v5223 = vpop.f32.mrf.mxu0
    %v5224 = vadd.f32 %v4401, %v5223
    %5225 = vmatmul.bf16.gmra.mxu0 %v4510
    %v5226 = vpop.f32.mrf.mxu0
    %v5227 = vadd.f32 %v4406, %v5226
    %v5228 = vpop.f32.mrf.mxu0
    %v5229 = vadd.f32 %v4411, %v5228
    %5230 = vmatmul.bf16.gmra.mxu0 %v4511
    %v5231 = vpop.f32.mrf.mxu0
    %v5232 = vadd.f32 %v4416, %v5231
    %v5233 = vpop.f32.mrf.mxu0
    %v5234 = vadd.f32 %v4421, %v5233
    %5235 = vmatmul.bf16.gmra.mxu0 %v4512
    %v5236 = vpop.f32.mrf.mxu0
    %v5237 = vadd.f32 %v4426, %v5236
    %v5238 = vpop.f32.mrf.mxu0
    %v5239 = vadd.f32 %v4431, %v5238
    %5240 = vdwg.mxu0
    %v5241 = vmax.f32 %v4539, %v4628
    %v5242 = vmax.f32 %v5241, %v4717
    %v5243 = vmax.f32 %v5242, %v4806
    %5244 = vmax.xlane.f32.xlu0 %v5243
    %v5245 = vpop.xlane.xlu0 %5244
    %v5246 = vmax.f32 %v4541, %v4630
    %v5247 = vmax.f32 %v5246, %v4719
    %v5248 = vmax.f32 %v5247, %v4808
    %5249 = vmax.xlane.f32.xlu0 %v5248
    %v5250 = vpop.xlane.xlu0 %5249
    %v5251 = vmax.f32 %v4544, %v4633
    %v5252 = vmax.f32 %v5251, %v4722
    %v5253 = vmax.f32 %v5252, %v4811
    %5254 = vmax.xlane.f32.xlu0 %v5253
    %v5255 = vpop.xlane.xlu0 %5254
    %v5256 = vmax.f32 %v4546, %v4635
    %v5257 = vmax.f32 %v5256, %v4724
    %v5258 = vmax.f32 %v5257, %v4813
    %5259 = vmax.xlane.f32.xlu0 %v5258
    %v5260 = vpop.xlane.xlu0 %5259
    %v5261 = vmax.f32 %v4549, %v4638
    %v5262 = vmax.f32 %v5261, %v4727
    %v5263 = vmax.f32 %v5262, %v4816
    %5264 = vmax.xlane.f32.xlu0 %v5263
    %v5265 = vpop.xlane.xlu0 %5264
    %v5266 = vmax.f32 %v4551, %v4640
    %v5267 = vmax.f32 %v5266, %v4729
    %v5268 = vmax.f32 %v5267, %v4818
    %5269 = vmax.xlane.f32.xlu0 %v5268
    %v5270 = vpop.xlane.xlu0 %5269
    %v5271 = vmax.f32 %v4554, %v4643
    %v5272 = vmax.f32 %v5271, %v4732
    %v5273 = vmax.f32 %v5272, %v4821
    %5274 = vmax.xlane.f32.xlu0 %v5273
    %v5275 = vpop.xlane.xlu0 %5274
    %v5276 = vmax.f32 %v4556, %v4645
    %v5277 = vmax.f32 %v5276, %v4734
    %v5278 = vmax.f32 %v5277, %v4823
    %5279 = vmax.xlane.f32.xlu0 %v5278
    %v5280 = vpop.xlane.xlu0 %5279
    %v5281 = vmax.f32 %v4559, %v4648
    %v5282 = vmax.f32 %v5281, %v4737
    %v5283 = vmax.f32 %v5282, %v4826
    %5284 = vmax.xlane.f32.xlu0 %v5283
    %v5285 = vpop.xlane.xlu0 %5284
    %v5286 = vmax.f32 %v4561, %v4650
    %v5287 = vmax.f32 %v5286, %v4739
    %v5288 = vmax.f32 %v5287, %v4828
    %5289 = vmax.xlane.f32.xlu0 %v5288
    %v5290 = vpop.xlane.xlu0 %5289
    %v5291 = vmax.f32 %v4564, %v4653
    %v5292 = vmax.f32 %v5291, %v4742
    %v5293 = vmax.f32 %v5292, %v4831
    %5294 = vmax.xlane.f32.xlu0 %v5293
    %v5295 = vpop.xlane.xlu0 %5294
    %v5296 = vmax.f32 %v4566, %v4655
    %v5297 = vmax.f32 %v5296, %v4744
    %v5298 = vmax.f32 %v5297, %v4833
    %5299 = vmax.xlane.f32.xlu0 %v5298
    %v5300 = vpop.xlane.xlu0 %5299
    %v5301 = vmax.f32 %v4569, %v4658
    %v5302 = vmax.f32 %v5301, %v4747
    %v5303 = vmax.f32 %v5302, %v4836
    %5304 = vmax.xlane.f32.xlu0 %v5303
    %v5305 = vpop.xlane.xlu0 %5304
    %v5306 = vmax.f32 %v4571, %v4660
    %v5307 = vmax.f32 %v5306, %v4749
    %v5308 = vmax.f32 %v5307, %v4838
    %5309 = vmax.xlane.f32.xlu0 %v5308
    %v5310 = vpop.xlane.xlu0 %5309
    %v5311 = vmax.f32 %v4574, %v4663
    %v5312 = vmax.f32 %v5311, %v4752
    %v5313 = vmax.f32 %v5312, %v4841
    %5314 = vmax.xlane.f32.xlu0 %v5313
    %v5315 = vpop.xlane.xlu0 %5314
    %v5316 = vmax.f32 %v4576, %v4665
    %v5317 = vmax.f32 %v5316, %v4754
    %v5318 = vmax.f32 %v5317, %v4843
    %5319 = vmax.xlane.f32.xlu0 %v5318
    %v5320 = vpop.xlane.xlu0 %5319
    %v5321 = vmax.f32 %v4579, %v4668
    %v5322 = vmax.f32 %v5321, %v4757
    %v5323 = vmax.f32 %v5322, %v4846
    %5324 = vmax.xlane.f32.xlu0 %v5323
    %v5325 = vpop.xlane.xlu0 %5324
    %v5326 = vmax.f32 %v4581, %v4670
    %v5327 = vmax.f32 %v5326, %v4759
    %v5328 = vmax.f32 %v5327, %v4848
    %5329 = vmax.xlane.f32.xlu0 %v5328
    %v5330 = vpop.xlane.xlu0 %5329
    %v5331 = vmax.f32 %v4584, %v4673
    %v5332 = vmax.f32 %v5331, %v4762
    %v5333 = vmax.f32 %v5332, %v4851
    %5334 = vmax.xlane.f32.xlu0 %v5333
    %v5335 = vpop.xlane.xlu0 %5334
    %v5336 = vmax.f32 %v4586, %v4675
    %v5337 = vmax.f32 %v5336, %v4764
    %v5338 = vmax.f32 %v5337, %v4853
    %5339 = vmax.xlane.f32.xlu0 %v5338
    %v5340 = vpop.xlane.xlu0 %5339
    %v5341 = vmax.f32 %v4589, %v4678
    %v5342 = vmax.f32 %v5341, %v4767
    %v5343 = vmax.f32 %v5342, %v4856
    %5344 = vmax.xlane.f32.xlu0 %v5343
    %v5345 = vpop.xlane.xlu0 %5344
    %v5346 = vmax.f32 %v4591, %v4680
    %v5347 = vmax.f32 %v5346, %v4769
    %v5348 = vmax.f32 %v5347, %v4858
    %5349 = vmax.xlane.f32.xlu0 %v5348
    %v5350 = vpop.xlane.xlu0 %5349
    %v5351 = vmax.f32 %v4594, %v4683
    %v5352 = vmax.f32 %v5351, %v4772
    %v5353 = vmax.f32 %v5352, %v4861
    %5354 = vmax.xlane.f32.xlu0 %v5353
    %v5355 = vpop.xlane.xlu0 %5354
    %v5356 = vmax.f32 %v4596, %v4685
    %v5357 = vmax.f32 %v5356, %v4774
    %v5358 = vmax.f32 %v5357, %v4863
    %5359 = vmax.xlane.f32.xlu0 %v5358
    %v5360 = vpop.xlane.xlu0 %5359
    %v5361 = vmax.f32 %v4599, %v4688
    %v5362 = vmax.f32 %v5361, %v4777
    %v5363 = vmax.f32 %v5362, %v4866
    %5364 = vmax.xlane.f32.xlu0 %v5363
    %v5365 = vpop.xlane.xlu0 %5364
    %v5366 = vmax.f32 %v4601, %v4690
    %v5367 = vmax.f32 %v5366, %v4779
    %v5368 = vmax.f32 %v5367, %v4868
    %5369 = vmax.xlane.f32.xlu0 %v5368
    %v5370 = vpop.xlane.xlu0 %5369
    %v5371 = vmax.f32 %v4604, %v4693
    %v5372 = vmax.f32 %v5371, %v4782
    %v5373 = vmax.f32 %v5372, %v4871
    %5374 = vmax.xlane.f32.xlu0 %v5373
    %v5375 = vpop.xlane.xlu0 %5374
    %v5376 = vmax.f32 %v4606, %v4695
    %v5377 = vmax.f32 %v5376, %v4784
    %v5378 = vmax.f32 %v5377, %v4873
    %5379 = vmax.xlane.f32.xlu0 %v5378
    %v5380 = vpop.xlane.xlu0 %5379
    %v5381 = vmax.f32 %v4609, %v4698
    %v5382 = vmax.f32 %v5381, %v4787
    %v5383 = vmax.f32 %v5382, %v4876
    %5384 = vmax.xlane.f32.xlu0 %v5383
    %v5385 = vpop.xlane.xlu0 %5384
    %v5386 = vmax.f32 %v4611, %v4700
    %v5387 = vmax.f32 %v5386, %v4789
    %v5388 = vmax.f32 %v5387, %v4878
    %5389 = vmax.xlane.f32.xlu0 %v5388
    %v5390 = vpop.xlane.xlu0 %5389
    %v5391 = vmax.f32 %v4614, %v4703
    %v5392 = vmax.f32 %v5391, %v4792
    %v5393 = vmax.f32 %v5392, %v4881
    %5394 = vmax.xlane.f32.xlu0 %v5393
    %v5395 = vpop.xlane.xlu0 %5394
    %v5396 = vmax.f32 %v4616, %v4705
    %v5397 = vmax.f32 %v5396, %v4794
    %v5398 = vmax.f32 %v5397, %v4883
    %5399 = vmax.xlane.f32.xlu0 %v5398
    %v5400 = vpop.xlane.xlu0 %5399
    %v5401 = vmax.f32 %v4895, %v4984
    %v5402 = vmax.f32 %v5401, %v5073
    %v5403 = vmax.f32 %v5402, %v5162
    %5404 = vmax.xlane.f32.xlu0 %v5403
    %v5405 = vpop.xlane.xlu0 %5404
    %v5406 = vmax.f32 %v4897, %v4986
    %v5407 = vmax.f32 %v5406, %v5075
    %v5408 = vmax.f32 %v5407, %v5164
    %5409 = vmax.xlane.f32.xlu0 %v5408
    %v5410 = vpop.xlane.xlu0 %5409
    %v5411 = vmax.f32 %v4900, %v4989
    %v5412 = vmax.f32 %v5411, %v5078
    %v5413 = vmax.f32 %v5412, %v5167
    %5414 = vmax.xlane.f32.xlu0 %v5413
    %v5415 = vpop.xlane.xlu0 %5414
    %v5416 = vmax.f32 %v4902, %v4991
    %v5417 = vmax.f32 %v5416, %v5080
    %v5418 = vmax.f32 %v5417, %v5169
    %5419 = vmax.xlane.f32.xlu0 %v5418
    %v5420 = vpop.xlane.xlu0 %5419
    %v5421 = vmax.f32 %v4905, %v4994
    %v5422 = vmax.f32 %v5421, %v5083
    %v5423 = vmax.f32 %v5422, %v5172
    %5424 = vmax.xlane.f32.xlu0 %v5423
    %v5425 = vpop.xlane.xlu0 %5424
    %v5426 = vmax.f32 %v4907, %v4996
    %v5427 = vmax.f32 %v5426, %v5085
    %v5428 = vmax.f32 %v5427, %v5174
    %5429 = vmax.xlane.f32.xlu0 %v5428
    %v5430 = vpop.xlane.xlu0 %5429
    %v5431 = vmax.f32 %v4910, %v4999
    %v5432 = vmax.f32 %v5431, %v5088
    %v5433 = vmax.f32 %v5432, %v5177
    %5434 = vmax.xlane.f32.xlu0 %v5433
    %v5435 = vpop.xlane.xlu0 %5434
    %v5436 = vmax.f32 %v4912, %v5001
    %v5437 = vmax.f32 %v5436, %v5090
    %v5438 = vmax.f32 %v5437, %v5179
    %5439 = vmax.xlane.f32.xlu0 %v5438
    %v5440 = vpop.xlane.xlu0 %5439
    %v5441 = vmax.f32 %v4915, %v5004
    %v5442 = vmax.f32 %v5441, %v5093
    %v5443 = vmax.f32 %v5442, %v5182
    %5444 = vmax.xlane.f32.xlu0 %v5443
    %v5445 = vpop.xlane.xlu0 %5444
    %v5446 = vmax.f32 %v4917, %v5006
    %v5447 = vmax.f32 %v5446, %v5095
    %v5448 = vmax.f32 %v5447, %v5184
    %5449 = vmax.xlane.f32.xlu0 %v5448
    %v5450 = vpop.xlane.xlu0 %5449
    %v5451 = vmax.f32 %v4920, %v5009
    %v5452 = vmax.f32 %v5451, %v5098
    %v5453 = vmax.f32 %v5452, %v5187
    %5454 = vmax.xlane.f32.xlu0 %v5453
    %v5455 = vpop.xlane.xlu0 %5454
    %v5456 = vmax.f32 %v4922, %v5011
    %v5457 = vmax.f32 %v5456, %v5100
    %v5458 = vmax.f32 %v5457, %v5189
    %5459 = vmax.xlane.f32.xlu0 %v5458
    %v5460 = vpop.xlane.xlu0 %5459
    %v5461 = vmax.f32 %v4925, %v5014
    %v5462 = vmax.f32 %v5461, %v5103
    %v5463 = vmax.f32 %v5462, %v5192
    %5464 = vmax.xlane.f32.xlu0 %v5463
    %v5465 = vpop.xlane.xlu0 %5464
    %v5466 = vmax.f32 %v4927, %v5016
    %v5467 = vmax.f32 %v5466, %v5105
    %v5468 = vmax.f32 %v5467, %v5194
    %5469 = vmax.xlane.f32.xlu0 %v5468
    %v5470 = vpop.xlane.xlu0 %5469
    %v5471 = vmax.f32 %v4930, %v5019
    %v5472 = vmax.f32 %v5471, %v5108
    %v5473 = vmax.f32 %v5472, %v5197
    %5474 = vmax.xlane.f32.xlu0 %v5473
    %v5475 = vpop.xlane.xlu0 %5474
    %v5476 = vmax.f32 %v4932, %v5021
    %v5477 = vmax.f32 %v5476, %v5110
    %v5478 = vmax.f32 %v5477, %v5199
    %5479 = vmax.xlane.f32.xlu0 %v5478
    %v5480 = vpop.xlane.xlu0 %5479
    %v5481 = vmax.f32 %v4935, %v5024
    %v5482 = vmax.f32 %v5481, %v5113
    %v5483 = vmax.f32 %v5482, %v5202
    %5484 = vmax.xlane.f32.xlu0 %v5483
    %v5485 = vpop.xlane.xlu0 %5484
    %v5486 = vmax.f32 %v4937, %v5026
    %v5487 = vmax.f32 %v5486, %v5115
    %v5488 = vmax.f32 %v5487, %v5204
    %5489 = vmax.xlane.f32.xlu0 %v5488
    %v5490 = vpop.xlane.xlu0 %5489
    %v5491 = vmax.f32 %v4940, %v5029
    %v5492 = vmax.f32 %v5491, %v5118
    %v5493 = vmax.f32 %v5492, %v5207
    %5494 = vmax.xlane.f32.xlu0 %v5493
    %v5495 = vpop.xlane.xlu0 %5494
    %v5496 = vmax.f32 %v4942, %v5031
    %v5497 = vmax.f32 %v5496, %v5120
    %v5498 = vmax.f32 %v5497, %v5209
    %5499 = vmax.xlane.f32.xlu0 %v5498
    %v5500 = vpop.xlane.xlu0 %5499
    %v5501 = vmax.f32 %v4945, %v5034
    %v5502 = vmax.f32 %v5501, %v5123
    %v5503 = vmax.f32 %v5502, %v5212
    %5504 = vmax.xlane.f32.xlu0 %v5503
    %v5505 = vpop.xlane.xlu0 %5504
    %v5506 = vmax.f32 %v4947, %v5036
    %v5507 = vmax.f32 %v5506, %v5125
    %v5508 = vmax.f32 %v5507, %v5214
    %5509 = vmax.xlane.f32.xlu0 %v5508
    %v5510 = vpop.xlane.xlu0 %5509
    %v5511 = vmax.f32 %v4950, %v5039
    %v5512 = vmax.f32 %v5511, %v5128
    %v5513 = vmax.f32 %v5512, %v5217
    %5514 = vmax.xlane.f32.xlu0 %v5513
    %v5515 = vpop.xlane.xlu0 %5514
    %v5516 = vmax.f32 %v4952, %v5041
    %v5517 = vmax.f32 %v5516, %v5130
    %v5518 = vmax.f32 %v5517, %v5219
    %5519 = vmax.xlane.f32.xlu0 %v5518
    %v5520 = vpop.xlane.xlu0 %5519
    %v5521 = vmax.f32 %v4955, %v5044
    %v5522 = vmax.f32 %v5521, %v5133
    %v5523 = vmax.f32 %v5522, %v5222
    %5524 = vmax.xlane.f32.xlu0 %v5523
    %v5525 = vpop.xlane.xlu0 %5524
    %v5526 = vmax.f32 %v4957, %v5046
    %v5527 = vmax.f32 %v5526, %v5135
    %v5528 = vmax.f32 %v5527, %v5224
    %5529 = vmax.xlane.f32.xlu0 %v5528
    %v5530 = vpop.xlane.xlu0 %5529
    %v5531 = vmax.f32 %v4960, %v5049
    %v5532 = vmax.f32 %v5531, %v5138
    %v5533 = vmax.f32 %v5532, %v5227
    %5534 = vmax.xlane.f32.xlu0 %v5533
    %v5535 = vpop.xlane.xlu0 %5534
    %v5536 = vmax.f32 %v4962, %v5051
    %v5537 = vmax.f32 %v5536, %v5140
    %v5538 = vmax.f32 %v5537, %v5229
    %5539 = vmax.xlane.f32.xlu0 %v5538
    %v5540 = vpop.xlane.xlu0 %5539
    %v5541 = vmax.f32 %v4965, %v5054
    %v5542 = vmax.f32 %v5541, %v5143
    %v5543 = vmax.f32 %v5542, %v5232
    %5544 = vmax.xlane.f32.xlu0 %v5543
    %v5545 = vpop.xlane.xlu0 %5544
    %v5546 = vmax.f32 %v4967, %v5056
    %v5547 = vmax.f32 %v5546, %v5145
    %v5548 = vmax.f32 %v5547, %v5234
    %5549 = vmax.xlane.f32.xlu0 %v5548
    %v5550 = vpop.xlane.xlu0 %5549
    %v5551 = vmax.f32 %v4970, %v5059
    %v5552 = vmax.f32 %v5551, %v5148
    %v5553 = vmax.f32 %v5552, %v5237
    %5554 = vmax.xlane.f32.xlu0 %v5553
    %v5555 = vpop.xlane.xlu0 %5554
    %v5556 = vmax.f32 %v4972, %v5061
    %v5557 = vmax.f32 %v5556, %v5150
    %v5558 = vmax.f32 %v5557, %v5239
    %5559 = vmax.xlane.f32.xlu0 %v5558
    %v5560 = vpop.xlane.xlu0 %5559
    %v5593 = vlaneseq
    %v5594 = vand.u32 %v5593, 127
    %v5595 = vperm.slane %v5245, %v5594
    %v5596 = vadd.s32 %v5594, 4294967288
    %v5597 = vperm.slane %v5250, %v5596
    %vm5598 = vcmask 130112
    %v5599 = vsel %vm5598, %v5597, %v5595
    %v5600 = vadd.s32 %v5594, 4294967280
    %v5601 = vperm.slane %v5255, %v5600
    %vm5602 = vcmask 195712
    %v5603 = vsel %vm5602, %v5601, %v5599
    %v5604 = vadd.s32 %v5594, 4294967272
    %v5605 = vperm.slane %v5260, %v5604
    %vm5606 = vcmask 261312
    %v5607 = vsel %vm5606, %v5605, %v5603
    %v5608 = vadd.s32 %v5594, 4294967264
    %v5609 = vperm.slane %v5265, %v5608
    %vm5610 = vcmask 326912
    %v5611 = vsel %vm5610, %v5609, %v5607
    %v5612 = vadd.s32 %v5594, 4294967256
    %v5613 = vperm.slane %v5270, %v5612
    %vm5614 = vcmask 392512
    %v5615 = vsel %vm5614, %v5613, %v5611
    %v5616 = vadd.s32 %v5594, 4294967248
    %v5617 = vperm.slane %v5275, %v5616
    %vm5618 = vcmask 458112
    %v5619 = vsel %vm5618, %v5617, %v5615
    %v5620 = vadd.s32 %v5594, 4294967240
    %v5621 = vperm.slane %v5280, %v5620
    %vm5622 = vcmask 523712
    %v5623 = vsel %vm5622, %v5621, %v5619
    %v5624 = vadd.s32 %v5594, 4294967232
    %v5625 = vperm.slane %v5285, %v5624
    %vm5626 = vcmask 589312
    %v5627 = vsel %vm5626, %v5625, %v5623
    %v5628 = vadd.s32 %v5594, 4294967224
    %v5629 = vperm.slane %v5290, %v5628
    %vm5630 = vcmask 654912
    %v5631 = vsel %vm5630, %v5629, %v5627
    %v5632 = vadd.s32 %v5594, 4294967216
    %v5633 = vperm.slane %v5295, %v5632
    %vm5634 = vcmask 720512
    %v5635 = vsel %vm5634, %v5633, %v5631
    %v5636 = vadd.s32 %v5594, 4294967208
    %v5637 = vperm.slane %v5300, %v5636
    %vm5638 = vcmask 786112
    %v5639 = vsel %vm5638, %v5637, %v5635
    %v5640 = vadd.s32 %v5594, 4294967200
    %v5641 = vperm.slane %v5305, %v5640
    %vm5642 = vcmask 851712
    %v5643 = vsel %vm5642, %v5641, %v5639
    %v5644 = vadd.s32 %v5594, 4294967192
    %v5645 = vperm.slane %v5310, %v5644
    %vm5646 = vcmask 917312
    %v5647 = vsel %vm5646, %v5645, %v5643
    %v5648 = vadd.s32 %v5594, 4294967184
    %v5649 = vperm.slane %v5315, %v5648
    %vm5650 = vcmask 982912
    %v5651 = vsel %vm5650, %v5649, %v5647
    %v5652 = vadd.s32 %v5594, 4294967176
    %v5653 = vperm.slane %v5320, %v5652
    %vm5654 = vcmask 1048512
    %v5655 = vsel %vm5654, %v5653, %v5651
    %v5656 = vperm.slane %v5325, %v5594
    %v5657 = vperm.slane %v5330, %v5596
    %v5658 = vsel %vm5598, %v5657, %v5656
    %v5659 = vperm.slane %v5335, %v5600
    %v5660 = vsel %vm5602, %v5659, %v5658
    %v5661 = vperm.slane %v5340, %v5604
    %v5662 = vsel %vm5606, %v5661, %v5660
    %v5663 = vperm.slane %v5345, %v5608
    %v5664 = vsel %vm5610, %v5663, %v5662
    %v5665 = vperm.slane %v5350, %v5612
    %v5666 = vsel %vm5614, %v5665, %v5664
    %v5667 = vperm.slane %v5355, %v5616
    %v5668 = vsel %vm5618, %v5667, %v5666
    %v5669 = vperm.slane %v5360, %v5620
    %v5670 = vsel %vm5622, %v5669, %v5668
    %v5671 = vperm.slane %v5365, %v5624
    %v5672 = vsel %vm5626, %v5671, %v5670
    %v5673 = vperm.slane %v5370, %v5628
    %v5674 = vsel %vm5630, %v5673, %v5672
    %v5675 = vperm.slane %v5375, %v5632
    %v5676 = vsel %vm5634, %v5675, %v5674
    %v5677 = vperm.slane %v5380, %v5636
    %v5678 = vsel %vm5638, %v5677, %v5676
    %v5679 = vperm.slane %v5385, %v5640
    %v5680 = vsel %vm5642, %v5679, %v5678
    %v5681 = vperm.slane %v5390, %v5644
    %v5682 = vsel %vm5646, %v5681, %v5680
    %v5683 = vperm.slane %v5395, %v5648
    %v5684 = vsel %vm5650, %v5683, %v5682
    %v5685 = vperm.slane %v5400, %v5652
    %v5686 = vsel %vm5654, %v5685, %v5684
    %v5721 = vperm.slane %v5405, %v5594
    %v5722 = vperm.slane %v5410, %v5596
    %v5723 = vsel %vm5598, %v5722, %v5721
    %v5724 = vperm.slane %v5415, %v5600
    %v5725 = vsel %vm5602, %v5724, %v5723
    %v5726 = vperm.slane %v5420, %v5604
    %v5727 = vsel %vm5606, %v5726, %v5725
    %v5728 = vperm.slane %v5425, %v5608
    %v5729 = vsel %vm5610, %v5728, %v5727
    %v5730 = vperm.slane %v5430, %v5612
    %v5731 = vsel %vm5614, %v5730, %v5729
    %v5732 = vperm.slane %v5435, %v5616
    %v5733 = vsel %vm5618, %v5732, %v5731
    %v5734 = vperm.slane %v5440, %v5620
    %v5735 = vsel %vm5622, %v5734, %v5733
    %v5736 = vperm.slane %v5445, %v5624
    %v5737 = vsel %vm5626, %v5736, %v5735
    %v5738 = vperm.slane %v5450, %v5628
    %v5739 = vsel %vm5630, %v5738, %v5737
    %v5740 = vperm.slane %v5455, %v5632
    %v5741 = vsel %vm5634, %v5740, %v5739
    %v5742 = vperm.slane %v5460, %v5636
    %v5743 = vsel %vm5638, %v5742, %v5741
    %v5744 = vperm.slane %v5465, %v5640
    %v5745 = vsel %vm5642, %v5744, %v5743
    %v5746 = vperm.slane %v5470, %v5644
    %v5747 = vsel %vm5646, %v5746, %v5745
    %v5748 = vperm.slane %v5475, %v5648
    %v5749 = vsel %vm5650, %v5748, %v5747
    %v5750 = vperm.slane %v5480, %v5652
    %v5751 = vsel %vm5654, %v5750, %v5749
    %v5752 = vperm.slane %v5485, %v5594
    %v5753 = vperm.slane %v5490, %v5596
    %v5754 = vsel %vm5598, %v5753, %v5752
    %v5755 = vperm.slane %v5495, %v5600
    %v5756 = vsel %vm5602, %v5755, %v5754
    %v5757 = vperm.slane %v5500, %v5604
    %v5758 = vsel %vm5606, %v5757, %v5756
    %v5759 = vperm.slane %v5505, %v5608
    %v5760 = vsel %vm5610, %v5759, %v5758
    %v5761 = vperm.slane %v5510, %v5612
    %v5762 = vsel %vm5614, %v5761, %v5760
    %v5763 = vperm.slane %v5515, %v5616
    %v5764 = vsel %vm5618, %v5763, %v5762
    %v5765 = vperm.slane %v5520, %v5620
    %v5766 = vsel %vm5622, %v5765, %v5764
    %v5767 = vperm.slane %v5525, %v5624
    %v5768 = vsel %vm5626, %v5767, %v5766
    %v5769 = vperm.slane %v5530, %v5628
    %v5770 = vsel %vm5630, %v5769, %v5768
    %v5771 = vperm.slane %v5535, %v5632
    %v5772 = vsel %vm5634, %v5771, %v5770
    %v5773 = vperm.slane %v5540, %v5636
    %v5774 = vsel %vm5638, %v5773, %v5772
    %v5775 = vperm.slane %v5545, %v5640
    %v5776 = vsel %vm5642, %v5775, %v5774
    %v5777 = vperm.slane %v5550, %v5644
    %v5778 = vsel %vm5646, %v5777, %v5776
    %v5779 = vperm.slane %v5555, %v5648
    %v5780 = vsel %vm5650, %v5779, %v5778
    %v5781 = vperm.slane %v5560, %v5652
    %v5782 = vsel %vm5654, %v5781, %v5780
    %vm5785 = vcmask 1040384
    %v5786 = vsel %vm5785, %v5655, %v5751
    %v5787 = vsel %vm5785, %v5686, %v5782
    %v5788 = vld [vmem:[#allocation3] sm:$0xf]
    %v5791 = vrot.slane %v5787, 6
    %vm5792 = vcmask 1041408
    %v5793 = vsel %vm5792, %v5786, %v5791
    %v5795 = vmax.f32 %v5788, %v5793
    %5796 = vst [vmem:[#allocation3] sm:$0xf] %v5795
    // Predicated region
    $region42: #{tpu_custom_call.1} parent=1 // pred_check
      _
    $region43: #{tpu_custom_call.1} parent=1 // pred_check_branch
      %5798 = sbr.rel (0) target = $region45
    $region44: #{tpu_custom_call.1} parent=1 // pred_region
      %5800 = vsyncadd [#allocation4], 0
      %s5802 = sshll.u32 [#allocation3], 4
      %s5803 = int_to_ptr.vmem [resolvable:$true] %s5802
      %s5804 = sshll.u32 %s9, 4
      %s5805 = int_to_ptr.hbm [resolvable:$true] %s5804
      %5807 = dma.vmem_to_hbm [thread:$0]  %s5803, 64, %s5805, [#allocation4]
    $region45: #{tpu_custom_call.1} parent=1 // pred_fallthru
      _
    // Predicated region
    $region46: #{tpu_custom_call.1} parent=1 // pred_check
      _
    $region47: #{tpu_custom_call.1} parent=1 // pred_check_branch
      %5809 = sbr.rel (0) target = $region49
    $region48: #{tpu_custom_call.1} parent=1 // pred_region
      %5811 = dma.done [#allocation4], 64
    $region49: #{tpu_custom_call.1} parent=1 // pred_fallthru
      _
    %5812 = vsyncpa [#allocation4], 1

</llo_original>
